<compile_context>
chip_gen: v7x
topology: tpu7x:2x2x1
jax: 0.10.0
libtpu: 0.0.40
codegen_flags: <defaults>
</compile_context>

<pallas_src>
import functools
import math

import jax
import jax.numpy as jnp
import numpy as np
from jax.experimental import pallas as pl
from jax.experimental.pallas import tpu as pltpu


# ----------------------------- layer-1 kernel -------------------------------
def l1_kernel(
    # inputs
    x_ref, inv_deg_ref, row_s_ref, col_s_ref, row_l_ref, eattr_ref,
    e1_w1r, e1_w1c, e1_w1e, e1_b1, e1_w2, e1_b2,
    n1_w1x, n1_w1a, n1_b1, n1_w2, n1_b2,
    # outputs
    e1T_out, node1_out,
    # scratch
    xr_proj, xc_proj, agg_acc,
):
    f32 = jnp.float32
    t = pl.program_id(0)
    num_t = pl.num_programs(0)
    N = x_ref.shape[0]
    TE = row_l_ref.shape[1]

    def mm(a, b):
        return jnp.dot(a, b, preferred_element_type=f32)

    @pl.when(t == 0)
    def _init():
        x0 = x_ref[...]
        # Pre-project node features once (exploits linearity); the gathers then
        # run on the H-wide projections instead of the narrow raw features.
        xr_proj[...] = mm(x0, e1_w1r[...])
        xc_proj[...] = mm(x0, e1_w1c[...])
        agg_acc[...] = jnp.zeros_like(agg_acc)

    # One-hot incidence tiles in the contraction-friendly orientation
    # (VPU compares only; no XLU transpose of [TE,N]/[N,TE] tiles downstream).
    ids_en = jax.lax.broadcasted_iota(jnp.int32, (TE, N), 1)   # edge-major
    ids_ne = jax.lax.broadcasted_iota(jnp.int32, (N, TE), 0)   # node-major
    ge_r = (ids_en == row_s_ref[...]).astype(f32)              # [TE, N] gather
    ge_c = (ids_en == col_s_ref[...]).astype(f32)              # [TE, N] gather
    gn_r = (ids_ne == row_l_ref[...]).astype(f32)              # [N, TE] scatter

    # edge MLP on cat(x[row], x[col], edge_attr)
    h1 = jnp.maximum(
        mm(ge_r, xr_proj[...]) + mm(ge_c, xc_proj[...])
        + mm(eattr_ref[...], e1_w1e[...]) + e1_b1[...], 0.0)        # [TE, H]
    edge_emb1 = mm(h1, e1_w2[...]) + e1_b2[...]                      # [TE, De]

    # segment-sum into the node accumulator (padded edges hit no node)
    agg_acc[...] += mm(gn_r, edge_emb1)                              # [N, De]

    # lane-dense store of the intermediate edge embedding ([De, TE] slab)
    e1T_out[...] = jnp.transpose(edge_emb1)

    @pl.when(t == num_t - 1)
    def _finalize():
        agg_mean = agg_acc[...] * inv_deg_ref[...]                   # mean agg
        hn1 = jnp.maximum(
            mm(x_ref[...], n1_w1x[...]) + mm(agg_mean, n1_w1a[...])
            + n1_b1[...], 0.0)
        node1_out[...] = mm(hn1, n1_w2[...]) + n1_b2[...]


# ----------------------------- layer-2 kernel -------------------------------
def l2_kernel(
    # inputs
    n1_ref, inv_deg_ref, row_s_ref, col_s_ref, row_l_ref, col_l_ref, e1T_ref,
    e2_w1r, e2_w1c, e2_w1e, e2_b1, e2_w2, e2_b2,
    n2_w1x, n2_w1a, n2_b1, n2_w2, n2_b2,
    # outputs
    lowT_out, upT_out, node2_out,
    # scratch
    nr_proj, nc_proj, agg_acc,
    *, eps,
):
    f32 = jnp.float32
    t = pl.program_id(0)
    num_t = pl.num_programs(0)
    N = n1_ref.shape[0]
    TE = row_l_ref.shape[1]
    EOUT = agg_acc.shape[1]

    def mm(a, b):
        return jnp.dot(a, b, preferred_element_type=f32)

    @pl.when(t == 0)
    def _init():
        n1 = n1_ref[...]
        nr_proj[...] = mm(n1, e2_w1r[...])   # multiplies n1[row]
        nc_proj[...] = mm(n1, e2_w1c[...])   # multiplies n1[col]
        agg_acc[...] = jnp.zeros_like(agg_acc)

    ids_en = jax.lax.broadcasted_iota(jnp.int32, (TE, N), 1)
    ids_ne = jax.lax.broadcasted_iota(jnp.int32, (N, TE), 0)
    ge_r = (ids_en == row_s_ref[...]).astype(f32)              # gathers n1[row]
    ge_c = (ids_en == col_s_ref[...]).astype(f32)              # gathers n1[col]
    gn_r = (ids_ne == row_l_ref[...]).astype(f32)              # scatter by row

    e1_tile = jnp.transpose(e1T_ref[...])                      # [TE, De]
    h2 = jnp.maximum(
        mm(ge_r, nr_proj[...]) + mm(ge_c, nc_proj[...])
        + mm(e1_tile, e2_w1e[...]) + e2_b1[...], 0.0)          # [TE, H]
    edge_emb2 = mm(h2, e2_w2[...]) + e2_b2[...]                 # [TE, Eout]

    # mean aggregation (numerator) by row
    agg_acc[...] += mm(gn_r, edge_emb2)                         # [N, Eout]

    # ---- transform_output_matrix (training / smooth_activation path), fused --
    e2T = jnp.transpose(edge_emb2)                              # [Eout, TE]
    row_lane = row_l_ref[...]
    col_lane = col_l_ref[...]
    diag = row_lane == col_lane
    lower_m = row_lane >= col_lane
    upper_m = row_lane <= col_lane
    lv = e2T[0:1, :]                                            # edge_values[:, 0]
    uv = e2T[EOUT - 1:EOUT, :]                                  # edge_values[:, -1]
    smooth = lv * (1.0 + jnp.exp(-jnp.abs((4.0 / eps) * lv) + 2.0))
    lowT_out[...] = jnp.where(lower_m, jnp.where(diag, smooth, lv), 0.0)
    upT_out[...] = jnp.where(upper_m, jnp.where(diag, 1.0, uv), 0.0)

    @pl.when(t == num_t - 1)
    def _finalize():
        agg_mean = agg_acc[...] * inv_deg_ref[...]
        hn2 = jnp.maximum(
            mm(n1_ref[...], n2_w1x[...]) + mm(agg_mean, n2_w1a[...])
            + n2_b1[...], 0.0)
        node2_out[...] = mm(hn2, n2_w2[...]) + n2_b2[...]


# ------------------------------ wrapper --------------------------------------
def learned_lu_forward(x, edge_index, edge_attr, params, *,
                       epsilon=1e-3, tile_edges=128):
    """Pallas implementation of LearnedLU.forward (2 MP steps, training path).

    Returns (lower_vals[E], upper_vals[E], bound, node_embedding[N,F]); the
    lower/upper arrays are the COO values of L / U on the given edge_index
    (zero where the edge is not in the respective triangle).
    """
    N, F = x.shape
    E = edge_index.shape[1]
    row = edge_index[0].astype(jnp.int32)
    col = edge_index[1].astype(jnp.int32)

    # additional_edge_feature: -1 strictly-lower, +1 strictly-upper, 0 diagonal
    tri = jnp.where(row > col, -1.0, jnp.where(row < col, 1.0, 0.0))
    eattr2 = jnp.concatenate(
        [edge_attr.astype(jnp.float32), tri[:, None].astype(jnp.float32)], axis=1)
    EIN = eattr2.shape[1]

    H = params["e1_w2"].shape[0]
    DE = params["e1_w2"].shape[1]
    EOUT = params["e2_w2"].shape[1]

    num_tiles = -(-E // tile_edges)
    e_pad = num_tiles * tile_edges
    pad = e_pad - E
    if pad:
        # out-of-range sentinel: padded edges select / scatter to no node.
        sentinel = jnp.full((pad,), N, jnp.int32)
        row_p = jnp.concatenate([row, sentinel])
        col_p = jnp.concatenate([col, sentinel])
        eattr_p = jnp.pad(eattr2, ((0, pad), (0, 0)))
    else:
        row_p, col_p, eattr_p = row, col, eattr2

    row_l = row_p.reshape(1, e_pad)        # lane-major   (for [N, TE] one-hots)
    col_l = col_p.reshape(1, e_pad)
    row_s = row_p.reshape(e_pad, 1)        # sublane-major (for [TE, N] one-hots)
    col_s = col_p.reshape(e_pad, 1)

    # mean-aggregation denominators (same `row` index for both layers)
    deg = jnp.zeros((N,), jnp.float32).at[row].add(1.0)
    inv_deg = (1.0 / jnp.maximum(deg, 1.0)).reshape(N, 1)

    p = params
    # split the first-layer weight matrices along their concat axis (glue)
    e1_w1r, e1_w1c, e1_w1e = p["e1_w1"][:F], p["e1_w1"][F:2 * F], p["e1_w1"][2 * F:]
    n1_w1x, n1_w1a = p["n1_w1"][:F], p["n1_w1"][F:]
    e2_w1r, e2_w1c, e2_w1e = p["e2_w1"][:F], p["e2_w1"][F:2 * F], p["e2_w1"][2 * F:]
    n2_w1x, n2_w1a = p["n2_w1"][:F], p["n2_w1"][F:]

    def fullspec(shape):                   # grid-invariant whole-array block
        zeros = (0,) * len(shape)
        return pl.BlockSpec(shape, lambda t: zeros)

    edge_sub = pl.BlockSpec((tile_edges, 1), lambda t: (t, 0))
    edge_lane = pl.BlockSpec((1, tile_edges), lambda t: (0, t))
    eattr_spec = pl.BlockSpec((tile_edges, EIN), lambda t: (t, 0))
    e1T_spec = pl.BlockSpec((DE, tile_edges), lambda t: (0, t))
    lu_spec = pl.BlockSpec((1, tile_edges), lambda t: (0, t))

    cparams = pltpu.CompilerParams(
        dimension_semantics=("arbitrary",),     # edge axis accumulates into scratch
        vmem_limit_bytes=48 * 1024 * 1024,      # safe on v5e/v6e/v7x
    )

    # -------- layer 1 (first layer: edge_features 2 -> 32) --------
    l1_weights = (e1_w1r, e1_w1c, e1_w1e, p["e1_b1"], p["e1_w2"], p["e1_b2"],
                  n1_w1x, n1_w1a, p["n1_b1"], p["n1_w2"], p["n1_b2"])
    e1T, node1 = pl.pallas_call(
        l1_kernel,
        grid=(num_tiles,),
        in_specs=[fullspec(x.shape), fullspec(inv_deg.shape),
                  edge_sub, edge_sub, edge_lane, eattr_spec]
                 + [fullspec(w.shape) for w in l1_weights],
        out_specs=(e1T_spec, fullspec((N, F))),
        out_shape=(
            jax.ShapeDtypeStruct((DE, e_pad), jnp.float32),
            jax.ShapeDtypeStruct((N, F), jnp.float32),
        ),
        scratch_shapes=[
            pltpu.VMEM((N, H), jnp.float32),
            pltpu.VMEM((N, H), jnp.float32),
            pltpu.VMEM((N, DE), jnp.float32),
        ],
        compiler_params=cparams,
    )(x, inv_deg, row_s, col_s, row_l, eattr_p, *l1_weights)

    # -------- layer 2 (last layer: edge_features 32 -> 1) + output transform --
    l2_weights = (e2_w1r, e2_w1c, e2_w1e, p["e2_b1"], p["e2_w2"], p["e2_b2"],
                  n2_w1x, n2_w1a, p["n2_b1"], p["n2_w2"], p["n2_b2"])
    lowT, upT, node2 = pl.pallas_call(
        functools.partial(l2_kernel, eps=float(epsilon)),
        grid=(num_tiles,),
        in_specs=[fullspec((N, F)), fullspec(inv_deg.shape),
                  edge_sub, edge_sub, edge_lane, edge_lane, e1T_spec]
                 + [fullspec(w.shape) for w in l2_weights],
        out_specs=(lu_spec, lu_spec, fullspec((N, F))),
        out_shape=(
            jax.ShapeDtypeStruct((1, e_pad), jnp.float32),
            jax.ShapeDtypeStruct((1, e_pad), jnp.float32),
            jax.ShapeDtypeStruct((N, F), jnp.float32),
        ),
        scratch_shapes=[
            pltpu.VMEM((N, H), jnp.float32),
            pltpu.VMEM((N, H), jnp.float32),
            pltpu.VMEM((N, EOUT), jnp.float32),
        ],
        compiler_params=cparams,
    )(node1, inv_deg, row_s, col_s, row_l, col_l, e1T, *l2_weights)

    lower_vals = lowT[0, :E]
    upper_vals = upT[0, :E]
    diag = row == col
    bound = jnp.min(jnp.where(diag, jnp.abs(lower_vals), jnp.inf))
    return lower_vals, upper_vals, bound, node2


# --------------------------- pure-JAX reference -------------------------------
def learned_lu_reference(x, edge_index, edge_attr, params, epsilon):
    row, col = edge_index[0], edge_index[1]
    N = x.shape[0]

    def mlp(inp, w1, b1, w2, b2):
        return jnp.maximum(inp @ w1 + b1, 0.0) @ w2 + b2

    tri = jnp.where(row > col, -1.0, jnp.where(row < col, 1.0, 0.0))
    eattr2 = jnp.concatenate([edge_attr, tri[:, None].astype(jnp.float32)], axis=1)

    cnt = jnp.zeros((N, 1), jnp.float32).at[row].add(1.0)

    # layer 1 (mean aggregation by row)
    cat1 = jnp.concatenate([x[row], x[col], eattr2], axis=1)
    e1 = mlp(cat1, params["e1_w1"], params["e1_b1"], params["e1_w2"], params["e1_b2"])
    agg1 = jnp.zeros((N, e1.shape[1]), jnp.float32).at[row].add(e1) / jnp.maximum(cnt, 1.0)
    n1 = mlp(jnp.concatenate([x, agg1], axis=1), params["n1_w1"], params["n1_b1"],
             params["n1_w2"], params["n1_b2"])

    # layer 2 (same edge_index, mean aggregation by row)
    cat2 = jnp.concatenate([n1[row], n1[col], e1], axis=1)
    e2 = mlp(cat2, params["e2_w1"], params["e2_b1"], params["e2_w2"], params["e2_b2"])
    agg2 = jnp.zeros((N, e2.shape[1]), jnp.float32).at[row].add(e2) / jnp.maximum(cnt, 1.0)
    n2 = mlp(jnp.concatenate([n1, agg2], axis=1), params["n2_w1"], params["n2_b1"],
             params["n2_w2"], params["n2_b2"])

    # transform_output_matrix (training path, smooth activation)
    diag = row == col
    lower_m = row >= col
    upper_m = row <= col
    lv = e2[:, 0]
    uv = e2[:, -1]
    smooth = lv * (1.0 + jnp.exp(-jnp.abs((4.0 / epsilon) * lv) + 2.0))
    lower_vals = jnp.where(lower_m, jnp.where(diag, smooth, lv), 0.0)
    upper_vals = jnp.where(upper_m, jnp.where(diag, 1.0, uv), 0.0)
    bound = jnp.min(jnp.where(diag, jnp.abs(lower_vals), jnp.inf))
    return lower_vals, upper_vals, bound, n2


# --------------------------- deterministic init -------------------------------
def init_params(key, node_features, hidden_size, edge_in, edge_mid, edge_out):
    def linear(key, fan_in, fan_out):
        kw, kb = jax.random.split(key)
        bound = 1.0 / math.sqrt(fan_in)
        w = jax.random.uniform(kw, (fan_in, fan_out), jnp.float32, -bound, bound)
        b = jax.random.uniform(kb, (1, fan_out), jnp.float32, -bound, bound)
        return w, b

    keys = jax.random.split(key, 8)
    F = node_features
    p = {}
    # layer-1 edge MLP: [edge_in + 2F, H, edge_mid]
    p["e1_w1"], p["e1_b1"] = linear(keys[0], edge_in + 2 * F, hidden_size)
    p["e1_w2"], p["e1_b2"] = linear(keys[1], hidden_size, edge_mid)
    # layer-1 node MLP: [edge_mid + F, H, F]
    p["n1_w1"], p["n1_b1"] = linear(keys[2], edge_mid + F, hidden_size)
    p["n1_w2"], p["n1_b2"] = linear(keys[3], hidden_size, F)
    # layer-2 edge MLP: [edge_mid + 2F, H, edge_out]
    p["e2_w1"], p["e2_b1"] = linear(keys[4], edge_mid + 2 * F, hidden_size)
    p["e2_w2"], p["e2_b2"] = linear(keys[5], hidden_size, edge_out)
    # layer-2 node MLP: [edge_out + F, H, F]
    p["n2_w1"], p["n2_b1"] = linear(keys[6], edge_out + F, hidden_size)
    p["n2_w2"], p["n2_b2"] = linear(keys[7], hidden_size, F)
    return p


if __name__ == "__main__":
    # LearnedLU config: 2 MP steps, augment_nodes=False, global_features=0
    N, F = 32, 1              # nodes, node features
    H = 32                    # hidden size
    DE = 32                   # internal edge feature width (num_edge_features)
    EIN = 2                   # edge_attr (1) + lower/upper indicator (1)
    EOUT = 1                  # last-layer edge output width
    NEIGH = 10                # + self loop -> 11 edges/node -> E = 352 -> 3 tiles

    key = jax.random.PRNGKey(0)
    k_x, k_e, k_p = jax.random.split(key, 3)

    # deterministic graph with every self loop already present
    rows = np.repeat(np.arange(N), NEIGH + 1)
    cols = np.concatenate([(np.arange(N) + d) % N for d in range(0, NEIGH + 1)]
                          ).reshape(NEIGH + 1, N).T.reshape(-1)
    edge_index = jnp.asarray(np.stack([rows, cols]), dtype=jnp.int32)   # [2, E]
    E = edge_index.shape[1]

    x = jax.random.normal(k_x, (N, F), jnp.float32)
    edge_attr = jax.random.normal(k_e, (E, 1), jnp.float32)
    params = init_params(k_p, F, H, EIN, DE, EOUT)

    fwd = jax.jit(functools.partial(learned_lu_forward,
                                    epsilon=1e-3, tile_edges=128))
    low, up, bound, node2 = fwd(x, edge_index, edge_attr, params)
    jax.block_until_ready((low, up, bound, node2))

    l_ref, u_ref, b_ref, n_ref = learned_lu_reference(x, edge_index, edge_attr,
                                                      params, 1e-3)
    np.testing.assert_allclose(np.asarray(low), np.asarray(l_ref),
                               rtol=1e-4, atol=1e-5)
    np.testing.assert_allclose(np.asarray(up), np.asarray(u_ref),
                               rtol=1e-4, atol=1e-5)
    np.testing.assert_allclose(np.asarray(node2), np.asarray(n_ref),
                               rtol=1e-4, atol=1e-5)
    np.testing.assert_allclose(np.asarray(bound), np.asarray(b_ref),
                               rtol=1e-4, atol=1e-5)

    print("KERNEL_OK")
</pallas_src>

<mosaic_0001>
module attributes {stable_mosaic.version = 11 : i64} {
  func.func private @main(%arg0: i32) attributes {dimension_semantics = [#tpu.dimension_semantics<core_parallel>], iteration_bounds = array<i64: 2>, tpu.core_type = #tpu.core_type<sc_scalar_subcore>, window_params = []} {
    return
  }
}

module attributes {stable_mosaic.version = 11 : i64} {
  func.func private @main(%arg0: i32) attributes {dimension_semantics = [#tpu.dimension_semantics<core_parallel>], iteration_bounds = array<i64: 2>, tpu.core_type = #tpu.core_type<sc_scalar_subcore>, window_params = []} {
    return
  }
}

module attributes {stable_mosaic.version = 11 : i64} {
  func.func @l1_kernel(%arg0: i32, %arg1: memref<32x1xf32, #tpu.memory_space<vmem>>, %arg2: memref<32x1xf32, #tpu.memory_space<vmem>>, %arg3: memref<128x1xi32, #tpu.memory_space<vmem>>, %arg4: memref<128x1xi32, #tpu.memory_space<vmem>>, %arg5: memref<1x128xi32, #tpu.memory_space<vmem>>, %arg6: memref<128x2xf32, #tpu.memory_space<vmem>>, %arg7: memref<1x32xf32, #tpu.memory_space<vmem>>, %arg8: memref<1x32xf32, #tpu.memory_space<vmem>>, %arg9: memref<2x32xf32, #tpu.memory_space<vmem>>, %arg10: memref<1x32xf32, #tpu.memory_space<vmem>>, %arg11: memref<32x32xf32, #tpu.memory_space<vmem>>, %arg12: memref<1x32xf32, #tpu.memory_space<vmem>>, %arg13: memref<1x32xf32, #tpu.memory_space<vmem>>, %arg14: memref<32x32xf32, #tpu.memory_space<vmem>>, %arg15: memref<1x32xf32, #tpu.memory_space<vmem>>, %arg16: memref<32x1xf32, #tpu.memory_space<vmem>>, %arg17: memref<1x1xf32, #tpu.memory_space<vmem>>, %arg18: memref<32x128xf32, #tpu.memory_space<vmem>>, %arg19: memref<32x1xf32, #tpu.memory_space<vmem>>, %arg20: memref<32x32xf32, #tpu.memory_space<vmem>>, %arg21: memref<32x32xf32, #tpu.memory_space<vmem>>, %arg22: memref<32x32xf32, #tpu.memory_space<vmem>>) attributes {dimension_semantics = [#tpu.dimension_semantics<arbitrary>], iteration_bounds = array<i64: 3>, scalar_prefetch = 0 : i64, scratch_operands = 3 : i64, tpu.core_type = #tpu.core_type<tc>, window_params = [{pipeline_mode = #tpu.pipeline_mode<synchronous>, transform_indices = @transform_0, window_bounds = array<i64: 32, 1>}, {pipeline_mode = #tpu.pipeline_mode<synchronous>, transform_indices = @transform_1, window_bounds = array<i64: 32, 1>}, {transform_indices = @transform_2, window_bounds = array<i64: 128, 1>}, {transform_indices = @transform_3, window_bounds = array<i64: 128, 1>}, {transform_indices = @transform_4, window_bounds = array<i64: 1, 128>}, {transform_indices = @transform_5, window_bounds = array<i64: 128, 2>}, {pipeline_mode = #tpu.pipeline_mode<synchronous>, transform_indices = @transform_6, window_bounds = array<i64: 1, 32>}, {pipeline_mode = #tpu.pipeline_mode<synchronous>, transform_indices = @transform_7, window_bounds = array<i64: 1, 32>}, {pipeline_mode = #tpu.pipeline_mode<synchronous>, transform_indices = @transform_8, window_bounds = array<i64: 2, 32>}, {pipeline_mode = #tpu.pipeline_mode<synchronous>, transform_indices = @transform_9, window_bounds = array<i64: 1, 32>}, {pipeline_mode = #tpu.pipeline_mode<synchronous>, transform_indices = @transform_10, window_bounds = array<i64: 32, 32>}, {pipeline_mode = #tpu.pipeline_mode<synchronous>, transform_indices = @transform_11, window_bounds = array<i64: 1, 32>}, {pipeline_mode = #tpu.pipeline_mode<synchronous>, transform_indices = @transform_12, window_bounds = array<i64: 1, 32>}, {pipeline_mode = #tpu.pipeline_mode<synchronous>, transform_indices = @transform_13, window_bounds = array<i64: 32, 32>}, {pipeline_mode = #tpu.pipeline_mode<synchronous>, transform_indices = @transform_14, window_bounds = array<i64: 1, 32>}, {pipeline_mode = #tpu.pipeline_mode<synchronous>, transform_indices = @transform_15, window_bounds = array<i64: 32, 1>}, {pipeline_mode = #tpu.pipeline_mode<synchronous>, transform_indices = @transform_16, window_bounds = array<i64: 1, 1>}, {transform_indices = @transform_17, window_bounds = array<i64: 32, 128>}, {pipeline_mode = #tpu.pipeline_mode<synchronous>, transform_indices = @transform_18, window_bounds = array<i64: 32, 1>}]} {
    %c0_i32 = arith.constant 0 : i32
    %0 = arith.cmpi eq, %arg0, %c0_i32 : i32
    %1 = arith.extui %0 : i1 to i32
    %c0_i32_0 = arith.constant 0 : i32
    %2 = arith.cmpi ne, %1, %c0_i32_0 : i32
    scf.if %2 {
      %c0_32 = arith.constant 0 : index
      %c0_33 = arith.constant 0 : index
      %48 = vector.load %arg1[%c0_32, %c0_33] : memref<32x1xf32, #tpu.memory_space<vmem>>, vector<32x1xf32>
      %c0_34 = arith.constant 0 : index
      %c0_35 = arith.constant 0 : index
      %49 = vector.load %arg7[%c0_34, %c0_35] : memref<1x32xf32, #tpu.memory_space<vmem>>, vector<1x32xf32>
      %cst_36 = arith.constant dense<0.000000e+00> : vector<32x32xf32>
      %50 = tpu.matmul %48, %49, %cst_36 {dimension_numbers = #tpu.dot_dimension_numbers<[1], [0], [0], [1], [0, 0, 1, 1], [], []>} : vector<32x1xf32>, vector<1x32xf32>, vector<32x32xf32> -> vector<32x32xf32>
      %c0_37 = arith.constant 0 : index
      %c0_38 = arith.constant 0 : index
      %51 = vector.load %arg20[%c0_37, %c0_38] : memref<32x32xf32, #tpu.memory_space<vmem>>, vector<32x32xf32>
      tpu.vector_store %arg20[%c0_37, %c0_38], %50 {strides = array<i32>} : memref<32x32xf32, #tpu.memory_space<vmem>>, vector<32x32xf32>,
      %c0_39 = arith.constant 0 : index
      %c0_40 = arith.constant 0 : index
      %52 = vector.load %arg8[%c0_39, %c0_40] : memref<1x32xf32, #tpu.memory_space<vmem>>, vector<1x32xf32>
      %cst_41 = arith.constant dense<0.000000e+00> : vector<32x32xf32>
      %53 = tpu.matmul %48, %52, %cst_41 {dimension_numbers = #tpu.dot_dimension_numbers<[1], [0], [0], [1], [0, 0, 1, 1], [], []>} : vector<32x1xf32>, vector<1x32xf32>, vector<32x32xf32> -> vector<32x32xf32>
      %c0_42 = arith.constant 0 : index
      %c0_43 = arith.constant 0 : index
      %54 = vector.load %arg21[%c0_42, %c0_43] : memref<32x32xf32, #tpu.memory_space<vmem>>, vector<32x32xf32>
      tpu.vector_store %arg21[%c0_42, %c0_43], %53 {strides = array<i32>} : memref<32x32xf32, #tpu.memory_space<vmem>>, vector<32x32xf32>,
      %cst_44 = arith.constant 0.000000e+00 : f32
      %55 = vector.broadcast %cst_44 : f32 to vector<32x32xf32>
      %c0_45 = arith.constant 0 : index
      %c0_46 = arith.constant 0 : index
      %56 = vector.load %arg22[%c0_45, %c0_46] : memref<32x32xf32, #tpu.memory_space<vmem>>, vector<32x32xf32>
      tpu.vector_store %arg22[%c0_45, %c0_46], %55 {strides = array<i32>} : memref<32x32xf32, #tpu.memory_space<vmem>>, vector<32x32xf32>,
    } else {
    }
    %3 = tpu.iota {dimensions = array<i32: 1>} : vector<128x32xi32>
    %4 = tpu.iota {dimensions = array<i32: 0>} : vector<32x128xi32>
    %c0 = arith.constant 0 : index
    %c0_1 = arith.constant 0 : index
    %5 = vector.load %arg3[%c0, %c0_1] : memref<128x1xi32, #tpu.memory_space<vmem>>, vector<128x1xi32>
    %6 = vector.broadcast %5 : vector<128x1xi32> to vector<128x32xi32>
    %7 = arith.cmpi eq, %3, %6 : vector<128x32xi32>
    %8 = arith.extui %7 : vector<128x32xi1> to vector<128x32xi32>
    %9 = arith.sitofp %8 : vector<128x32xi32> to vector<128x32xf32>
    %c0_2 = arith.constant 0 : index
    %c0_3 = arith.constant 0 : index
    %10 = vector.load %arg4[%c0_2, %c0_3] : memref<128x1xi32, #tpu.memory_space<vmem>>, vector<128x1xi32>
    %11 = vector.broadcast %10 : vector<128x1xi32> to vector<128x32xi32>
    %12 = arith.cmpi eq, %3, %11 : vector<128x32xi32>
    %13 = arith.extui %12 : vector<128x32xi1> to vector<128x32xi32>
    %14 = arith.sitofp %13 : vector<128x32xi32> to vector<128x32xf32>
    %c0_4 = arith.constant 0 : index
    %c0_5 = arith.constant 0 : index
    %15 = vector.load %arg5[%c0_4, %c0_5] : memref<1x128xi32, #tpu.memory_space<vmem>>, vector<1x128xi32>
    %16 = vector.broadcast %15 : vector<1x128xi32> to vector<32x128xi32>
    %17 = arith.cmpi eq, %4, %16 : vector<32x128xi32>
    %18 = arith.extui %17 : vector<32x128xi1> to vector<32x128xi32>
    %19 = arith.sitofp %18 : vector<32x128xi32> to vector<32x128xf32>
    %c0_6 = arith.constant 0 : index
    %c0_7 = arith.constant 0 : index
    %20 = vector.load %arg20[%c0_6, %c0_7] : memref<32x32xf32, #tpu.memory_space<vmem>>, vector<32x32xf32>
    %cst = arith.constant dense<0.000000e+00> : vector<128x32xf32>
    %21 = tpu.matmul %9, %20, %cst {dimension_numbers = #tpu.dot_dimension_numbers<[1], [0], [0], [1], [0, 0, 1, 1], [], []>} : vector<128x32xf32>, vector<32x32xf32>, vector<128x32xf32> -> vector<128x32xf32>
    %c0_8 = arith.constant 0 : index
    %c0_9 = arith.constant 0 : index
    %22 = vector.load %arg21[%c0_8, %c0_9] : memref<32x32xf32, #tpu.memory_space<vmem>>, vector<32x32xf32>
    %cst_10 = arith.constant dense<0.000000e+00> : vector<128x32xf32>
    %23 = tpu.matmul %14, %22, %cst_10 {dimension_numbers = #tpu.dot_dimension_numbers<[1], [0], [0], [1], [0, 0, 1, 1], [], []>} : vector<128x32xf32>, vector<32x32xf32>, vector<128x32xf32> -> vector<128x32xf32>
    %24 = arith.addf %21, %23 : vector<128x32xf32>
    %c0_11 = arith.constant 0 : index
    %c0_12 = arith.constant 0 : index
    %25 = vector.load %arg6[%c0_11, %c0_12] : memref<128x2xf32, #tpu.memory_space<vmem>>, vector<128x2xf32>
    %c0_13 = arith.constant 0 : index
    %c0_14 = arith.constant 0 : index
    %26 = vector.load %arg9[%c0_13, %c0_14] : memref<2x32xf32, #tpu.memory_space<vmem>>, vector<2x32xf32>
    %cst_15 = arith.constant dense<0.000000e+00> : vector<128x32xf32>
    %27 = tpu.matmul %25, %26, %cst_15 {dimension_numbers = #tpu.dot_dimension_numbers<[1], [0], [0], [1], [0, 0, 1, 1], [], []>} : vector<128x2xf32>, vector<2x32xf32>, vector<128x32xf32> -> vector<128x32xf32>
    %28 = arith.addf %24, %27 : vector<128x32xf32>
    %c0_16 = arith.constant 0 : index
    %c0_17 = arith.constant 0 : index
    %29 = vector.load %arg10[%c0_16, %c0_17] : memref<1x32xf32, #tpu.memory_space<vmem>>, vector<1x32xf32>
    %30 = vector.broadcast %29 : vector<1x32xf32> to vector<128x32xf32>
    %31 = arith.addf %28, %30 : vector<128x32xf32>
    %cst_18 = arith.constant 0.000000e+00 : f32
    %32 = vector.broadcast %cst_18 : f32 to vector<128x32xf32>
    %33 = arith.maximumf %31, %32 : vector<128x32xf32>
    %c0_19 = arith.constant 0 : index
    %c0_20 = arith.constant 0 : index
    %34 = vector.load %arg11[%c0_19, %c0_20] : memref<32x32xf32, #tpu.memory_space<vmem>>, vector<32x32xf32>
    %cst_21 = arith.constant dense<0.000000e+00> : vector<128x32xf32>
    %35 = tpu.matmul %33, %34, %cst_21 {dimension_numbers = #tpu.dot_dimension_numbers<[1], [0], [0], [1], [0, 0, 1, 1], [], []>} : vector<128x32xf32>, vector<32x32xf32>, vector<128x32xf32> -> vector<128x32xf32>
    %c0_22 = arith.constant 0 : index
    %c0_23 = arith.constant 0 : index
    %36 = vector.load %arg12[%c0_22, %c0_23] : memref<1x32xf32, #tpu.memory_space<vmem>>, vector<1x32xf32>
    %37 = vector.broadcast %36 : vector<1x32xf32> to vector<128x32xf32>
    %38 = arith.addf %35, %37 : vector<128x32xf32>
    %c0_24 = arith.constant 0 : index
    %c0_25 = arith.constant 0 : index
    %39 = vector.load %arg22[%c0_24, %c0_25] : memref<32x32xf32, #tpu.memory_space<vmem>>, vector<32x32xf32>
    %cst_26 = arith.constant dense<0.000000e+00> : vector<32x32xf32>
    %40 = tpu.matmul %19, %38, %cst_26 {dimension_numbers = #tpu.dot_dimension_numbers<[1], [0], [0], [1], [0, 0, 1, 1], [], []>} : vector<32x128xf32>, vector<128x32xf32>, vector<32x32xf32> -> vector<32x32xf32>
    %41 = arith.addf %39, %40 : vector<32x32xf32>
    %c0_27 = arith.constant 0 : index
    %c0_28 = arith.constant 0 : index
    %42 = vector.load %arg22[%c0_27, %c0_28] : memref<32x32xf32, #tpu.memory_space<vmem>>, vector<32x32xf32>
    tpu.vector_store %arg22[%c0_27, %c0_28], %41 {strides = array<i32>} : memref<32x32xf32, #tpu.memory_space<vmem>>, vector<32x32xf32>,
    %43 = tpu.transpose %38, [1, 0] : vector<128x32xf32> -> vector<32x128xf32>
    %c0_29 = arith.constant 0 : index
    %c0_30 = arith.constant 0 : index
    %44 = vector.load %arg18[%c0_29, %c0_30] : memref<32x128xf32, #tpu.memory_space<vmem>>, vector<32x128xf32>
    tpu.vector_store %arg18[%c0_29, %c0_30], %43 {strides = array<i32>} : memref<32x128xf32, #tpu.memory_space<vmem>>, vector<32x128xf32>,
    %c2_i32 = arith.constant 2 : i32
    %45 = arith.cmpi eq, %arg0, %c2_i32 : i32
    %46 = arith.extui %45 : i1 to i32
    %c0_i32_31 = arith.constant 0 : i32
    %47 = arith.cmpi ne, %46, %c0_i32_31 : i32
    scf.if %47 {
      %c0_32 = arith.constant 0 : index
      %c0_33 = arith.constant 0 : index
      %48 = vector.load %arg22[%c0_32, %c0_33] : memref<32x32xf32, #tpu.memory_space<vmem>>, vector<32x32xf32>
      %c0_34 = arith.constant 0 : index
      %c0_35 = arith.constant 0 : index
      %49 = vector.load %arg2[%c0_34, %c0_35] : memref<32x1xf32, #tpu.memory_space<vmem>>, vector<32x1xf32>
      %50 = vector.broadcast %49 : vector<32x1xf32> to vector<32x32xf32>
      %51 = arith.mulf %48, %50 : vector<32x32xf32>
      %c0_36 = arith.constant 0 : index
      %c0_37 = arith.constant 0 : index
      %52 = vector.load %arg1[%c0_36, %c0_37] : memref<32x1xf32, #tpu.memory_space<vmem>>, vector<32x1xf32>
      %c0_38 = arith.constant 0 : index
      %c0_39 = arith.constant 0 : index
      %53 = vector.load %arg13[%c0_38, %c0_39] : memref<1x32xf32, #tpu.memory_space<vmem>>, vector<1x32xf32>
      %cst_40 = arith.constant dense<0.000000e+00> : vector<32x32xf32>
      %54 = tpu.matmul %52, %53, %cst_40 {dimension_numbers = #tpu.dot_dimension_numbers<[1], [0], [0], [1], [0, 0, 1, 1], [], []>} : vector<32x1xf32>, vector<1x32xf32>, vector<32x32xf32> -> vector<32x32xf32>
      %c0_41 = arith.constant 0 : index
      %c0_42 = arith.constant 0 : index
      %55 = vector.load %arg14[%c0_41, %c0_42] : memref<32x32xf32, #tpu.memory_space<vmem>>, vector<32x32xf32>
      %cst_43 = arith.constant dense<0.000000e+00> : vector<32x32xf32>
      %56 = tpu.matmul %51, %55, %cst_43 {dimension_numbers = #tpu.dot_dimension_numbers<[1], [0], [0], [1], [0, 0, 1, 1], [], []>} : vector<32x32xf32>, vector<32x32xf32>, vector<32x32xf32> -> vector<32x32xf32>
      %57 = arith.addf %54, %56 : vector<32x32xf32>
      %c0_44 = arith.constant 0 : index
      %c0_45 = arith.constant 0 : index
      %58 = vector.load %arg15[%c0_44, %c0_45] : memref<1x32xf32, #tpu.memory_space<vmem>>, vector<1x32xf32>
      %59 = vector.broadcast %58 : vector<1x32xf32> to vector<32x32xf32>
      %60 = arith.addf %57, %59 : vector<32x32xf32>
      %cst_46 = arith.constant 0.000000e+00 : f32
      %61 = vector.broadcast %cst_46 : f32 to vector<32x32xf32>
      %62 = arith.maximumf %60, %61 : vector<32x32xf32>
      %c0_47 = arith.constant 0 : index
      %c0_48 = arith.constant 0 : index
      %63 = vector.load %arg16[%c0_47, %c0_48] : memref<32x1xf32, #tpu.memory_space<vmem>>, vector<32x1xf32>
      %cst_49 = arith.constant dense<0.000000e+00> : vector<32x1xf32>
      %64 = tpu.matmul %62, %63, %cst_49 {dimension_numbers = #tpu.dot_dimension_numbers<[1], [0], [0], [1], [0, 0, 1, 1], [], []>} : vector<32x32xf32>, vector<32x1xf32>, vector<32x1xf32> -> vector<32x1xf32>
      %c0_50 = arith.constant 0 : index
      %c0_51 = arith.constant 0 : index
      %65 = vector.load %arg17[%c0_50, %c0_51] : memref<1x1xf32, #tpu.memory_space<vmem>>, vector<1x1xf32>
      %66 = vector.broadcast %65 : vector<1x1xf32> to vector<32x1xf32>
      %67 = arith.addf %64, %66 : vector<32x1xf32>
      %c0_52 = arith.constant 0 : index
      %c0_53 = arith.constant 0 : index
      %68 = vector.load %arg19[%c0_52, %c0_53] : memref<32x1xf32, #tpu.memory_space<vmem>>, vector<32x1xf32>
      tpu.vector_store %arg19[%c0_52, %c0_53], %67 {strides = array<i32>} : memref<32x1xf32, #tpu.memory_space<vmem>>, vector<32x1xf32>,
    } else {
    }
    return
  }
  func.func @transform_0(%arg0: i32) -> (i32, i32) {
    %c0_i32 = arith.constant 0 : i32
    %c0_i32_0 = arith.constant 0 : i32
    %c0_i32_1 = arith.constant 0 : i32
    return %c0_i32, %c0_i32_0 : i32, i32
  }
  func.func @transform_1(%arg0: i32) -> (i32, i32) {
    %c0_i32 = arith.constant 0 : i32
    %c0_i32_0 = arith.constant 0 : i32
    %c0_i32_1 = arith.constant 0 : i32
    return %c0_i32, %c0_i32_0 : i32, i32
  }
  func.func @transform_2(%arg0: i32) -> (i32, i32) {
    %c0_i32 = arith.constant 0 : i32
    %c0_i32_0 = arith.constant 0 : i32
    return %arg0, %c0_i32 : i32, i32
  }
  func.func @transform_3(%arg0: i32) -> (i32, i32) {
    %c0_i32 = arith.constant 0 : i32
    %c0_i32_0 = arith.constant 0 : i32
    return %arg0, %c0_i32 : i32, i32
  }
  func.func @transform_4(%arg0: i32) -> (i32, i32) {
    %c0_i32 = arith.constant 0 : i32
    %c0_i32_0 = arith.constant 0 : i32
    return %c0_i32, %arg0 : i32, i32
  }
  func.func @transform_5(%arg0: i32) -> (i32, i32) {
    %c0_i32 = arith.constant 0 : i32
    %c0_i32_0 = arith.constant 0 : i32
    return %arg0, %c0_i32 : i32, i32
  }
  func.func @transform_6(%arg0: i32) -> (i32, i32) {
    %c0_i32 = arith.constant 0 : i32
    %c0_i32_0 = arith.constant 0 : i32
    %c0_i32_1 = arith.constant 0 : i32
    return %c0_i32, %c0_i32_0 : i32, i32
  }
  func.func @transform_7(%arg0: i32) -> (i32, i32) {
    %c0_i32 = arith.constant 0 : i32
    %c0_i32_0 = arith.constant 0 : i32
    %c0_i32_1 = arith.constant 0 : i32
    return %c0_i32, %c0_i32_0 : i32, i32
  }
  func.func @transform_8(%arg0: i32) -> (i32, i32) {
    %c0_i32 = arith.constant 0 : i32
    %c0_i32_0 = arith.constant 0 : i32
    %c0_i32_1 = arith.constant 0 : i32
    return %c0_i32, %c0_i32_0 : i32, i32
  }
  func.func @transform_9(%arg0: i32) -> (i32, i32) {
    %c0_i32 = arith.constant 0 : i32
    %c0_i32_0 = arith.constant 0 : i32
    %c0_i32_1 = arith.constant 0 : i32
    return %c0_i32, %c0_i32_0 : i32, i32
  }
  func.func @transform_10(%arg0: i32) -> (i32, i32) {
    %c0_i32 = arith.constant 0 : i32
    %c0_i32_0 = arith.constant 0 : i32
    %c0_i32_1 = arith.constant 0 : i32
    return %c0_i32, %c0_i32_0 : i32, i32
  }
  func.func @transform_11(%arg0: i32) -> (i32, i32) {
    %c0_i32 = arith.constant 0 : i32
    %c0_i32_0 = arith.constant 0 : i32
    %c0_i32_1 = arith.constant 0 : i32
    return %c0_i32, %c0_i32_0 : i32, i32
  }
  func.func @transform_12(%arg0: i32) -> (i32, i32) {
    %c0_i32 = arith.constant 0 : i32
    %c0_i32_0 = arith.constant 0 : i32
    %c0_i32_1 = arith.constant 0 : i32
    return %c0_i32, %c0_i32_0 : i32, i32
  }
  func.func @transform_13(%arg0: i32) -> (i32, i32) {
    %c0_i32 = arith.constant 0 : i32
    %c0_i32_0 = arith.constant 0 : i32
    %c0_i32_1 = arith.constant 0 : i32
    return %c0_i32, %c0_i32_0 : i32, i32
  }
  func.func @transform_14(%arg0: i32) -> (i32, i32) {
    %c0_i32 = arith.constant 0 : i32
    %c0_i32_0 = arith.constant 0 : i32
    %c0_i32_1 = arith.constant 0 : i32
    return %c0_i32, %c0_i32_0 : i32, i32
  }
  func.func @transform_15(%arg0: i32) -> (i32, i32) {
    %c0_i32 = arith.constant 0 : i32
    %c0_i32_0 = arith.constant 0 : i32
    %c0_i32_1 = arith.constant 0 : i32
    return %c0_i32, %c0_i32_0 : i32, i32
  }
  func.func @transform_16(%arg0: i32) -> (i32, i32) {
    %c0_i32 = arith.constant 0 : i32
    %c0_i32_0 = arith.constant 0 : i32
    %c0_i32_1 = arith.constant 0 : i32
    return %c0_i32, %c0_i32_0 : i32, i32
  }
  func.func @transform_17(%arg0: i32) -> (i32, i32) {
    %c0_i32 = arith.constant 0 : i32
    %c0_i32_0 = arith.constant 0 : i32
    return %c0_i32, %arg0 : i32, i32
  }
  func.func @transform_18(%arg0: i32) -> (i32, i32) {
    %c0_i32 = arith.constant 0 : i32
    %c0_i32_0 = arith.constant 0 : i32
    %c0_i32_1 = arith.constant 0 : i32
    return %c0_i32, %c0_i32_0 : i32, i32
  }
}

module attributes {stable_mosaic.version = 11 : i64} {
  func.func @l2_kernel(%arg0: i32, %arg1: memref<32x1xf32, #tpu.memory_space<vmem>>, %arg2: memref<32x1xf32, #tpu.memory_space<vmem>>, %arg3: memref<128x1xi32, #tpu.memory_space<vmem>>, %arg4: memref<128x1xi32, #tpu.memory_space<vmem>>, %arg5: memref<1x128xi32, #tpu.memory_space<vmem>>, %arg6: memref<1x128xi32, #tpu.memory_space<vmem>>, %arg7: memref<32x128xf32, #tpu.memory_space<vmem>>, %arg8: memref<1x32xf32, #tpu.memory_space<vmem>>, %arg9: memref<1x32xf32, #tpu.memory_space<vmem>>, %arg10: memref<32x32xf32, #tpu.memory_space<vmem>>, %arg11: memref<1x32xf32, #tpu.memory_space<vmem>>, %arg12: memref<32x1xf32, #tpu.memory_space<vmem>>, %arg13: memref<1x1xf32, #tpu.memory_space<vmem>>, %arg14: memref<1x32xf32, #tpu.memory_space<vmem>>, %arg15: memref<1x32xf32, #tpu.memory_space<vmem>>, %arg16: memref<1x32xf32, #tpu.memory_space<vmem>>, %arg17: memref<32x1xf32, #tpu.memory_space<vmem>>, %arg18: memref<1x1xf32, #tpu.memory_space<vmem>>, %arg19: memref<1x128xf32, #tpu.memory_space<vmem>>, %arg20: memref<1x128xf32, #tpu.memory_space<vmem>>, %arg21: memref<32x1xf32, #tpu.memory_space<vmem>>, %arg22: memref<32x32xf32, #tpu.memory_space<vmem>>, %arg23: memref<32x32xf32, #tpu.memory_space<vmem>>, %arg24: memref<32x1xf32, #tpu.memory_space<vmem>>) attributes {dimension_semantics = [#tpu.dimension_semantics<arbitrary>], iteration_bounds = array<i64: 3>, scalar_prefetch = 0 : i64, scratch_operands = 3 : i64, tpu.core_type = #tpu.core_type<tc>, window_params = [{pipeline_mode = #tpu.pipeline_mode<synchronous>, transform_indices = @transform_0, window_bounds = array<i64: 32, 1>}, {pipeline_mode = #tpu.pipeline_mode<synchronous>, transform_indices = @transform_1, window_bounds = array<i64: 32, 1>}, {transform_indices = @transform_2, window_bounds = array<i64: 128, 1>}, {transform_indices = @transform_3, window_bounds = array<i64: 128, 1>}, {transform_indices = @transform_4, window_bounds = array<i64: 1, 128>}, {transform_indices = @transform_5, window_bounds = array<i64: 1, 128>}, {transform_indices = @transform_6, window_bounds = array<i64: 32, 128>}, {pipeline_mode = #tpu.pipeline_mode<synchronous>, transform_indices = @transform_7, window_bounds = array<i64: 1, 32>}, {pipeline_mode = #tpu.pipeline_mode<synchronous>, transform_indices = @transform_8, window_bounds = array<i64: 1, 32>}, {pipeline_mode = #tpu.pipeline_mode<synchronous>, transform_indices = @transform_9, window_bounds = array<i64: 32, 32>}, {pipeline_mode = #tpu.pipeline_mode<synchronous>, transform_indices = @transform_10, window_bounds = array<i64: 1, 32>}, {pipeline_mode = #tpu.pipeline_mode<synchronous>, transform_indices = @transform_11, window_bounds = array<i64: 32, 1>}, {pipeline_mode = #tpu.pipeline_mode<synchronous>, transform_indices = @transform_12, window_bounds = array<i64: 1, 1>}, {pipeline_mode = #tpu.pipeline_mode<synchronous>, transform_indices = @transform_13, window_bounds = array<i64: 1, 32>}, {pipeline_mode = #tpu.pipeline_mode<synchronous>, transform_indices = @transform_14, window_bounds = array<i64: 1, 32>}, {pipeline_mode = #tpu.pipeline_mode<synchronous>, transform_indices = @transform_15, window_bounds = array<i64: 1, 32>}, {pipeline_mode = #tpu.pipeline_mode<synchronous>, transform_indices = @transform_16, window_bounds = array<i64: 32, 1>}, {pipeline_mode = #tpu.pipeline_mode<synchronous>, transform_indices = @transform_17, window_bounds = array<i64: 1, 1>}, {transform_indices = @transform_18, window_bounds = array<i64: 1, 128>}, {transform_indices = @transform_19, window_bounds = array<i64: 1, 128>}, {pipeline_mode = #tpu.pipeline_mode<synchronous>, transform_indices = @transform_20, window_bounds = array<i64: 32, 1>}]} {
    %c0_i32 = arith.constant 0 : i32
    %0 = arith.cmpi eq, %arg0, %c0_i32 : i32
    %1 = arith.extui %0 : i1 to i32
    %c0_i32_0 = arith.constant 0 : i32
    %2 = arith.cmpi ne, %1, %c0_i32_0 : i32
    scf.if %2 {
      %c0_45 = arith.constant 0 : index
      %c0_46 = arith.constant 0 : index
      %73 = vector.load %arg1[%c0_45, %c0_46] : memref<32x1xf32, #tpu.memory_space<vmem>>, vector<32x1xf32>
      %c0_47 = arith.constant 0 : index
      %c0_48 = arith.constant 0 : index
      %74 = vector.load %arg8[%c0_47, %c0_48] : memref<1x32xf32, #tpu.memory_space<vmem>>, vector<1x32xf32>
      %cst_49 = arith.constant dense<0.000000e+00> : vector<32x32xf32>
      %75 = tpu.matmul %73, %74, %cst_49 {dimension_numbers = #tpu.dot_dimension_numbers<[1], [0], [0], [1], [0, 0, 1, 1], [], []>} : vector<32x1xf32>, vector<1x32xf32>, vector<32x32xf32> -> vector<32x32xf32>
      %c0_50 = arith.constant 0 : index
      %c0_51 = arith.constant 0 : index
      %76 = vector.load %arg22[%c0_50, %c0_51] : memref<32x32xf32, #tpu.memory_space<vmem>>, vector<32x32xf32>
      tpu.vector_store %arg22[%c0_50, %c0_51], %75 {strides = array<i32>} : memref<32x32xf32, #tpu.memory_space<vmem>>, vector<32x32xf32>,
      %c0_52 = arith.constant 0 : index
      %c0_53 = arith.constant 0 : index
      %77 = vector.load %arg9[%c0_52, %c0_53] : memref<1x32xf32, #tpu.memory_space<vmem>>, vector<1x32xf32>
      %cst_54 = arith.constant dense<0.000000e+00> : vector<32x32xf32>
      %78 = tpu.matmul %73, %77, %cst_54 {dimension_numbers = #tpu.dot_dimension_numbers<[1], [0], [0], [1], [0, 0, 1, 1], [], []>} : vector<32x1xf32>, vector<1x32xf32>, vector<32x32xf32> -> vector<32x32xf32>
      %c0_55 = arith.constant 0 : index
      %c0_56 = arith.constant 0 : index
      %79 = vector.load %arg23[%c0_55, %c0_56] : memref<32x32xf32, #tpu.memory_space<vmem>>, vector<32x32xf32>
      tpu.vector_store %arg23[%c0_55, %c0_56], %78 {strides = array<i32>} : memref<32x32xf32, #tpu.memory_space<vmem>>, vector<32x32xf32>,
      %cst_57 = arith.constant 0.000000e+00 : f32
      %80 = vector.broadcast %cst_57 : f32 to vector<32x1xf32>
      %c0_58 = arith.constant 0 : index
      %c0_59 = arith.constant 0 : index
      %81 = vector.load %arg24[%c0_58, %c0_59] : memref<32x1xf32, #tpu.memory_space<vmem>>, vector<32x1xf32>
      tpu.vector_store %arg24[%c0_58, %c0_59], %80 {strides = array<i32>} : memref<32x1xf32, #tpu.memory_space<vmem>>, vector<32x1xf32>,
    } else {
    }
    %3 = tpu.iota {dimensions = array<i32: 1>} : vector<128x32xi32>
    %4 = tpu.iota {dimensions = array<i32: 0>} : vector<32x128xi32>
    %c0 = arith.constant 0 : index
    %c0_1 = arith.constant 0 : index
    %5 = vector.load %arg3[%c0, %c0_1] : memref<128x1xi32, #tpu.memory_space<vmem>>, vector<128x1xi32>
    %6 = vector.broadcast %5 : vector<128x1xi32> to vector<128x32xi32>
    %7 = arith.cmpi eq, %3, %6 : vector<128x32xi32>
    %8 = arith.extui %7 : vector<128x32xi1> to vector<128x32xi32>
    %9 = arith.sitofp %8 : vector<128x32xi32> to vector<128x32xf32>
    %c0_2 = arith.constant 0 : index
    %c0_3 = arith.constant 0 : index
    %10 = vector.load %arg4[%c0_2, %c0_3] : memref<128x1xi32, #tpu.memory_space<vmem>>, vector<128x1xi32>
    %11 = vector.broadcast %10 : vector<128x1xi32> to vector<128x32xi32>
    %12 = arith.cmpi eq, %3, %11 : vector<128x32xi32>
    %13 = arith.extui %12 : vector<128x32xi1> to vector<128x32xi32>
    %14 = arith.sitofp %13 : vector<128x32xi32> to vector<128x32xf32>
    %c0_4 = arith.constant 0 : index
    %c0_5 = arith.constant 0 : index
    %15 = vector.load %arg5[%c0_4, %c0_5] : memref<1x128xi32, #tpu.memory_space<vmem>>, vector<1x128xi32>
    %16 = vector.broadcast %15 : vector<1x128xi32> to vector<32x128xi32>
    %17 = arith.cmpi eq, %4, %16 : vector<32x128xi32>
    %18 = arith.extui %17 : vector<32x128xi1> to vector<32x128xi32>
    %19 = arith.sitofp %18 : vector<32x128xi32> to vector<32x128xf32>
    %c0_6 = arith.constant 0 : index
    %c0_7 = arith.constant 0 : index
    %20 = vector.load %arg7[%c0_6, %c0_7] : memref<32x128xf32, #tpu.memory_space<vmem>>, vector<32x128xf32>
    %21 = tpu.transpose %20, [1, 0] : vector<32x128xf32> -> vector<128x32xf32>
    %c0_8 = arith.constant 0 : index
    %c0_9 = arith.constant 0 : index
    %22 = vector.load %arg22[%c0_8, %c0_9] : memref<32x32xf32, #tpu.memory_space<vmem>>, vector<32x32xf32>
    %cst = arith.constant dense<0.000000e+00> : vector<128x32xf32>
    %23 = tpu.matmul %9, %22, %cst {dimension_numbers = #tpu.dot_dimension_numbers<[1], [0], [0], [1], [0, 0, 1, 1], [], []>} : vector<128x32xf32>, vector<32x32xf32>, vector<128x32xf32> -> vector<128x32xf32>
    %c0_10 = arith.constant 0 : index
    %c0_11 = arith.constant 0 : index
    %24 = vector.load %arg23[%c0_10, %c0_11] : memref<32x32xf32, #tpu.memory_space<vmem>>, vector<32x32xf32>
    %cst_12 = arith.constant dense<0.000000e+00> : vector<128x32xf32>
    %25 = tpu.matmul %14, %24, %cst_12 {dimension_numbers = #tpu.dot_dimension_numbers<[1], [0], [0], [1], [0, 0, 1, 1], [], []>} : vector<128x32xf32>, vector<32x32xf32>, vector<128x32xf32> -> vector<128x32xf32>
    %26 = arith.addf %23, %25 : vector<128x32xf32>
    %c0_13 = arith.constant 0 : index
    %c0_14 = arith.constant 0 : index
    %27 = vector.load %arg10[%c0_13, %c0_14] : memref<32x32xf32, #tpu.memory_space<vmem>>, vector<32x32xf32>
    %cst_15 = arith.constant dense<0.000000e+00> : vector<128x32xf32>
    %28 = tpu.matmul %21, %27, %cst_15 {dimension_numbers = #tpu.dot_dimension_numbers<[1], [0], [0], [1], [0, 0, 1, 1], [], []>} : vector<128x32xf32>, vector<32x32xf32>, vector<128x32xf32> -> vector<128x32xf32>
    %29 = arith.addf %26, %28 : vector<128x32xf32>
    %c0_16 = arith.constant 0 : index
    %c0_17 = arith.constant 0 : index
    %30 = vector.load %arg11[%c0_16, %c0_17] : memref<1x32xf32, #tpu.memory_space<vmem>>, vector<1x32xf32>
    %31 = vector.broadcast %30 : vector<1x32xf32> to vector<128x32xf32>
    %32 = arith.addf %29, %31 : vector<128x32xf32>
    %cst_18 = arith.constant 0.000000e+00 : f32
    %33 = vector.broadcast %cst_18 : f32 to vector<128x32xf32>
    %34 = arith.maximumf %32, %33 : vector<128x32xf32>
    %c0_19 = arith.constant 0 : index
    %c0_20 = arith.constant 0 : index
    %35 = vector.load %arg12[%c0_19, %c0_20] : memref<32x1xf32, #tpu.memory_space<vmem>>, vector<32x1xf32>
    %cst_21 = arith.constant dense<0.000000e+00> : vector<128x1xf32>
    %36 = tpu.matmul %34, %35, %cst_21 {dimension_numbers = #tpu.dot_dimension_numbers<[1], [0], [0], [1], [0, 0, 1, 1], [], []>} : vector<128x32xf32>, vector<32x1xf32>, vector<128x1xf32> -> vector<128x1xf32>
    %c0_22 = arith.constant 0 : index
    %c0_23 = arith.constant 0 : index
    %37 = vector.load %arg13[%c0_22, %c0_23] : memref<1x1xf32, #tpu.memory_space<vmem>>, vector<1x1xf32>
    %38 = vector.broadcast %37 : vector<1x1xf32> to vector<128x1xf32>
    %39 = arith.addf %36, %38 : vector<128x1xf32>
    %c0_24 = arith.constant 0 : index
    %c0_25 = arith.constant 0 : index
    %40 = vector.load %arg24[%c0_24, %c0_25] : memref<32x1xf32, #tpu.memory_space<vmem>>, vector<32x1xf32>
    %cst_26 = arith.constant dense<0.000000e+00> : vector<32x1xf32>
    %41 = tpu.matmul %19, %39, %cst_26 {dimension_numbers = #tpu.dot_dimension_numbers<[1], [0], [0], [1], [0, 0, 1, 1], [], []>} : vector<32x128xf32>, vector<128x1xf32>, vector<32x1xf32> -> vector<32x1xf32>
    %42 = arith.addf %40, %41 : vector<32x1xf32>
    %c0_27 = arith.constant 0 : index
    %c0_28 = arith.constant 0 : index
    %43 = vector.load %arg24[%c0_27, %c0_28] : memref<32x1xf32, #tpu.memory_space<vmem>>, vector<32x1xf32>
    tpu.vector_store %arg24[%c0_27, %c0_28], %42 {strides = array<i32>} : memref<32x1xf32, #tpu.memory_space<vmem>>, vector<32x1xf32>,
    %44 = tpu.transpose %39, [1, 0] : vector<128x1xf32> -> vector<1x128xf32>
    %c0_29 = arith.constant 0 : index
    %c0_30 = arith.constant 0 : index
    %45 = vector.load %arg5[%c0_29, %c0_30] : memref<1x128xi32, #tpu.memory_space<vmem>>, vector<1x128xi32>
    %c0_31 = arith.constant 0 : index
    %c0_32 = arith.constant 0 : index
    %46 = vector.load %arg6[%c0_31, %c0_32] : memref<1x128xi32, #tpu.memory_space<vmem>>, vector<1x128xi32>
    %47 = arith.cmpi eq, %45, %46 : vector<1x128xi32>
    %48 = arith.cmpi sge, %45, %46 : vector<1x128xi32>
    %49 = arith.cmpi sle, %45, %46 : vector<1x128xi32>
    %cst_33 = arith.constant 4.000000e+03 : f32
    %50 = vector.broadcast %cst_33 : f32 to vector<1x128xf32>
    %51 = arith.mulf %50, %44 : vector<1x128xf32>
    %52 = math.absf %51 : vector<1x128xf32>
    %cst_34 = arith.constant 0.000000e+00 : f32
    %53 = vector.broadcast %cst_34 : f32 to vector<1x128xf32>
    %54 = arith.subf %53, %52 : vector<1x128xf32>
    %cst_35 = arith.constant 2.000000e+00 : f32
    %55 = vector.broadcast %cst_35 : f32 to vector<1x128xf32>
    %56 = arith.addf %54, %55 : vector<1x128xf32>
    %57 = math.exp %56 : vector<1x128xf32>
    %cst_36 = arith.constant 1.000000e+00 : f32
    %58 = vector.broadcast %cst_36 : f32 to vector<1x128xf32>
    %59 = arith.addf %58, %57 : vector<1x128xf32>
    %60 = arith.mulf %44, %59 : vector<1x128xf32>
    %61 = arith.select %47, %60, %44 : vector<1x128xi1>, vector<1x128xf32>
    %cst_37 = arith.constant 0.000000e+00 : f32
    %62 = vector.broadcast %cst_37 : f32 to vector<1x128xf32>
    %63 = arith.select %48, %61, %62 : vector<1x128xi1>, vector<1x128xf32>
    %c0_38 = arith.constant 0 : index
    %c0_39 = arith.constant 0 : index
    %64 = vector.load %arg19[%c0_38, %c0_39] : memref<1x128xf32, #tpu.memory_space<vmem>>, vector<1x128xf32>
    tpu.vector_store %arg19[%c0_38, %c0_39], %63 {strides = array<i32>} : memref<1x128xf32, #tpu.memory_space<vmem>>, vector<1x128xf32>,
    %cst_40 = arith.constant 1.000000e+00 : f32
    %65 = vector.broadcast %cst_40 : f32 to vector<1x128xf32>
    %66 = arith.select %47, %65, %44 : vector<1x128xi1>, vector<1x128xf32>
    %cst_41 = arith.constant 0.000000e+00 : f32
    %67 = vector.broadcast %cst_41 : f32 to vector<1x128xf32>
    %68 = arith.select %49, %66, %67 : vector<1x128xi1>, vector<1x128xf32>
    %c0_42 = arith.constant 0 : index
    %c0_43 = arith.constant 0 : index
    %69 = vector.load %arg20[%c0_42, %c0_43] : memref<1x128xf32, #tpu.memory_space<vmem>>, vector<1x128xf32>
    tpu.vector_store %arg20[%c0_42, %c0_43], %68 {strides = array<i32>} : memref<1x128xf32, #tpu.memory_space<vmem>>, vector<1x128xf32>,
    %c2_i32 = arith.constant 2 : i32
    %70 = arith.cmpi eq, %arg0, %c2_i32 : i32
    %71 = arith.extui %70 : i1 to i32
    %c0_i32_44 = arith.constant 0 : i32
    %72 = arith.cmpi ne, %71, %c0_i32_44 : i32
    scf.if %72 {
      %c0_45 = arith.constant 0 : index
      %c0_46 = arith.constant 0 : index
      %73 = vector.load %arg24[%c0_45, %c0_46] : memref<32x1xf32, #tpu.memory_space<vmem>>, vector<32x1xf32>
      %c0_47 = arith.constant 0 : index
      %c0_48 = arith.constant 0 : index
      %74 = vector.load %arg2[%c0_47, %c0_48] : memref<32x1xf32, #tpu.memory_space<vmem>>, vector<32x1xf32>
      %75 = arith.mulf %73, %74 : vector<32x1xf32>
      %c0_49 = arith.constant 0 : index
      %c0_50 = arith.constant 0 : index
      %76 = vector.load %arg1[%c0_49, %c0_50] : memref<32x1xf32, #tpu.memory_space<vmem>>, vector<32x1xf32>
      %c0_51 = arith.constant 0 : index
      %c0_52 = arith.constant 0 : index
      %77 = vector.load %arg14[%c0_51, %c0_52] : memref<1x32xf32, #tpu.memory_space<vmem>>, vector<1x32xf32>
      %cst_53 = arith.constant dense<0.000000e+00> : vector<32x32xf32>
      %78 = tpu.matmul %76, %77, %cst_53 {dimension_numbers = #tpu.dot_dimension_numbers<[1], [0], [0], [1], [0, 0, 1, 1], [], []>} : vector<32x1xf32>, vector<1x32xf32>, vector<32x32xf32> -> vector<32x32xf32>
      %c0_54 = arith.constant 0 : index
      %c0_55 = arith.constant 0 : index
      %79 = vector.load %arg15[%c0_54, %c0_55] : memref<1x32xf32, #tpu.memory_space<vmem>>, vector<1x32xf32>
      %cst_56 = arith.constant dense<0.000000e+00> : vector<32x32xf32>
      %80 = tpu.matmul %75, %79, %cst_56 {dimension_numbers = #tpu.dot_dimension_numbers<[1], [0], [0], [1], [0, 0, 1, 1], [], []>} : vector<32x1xf32>, vector<1x32xf32>, vector<32x32xf32> -> vector<32x32xf32>
      %81 = arith.addf %78, %80 : vector<32x32xf32>
      %c0_57 = arith.constant 0 : index
      %c0_58 = arith.constant 0 : index
      %82 = vector.load %arg16[%c0_57, %c0_58] : memref<1x32xf32, #tpu.memory_space<vmem>>, vector<1x32xf32>
      %83 = vector.broadcast %82 : vector<1x32xf32> to vector<32x32xf32>
      %84 = arith.addf %81, %83 : vector<32x32xf32>
      %cst_59 = arith.constant 0.000000e+00 : f32
      %85 = vector.broadcast %cst_59 : f32 to vector<32x32xf32>
      %86 = arith.maximumf %84, %85 : vector<32x32xf32>
      %c0_60 = arith.constant 0 : index
      %c0_61 = arith.constant 0 : index
      %87 = vector.load %arg17[%c0_60, %c0_61] : memref<32x1xf32, #tpu.memory_space<vmem>>, vector<32x1xf32>
      %cst_62 = arith.constant dense<0.000000e+00> : vector<32x1xf32>
      %88 = tpu.matmul %86, %87, %cst_62 {dimension_numbers = #tpu.dot_dimension_numbers<[1], [0], [0], [1], [0, 0, 1, 1], [], []>} : vector<32x32xf32>, vector<32x1xf32>, vector<32x1xf32> -> vector<32x1xf32>
      %c0_63 = arith.constant 0 : index
      %c0_64 = arith.constant 0 : index
      %89 = vector.load %arg18[%c0_63, %c0_64] : memref<1x1xf32, #tpu.memory_space<vmem>>, vector<1x1xf32>
      %90 = vector.broadcast %89 : vector<1x1xf32> to vector<32x1xf32>
      %91 = arith.addf %88, %90 : vector<32x1xf32>
      %c0_65 = arith.constant 0 : index
      %c0_66 = arith.constant 0 : index
      %92 = vector.load %arg21[%c0_65, %c0_66] : memref<32x1xf32, #tpu.memory_space<vmem>>, vector<32x1xf32>
      tpu.vector_store %arg21[%c0_65, %c0_66], %91 {strides = array<i32>} : memref<32x1xf32, #tpu.memory_space<vmem>>, vector<32x1xf32>,
    } else {
    }
    return
  }
  func.func @transform_0(%arg0: i32) -> (i32, i32) {
    %c0_i32 = arith.constant 0 : i32
    %c0_i32_0 = arith.constant 0 : i32
    %c0_i32_1 = arith.constant 0 : i32
    return %c0_i32, %c0_i32_0 : i32, i32
  }
  func.func @transform_1(%arg0: i32) -> (i32, i32) {
    %c0_i32 = arith.constant 0 : i32
    %c0_i32_0 = arith.constant 0 : i32
    %c0_i32_1 = arith.constant 0 : i32
    return %c0_i32, %c0_i32_0 : i32, i32
  }
  func.func @transform_2(%arg0: i32) -> (i32, i32) {
    %c0_i32 = arith.constant 0 : i32
    %c0_i32_0 = arith.constant 0 : i32
    return %arg0, %c0_i32 : i32, i32
  }
  func.func @transform_3(%arg0: i32) -> (i32, i32) {
    %c0_i32 = arith.constant 0 : i32
    %c0_i32_0 = arith.constant 0 : i32
    return %arg0, %c0_i32 : i32, i32
  }
  func.func @transform_4(%arg0: i32) -> (i32, i32) {
    %c0_i32 = arith.constant 0 : i32
    %c0_i32_0 = arith.constant 0 : i32
    return %c0_i32, %arg0 : i32, i32
  }
  func.func @transform_5(%arg0: i32) -> (i32, i32) {
    %c0_i32 = arith.constant 0 : i32
    %c0_i32_0 = arith.constant 0 : i32
    return %c0_i32, %arg0 : i32, i32
  }
  func.func @transform_6(%arg0: i32) -> (i32, i32) {
    %c0_i32 = arith.constant 0 : i32
    %c0_i32_0 = arith.constant 0 : i32
    return %c0_i32, %arg0 : i32, i32
  }
  func.func @transform_7(%arg0: i32) -> (i32, i32) {
    %c0_i32 = arith.constant 0 : i32
    %c0_i32_0 = arith.constant 0 : i32
    %c0_i32_1 = arith.constant 0 : i32
    return %c0_i32, %c0_i32_0 : i32, i32
  }
  func.func @transform_8(%arg0: i32) -> (i32, i32) {
    %c0_i32 = arith.constant 0 : i32
    %c0_i32_0 = arith.constant 0 : i32
    %c0_i32_1 = arith.constant 0 : i32
    return %c0_i32, %c0_i32_0 : i32, i32
  }
  func.func @transform_9(%arg0: i32) -> (i32, i32) {
    %c0_i32 = arith.constant 0 : i32
    %c0_i32_0 = arith.constant 0 : i32
    %c0_i32_1 = arith.constant 0 : i32
    return %c0_i32, %c0_i32_0 : i32, i32
  }
  func.func @transform_10(%arg0: i32) -> (i32, i32) {
    %c0_i32 = arith.constant 0 : i32
    %c0_i32_0 = arith.constant 0 : i32
    %c0_i32_1 = arith.constant 0 : i32
    return %c0_i32, %c0_i32_0 : i32, i32
  }
  func.func @transform_11(%arg0: i32) -> (i32, i32) {
    %c0_i32 = arith.constant 0 : i32
    %c0_i32_0 = arith.constant 0 : i32
    %c0_i32_1 = arith.constant 0 : i32
    return %c0_i32, %c0_i32_0 : i32, i32
  }
  func.func @transform_12(%arg0: i32) -> (i32, i32) {
    %c0_i32 = arith.constant 0 : i32
    %c0_i32_0 = arith.constant 0 : i32
    %c0_i32_1 = arith.constant 0 : i32
    return %c0_i32, %c0_i32_0 : i32, i32
  }
  func.func @transform_13(%arg0: i32) -> (i32, i32) {
    %c0_i32 = arith.constant 0 : i32
    %c0_i32_0 = arith.constant 0 : i32
    %c0_i32_1 = arith.constant 0 : i32
    return %c0_i32, %c0_i32_0 : i32, i32
  }
  func.func @transform_14(%arg0: i32) -> (i32, i32) {
    %c0_i32 = arith.constant 0 : i32
    %c0_i32_0 = arith.constant 0 : i32
    %c0_i32_1 = arith.constant 0 : i32
    return %c0_i32, %c0_i32_0 : i32, i32
  }
  func.func @transform_15(%arg0: i32) -> (i32, i32) {
    %c0_i32 = arith.constant 0 : i32
    %c0_i32_0 = arith.constant 0 : i32
    %c0_i32_1 = arith.constant 0 : i32
    return %c0_i32, %c0_i32_0 : i32, i32
  }
  func.func @transform_16(%arg0: i32) -> (i32, i32) {
    %c0_i32 = arith.constant 0 : i32
    %c0_i32_0 = arith.constant 0 : i32
    %c0_i32_1 = arith.constant 0 : i32
    return %c0_i32, %c0_i32_0 : i32, i32
  }
  func.func @transform_17(%arg0: i32) -> (i32, i32) {
    %c0_i32 = arith.constant 0 : i32
    %c0_i32_0 = arith.constant 0 : i32
    %c0_i32_1 = arith.constant 0 : i32
    return %c0_i32, %c0_i32_0 : i32, i32
  }
  func.func @transform_18(%arg0: i32) -> (i32, i32) {
    %c0_i32 = arith.constant 0 : i32
    %c0_i32_0 = arith.constant 0 : i32
    return %c0_i32, %arg0 : i32, i32
  }
  func.func @transform_19(%arg0: i32) -> (i32, i32) {
    %c0_i32 = arith.constant 0 : i32
    %c0_i32_0 = arith.constant 0 : i32
    return %c0_i32, %arg0 : i32, i32
  }
  func.func @transform_20(%arg0: i32) -> (i32, i32) {
    %c0_i32 = arith.constant 0 : i32
    %c0_i32_0 = arith.constant 0 : i32
    %c0_i32_1 = arith.constant 0 : i32
    return %c0_i32, %c0_i32_0 : i32, i32
  }
}

</mosaic_0001>

<llo_original>
// kernel: learned_lu_forward.3
$region0: #{learned_lu_forward.3}
  #allocation0 [shape = 'u32[]', space=smem, size = 0x4, offset = 0x4, fixed_abs, tag = 'smem constant byte address 0x4 - core index']
  #allocation1 [shape = 'u32[144,128]{1,0:T(1,128)}', space=vmem, size = 0x12000, scoped, tag = 'internal scratch']
  #allocation2 [shape = 'f32[32,32]{1,0:T(8,128)}', space=vmem, size = 0x4000, scoped, tag = 'scratch operand']
  #allocation3 [shape = 'f32[32,32]{1,0:T(8,128)}', space=vmem, size = 0x4000, scoped, tag = 'scratch operand']
  #allocation4 [shape = 'f32[32,1]{1,0:T(8,128)}', space=vmem, size = 0x4000, scoped, tag = 'scratch operand']
  #allocation5 [shape = 'f32[1,1]{1,0:T(1,128)S(1)}', space=vmem, size = 0x200, scoped, tag = 'scoped memory for learned_lu_forward.3']
  #allocation6 [shape = 'f32[1,1]{1,0:T(1,128)S(1)}', space=vmem, size = 0x200, scoped, tag = 'scoped memory for learned_lu_forward.3']
  %s0 = inlined_call_operand.vmem [shape: f32[32,1], index: 0, kind: input, shape index: {}]
  %s1 = inlined_call_operand.vmem [shape: f32[32,1], index: 1, kind: input, shape index: {}]
  %s2 = inlined_call_operand.vmem [shape: s32[384,1], index: 2, kind: input, shape index: {}]
  %s3 = inlined_call_operand.vmem [shape: s32[384,1], index: 3, kind: input, shape index: {}]
  %s4 = inlined_call_operand.vmem [shape: s32[1,384], index: 4, kind: input, shape index: {}]
  %s5 = inlined_call_operand.vmem [shape: s32[1,384], index: 5, kind: input, shape index: {}]
  %s6 = inlined_call_operand.vmem [shape: f32[32,384], index: 6, kind: input, shape index: {}]
  %s7 = inlined_call_operand.vmem [shape: f32[1,32], index: 7, kind: input, shape index: {}]
  %s8 = inlined_call_operand.vmem [shape: f32[1,32], index: 8, kind: input, shape index: {}]
  %s9 = inlined_call_operand.vmem [shape: f32[32,32], index: 9, kind: input, shape index: {}]
  %s10 = inlined_call_operand.vmem [shape: f32[1,32], index: 10, kind: input, shape index: {}]
  %s11 = inlined_call_operand.vmem [shape: f32[32,1], index: 11, kind: input, shape index: {}]
  %s12 = inlined_call_operand.<no memory space> [shape: f32[1,1], index: 12, kind: input, shape index: {}]
  %s13 = inlined_call_operand.vmem [shape: f32[1,32], index: 13, kind: input, shape index: {}]
  %s14 = inlined_call_operand.vmem [shape: f32[1,32], index: 14, kind: input, shape index: {}]
  %s15 = inlined_call_operand.vmem [shape: f32[1,32], index: 15, kind: input, shape index: {}]
  %s16 = inlined_call_operand.vmem [shape: f32[32,1], index: 16, kind: input, shape index: {}]
  %s17 = inlined_call_operand.<no memory space> [shape: f32[1,1], index: 17, kind: input, shape index: {}]
  %s18 = inlined_call_operand.vmem [shape: f32[1,384], index: 18, kind: output, shape index: {0}]
  %s19 = inlined_call_operand.vmem [shape: f32[1,384], index: 19, kind: output, shape index: {1}]
  %s20 = inlined_call_operand.vmem [shape: f32[32,1], index: 20, kind: output, shape index: {2}]
  %21 = xla_tuple %s18, %s19, %s20
  %s22 = sld [smem:[#allocation0]]
  $region167: #{learned_lu_forward.3} parent=0
    _
  %s24 = ssub.s32 1, %s22
  %s25 = scalar_select 0, %s24, %s22
  %v26 = vstv %s12
  %27 = vst [vmem:[#allocation5] sm:$0x1] %v26
  %v28 = vstv %s17
  %29 = vst [vmem:[#allocation6] sm:$0x1] %v28
  $region1: #{learned_lu_forward.3} parent=0
    #allocation7 [shape = 'u8[32768]{0}', space=vmem, size = 0x8000, scoped, tag = 'input window, operand 6']
    loop: start=0, step=1, limit=5
    $region2: #{learned_lu_forward.3} parent=1 // loop_pre_header
      _
    $region3: #{learned_lu_forward.3} parent=1 // loop_header
      %s31 = sphi 0, %s35
      %p32 = scmp.ge.s32.totalorder %s31, 5
      %s39 = sphi 0, %s39
      %s41 = sphi 0, %s39
      %s42 = sphi 0, %s41
      %s56 = sphi 0, %s42
      %s60 = sphi 0, %s60
      %s62 = sphi 0, %s60
      %s63 = sphi 0, %s62
      %s77 = sphi 0, %s63
      %s83 = sphi 0, %s85
      %s86 = sphi 0, %s83
      %s87 = sphi 0, %s86
      %s103 = sphi 0, %s87
      %s109 = sphi 0, %s111
      %s112 = sphi 0, %s109
      %s113 = sphi 0, %s112
      %s129 = sphi 0, %s113
      %s135 = sphi 0, %s137
      %s138 = sphi 0, %s135
      %s139 = sphi 0, %s138
      %s155 = sphi 0, %s139
      %s161 = sphi 0, %s163
      %s164 = sphi 0, %s161
      %s165 = sphi 0, %s164
      %s181 = sphi 0, %s165
      %s187 = sphi 0, %s189
      %s190 = sphi 0, %s187
      %s191 = sphi 0, %s190
      %s207 = sphi 0, %s191
      %s211 = sphi 0, %s211
      %s213 = sphi 0, %s211
      %s214 = sphi 0, %s213
      %s228 = sphi 0, %s214
      %s232 = sphi 0, %s232
      %s234 = sphi 0, %s232
      %s235 = sphi 0, %s234
      %s249 = sphi 0, %s235
      %s253 = sphi 0, %s253
      %s255 = sphi 0, %s253
      %s256 = sphi 0, %s255
      %s270 = sphi 0, %s256
      %s274 = sphi 0, %s274
      %s276 = sphi 0, %s274
      %s277 = sphi 0, %s276
      %s291 = sphi 0, %s277
      %s295 = sphi 0, %s295
      %s297 = sphi 0, %s295
      %s298 = sphi 0, %s297
      %s312 = sphi 0, %s298
      %s316 = sphi 0, %s316
      %s318 = sphi 0, %s316
      %s319 = sphi 0, %s318
      %s333 = sphi 0, %s319
      %s337 = sphi 0, %s337
      %s339 = sphi 0, %s337
      %s340 = sphi 0, %s339
      %s354 = sphi 0, %s340
      %s358 = sphi 0, %s358
      %s360 = sphi 0, %s358
      %s361 = sphi 0, %s360
      %s375 = sphi 0, %s361
      %s379 = sphi 0, %s379
      %s381 = sphi 0, %s379
      %s382 = sphi 0, %s381
      %s396 = sphi 0, %s382
      %s400 = sphi 0, %s400
      %s402 = sphi 0, %s400
      %s403 = sphi 0, %s402
      %s417 = sphi 0, %s403
      %s421 = sphi 0, %s421
      %s423 = sphi 0, %s421
      %s424 = sphi 0, %s423
      %s438 = sphi 0, %s424
      %s444 = sphi 0, %s446
      %s447 = sphi 0, %s444
      %s448 = sphi 0, %s447
      %s464 = sphi 0, %s448
      %s470 = sphi 0, %s472
      %s473 = sphi 0, %s470
      %s474 = sphi 0, %s473
      %s490 = sphi 0, %s474
      %s494 = sphi 0, %s494
      %s496 = sphi 0, %s494
      %s497 = sphi 0, %s496
      %s511 = sphi 0, %s497
    $region4: #{learned_lu_forward.3} parent=1 // loop_header_branch
      %34 = sbr.rel (%p32) target = $region8
    $region5: #{learned_lu_forward.3} parent=1 // loop_body
      %s36 = ssub.s32 %s31, 1
      %s37 = ssub.s32 %s31, 2
      %s38 = sadd.s32 %s31, 1
      %s40 = sadd.s32 %s39, 1
      %p43 = scmp.eq.s32.totalorder %s31, 2
      %p44 = scmp.ne.s32.totalorder %s39, %s41
      %p45 = scmp.eq.s32.totalorder %s31, 0
      %p46 = por %p44, %p45
      %p47 = scmp.ne.s32.totalorder %s39, %s41
      %p48 = scmp.eq.s32.totalorder %s36, 2
      %p49 = por %p47, %p48
      %p50 = scmp.ne.s32.totalorder %s41, %s42
      %p51 = scmp.eq.s32.totalorder %s36, 0
      %p52 = por %p50, %p51
      %p53 = scmp.ne.s32.totalorder %s41, %s42
      %p54 = scmp.eq.s32.totalorder %s37, 2
      %p55 = por %p53, %p54
      %p57 = scmp.ne.s32.totalorder %s42, %s56
      %p58 = scmp.eq.s32.totalorder %s37, 0
      %p59 = por %p57, %p58
      %s61 = sadd.s32 %s60, 1
      %p64 = scmp.eq.s32.totalorder %s31, 2
      %p65 = scmp.ne.s32.totalorder %s60, %s62
      %p66 = scmp.eq.s32.totalorder %s31, 0
      %p67 = por %p65, %p66
      %p68 = scmp.ne.s32.totalorder %s60, %s62
      %p69 = scmp.eq.s32.totalorder %s36, 2
      %p70 = por %p68, %p69
      %p71 = scmp.ne.s32.totalorder %s62, %s63
      %p72 = scmp.eq.s32.totalorder %s36, 0
      %p73 = por %p71, %p72
      %p74 = scmp.ne.s32.totalorder %s62, %s63
      %p75 = scmp.eq.s32.totalorder %s37, 2
      %p76 = por %p74, %p75
      %p78 = scmp.ne.s32.totalorder %s63, %s77
      %p79 = scmp.eq.s32.totalorder %s37, 0
      %p80 = por %p78, %p79
      %s81 = ssub.s32 %s31, %s38
      %p82 = scmp.eq.s32.totalorder %s81, 0
      %s84 = sadd.s32 %s83, 1
      %s85 = scalar_select %p82, %s83, %s84
      %p88 = pneg %p82
      %p89 = scmp.eq.s32.totalorder %s31, 2
      %p90 = por %p88, %p89
      %p91 = scmp.ne.s32.totalorder %s83, %s86
      %p92 = scmp.eq.s32.totalorder %s31, 0
      %p93 = por %p91, %p92
      %p94 = scmp.ne.s32.totalorder %s83, %s86
      %p95 = scmp.eq.s32.totalorder %s36, 2
      %p96 = por %p94, %p95
      %p97 = scmp.ne.s32.totalorder %s86, %s87
      %p98 = scmp.eq.s32.totalorder %s36, 0
      %p99 = por %p97, %p98
      %p100 = scmp.ne.s32.totalorder %s86, %s87
      %p101 = scmp.eq.s32.totalorder %s37, 2
      %p102 = por %p100, %p101
      %p104 = scmp.ne.s32.totalorder %s87, %s103
      %p105 = scmp.eq.s32.totalorder %s37, 0
      %p106 = por %p104, %p105
      %s107 = ssub.s32 %s31, %s38
      %p108 = scmp.eq.s32.totalorder %s107, 0
      %s110 = sadd.s32 %s109, 1
      %s111 = scalar_select %p108, %s109, %s110
      %p114 = pneg %p108
      %p115 = scmp.eq.s32.totalorder %s31, 2
      %p116 = por %p114, %p115
      %p117 = scmp.ne.s32.totalorder %s109, %s112
      %p118 = scmp.eq.s32.totalorder %s31, 0
      %p119 = por %p117, %p118
      %p120 = scmp.ne.s32.totalorder %s109, %s112
      %p121 = scmp.eq.s32.totalorder %s36, 2
      %p122 = por %p120, %p121
      %p123 = scmp.ne.s32.totalorder %s112, %s113
      %p124 = scmp.eq.s32.totalorder %s36, 0
      %p125 = por %p123, %p124
      %p126 = scmp.ne.s32.totalorder %s112, %s113
      %p127 = scmp.eq.s32.totalorder %s37, 2
      %p128 = por %p126, %p127
      %p130 = scmp.ne.s32.totalorder %s113, %s129
      %p131 = scmp.eq.s32.totalorder %s37, 0
      %p132 = por %p130, %p131
      %s133 = ssub.s32 %s31, %s38
      %p134 = scmp.eq.s32.totalorder %s133, 0
      %s136 = sadd.s32 %s135, 1
      %s137 = scalar_select %p134, %s135, %s136
      %p140 = pneg %p134
      %p141 = scmp.eq.s32.totalorder %s31, 2
      %p142 = por %p140, %p141
      %p143 = scmp.ne.s32.totalorder %s135, %s138
      %p144 = scmp.eq.s32.totalorder %s31, 0
      %p145 = por %p143, %p144
      %p146 = scmp.ne.s32.totalorder %s135, %s138
      %p147 = scmp.eq.s32.totalorder %s36, 2
      %p148 = por %p146, %p147
      %p149 = scmp.ne.s32.totalorder %s138, %s139
      %p150 = scmp.eq.s32.totalorder %s36, 0
      %p151 = por %p149, %p150
      %p152 = scmp.ne.s32.totalorder %s138, %s139
      %p153 = scmp.eq.s32.totalorder %s37, 2
      %p154 = por %p152, %p153
      %p156 = scmp.ne.s32.totalorder %s139, %s155
      %p157 = scmp.eq.s32.totalorder %s37, 0
      %p158 = por %p156, %p157
      %s159 = ssub.s32 %s31, %s38
      %p160 = scmp.eq.s32.totalorder %s159, 0
      %s162 = sadd.s32 %s161, 1
      %s163 = scalar_select %p160, %s161, %s162
      %p166 = pneg %p160
      %p167 = scmp.eq.s32.totalorder %s31, 2
      %p168 = por %p166, %p167
      %p169 = scmp.ne.s32.totalorder %s161, %s164
      %p170 = scmp.eq.s32.totalorder %s31, 0
      %p171 = por %p169, %p170
      %p172 = scmp.ne.s32.totalorder %s161, %s164
      %p173 = scmp.eq.s32.totalorder %s36, 2
      %p174 = por %p172, %p173
      %p175 = scmp.ne.s32.totalorder %s164, %s165
      %p176 = scmp.eq.s32.totalorder %s36, 0
      %p177 = por %p175, %p176
      %p178 = scmp.ne.s32.totalorder %s164, %s165
      %p179 = scmp.eq.s32.totalorder %s37, 2
      %p180 = por %p178, %p179
      %p182 = scmp.ne.s32.totalorder %s165, %s181
      %p183 = scmp.eq.s32.totalorder %s37, 0
      %p184 = por %p182, %p183
      %s185 = ssub.s32 %s31, %s38
      %p186 = scmp.eq.s32.totalorder %s185, 0
      %s188 = sadd.s32 %s187, 1
      %s189 = scalar_select %p186, %s187, %s188
      %p192 = pneg %p186
      %p193 = scmp.eq.s32.totalorder %s31, 2
      %p194 = por %p192, %p193
      %p195 = scmp.ne.s32.totalorder %s187, %s190
      %p196 = scmp.eq.s32.totalorder %s31, 0
      %p197 = por %p195, %p196
      %p198 = scmp.ne.s32.totalorder %s187, %s190
      %p199 = scmp.eq.s32.totalorder %s36, 2
      %p200 = por %p198, %p199
      %p201 = scmp.ne.s32.totalorder %s190, %s191
      %p202 = scmp.eq.s32.totalorder %s36, 0
      %p203 = por %p201, %p202
      %p204 = scmp.ne.s32.totalorder %s190, %s191
      %p205 = scmp.eq.s32.totalorder %s37, 2
      %p206 = por %p204, %p205
      %p208 = scmp.ne.s32.totalorder %s191, %s207
      %p209 = scmp.eq.s32.totalorder %s37, 0
      %p210 = por %p208, %p209
      %s212 = sadd.s32 %s211, 1
      %p215 = scmp.eq.s32.totalorder %s31, 2
      %p216 = scmp.ne.s32.totalorder %s211, %s213
      %p217 = scmp.eq.s32.totalorder %s31, 0
      %p218 = por %p216, %p217
      %p219 = scmp.ne.s32.totalorder %s211, %s213
      %p220 = scmp.eq.s32.totalorder %s36, 2
      %p221 = por %p219, %p220
      %p222 = scmp.ne.s32.totalorder %s213, %s214
      %p223 = scmp.eq.s32.totalorder %s36, 0
      %p224 = por %p222, %p223
      %p225 = scmp.ne.s32.totalorder %s213, %s214
      %p226 = scmp.eq.s32.totalorder %s37, 2
      %p227 = por %p225, %p226
      %p229 = scmp.ne.s32.totalorder %s214, %s228
      %p230 = scmp.eq.s32.totalorder %s37, 0
      %p231 = por %p229, %p230
      %s233 = sadd.s32 %s232, 1
      %p236 = scmp.eq.s32.totalorder %s31, 2
      %p237 = scmp.ne.s32.totalorder %s232, %s234
      %p238 = scmp.eq.s32.totalorder %s31, 0
      %p239 = por %p237, %p238
      %p240 = scmp.ne.s32.totalorder %s232, %s234
      %p241 = scmp.eq.s32.totalorder %s36, 2
      %p242 = por %p240, %p241
      %p243 = scmp.ne.s32.totalorder %s234, %s235
      %p244 = scmp.eq.s32.totalorder %s36, 0
      %p245 = por %p243, %p244
      %p246 = scmp.ne.s32.totalorder %s234, %s235
      %p247 = scmp.eq.s32.totalorder %s37, 2
      %p248 = por %p246, %p247
      %p250 = scmp.ne.s32.totalorder %s235, %s249
      %p251 = scmp.eq.s32.totalorder %s37, 0
      %p252 = por %p250, %p251
      %s254 = sadd.s32 %s253, 1
      %p257 = scmp.eq.s32.totalorder %s31, 2
      %p258 = scmp.ne.s32.totalorder %s253, %s255
      %p259 = scmp.eq.s32.totalorder %s31, 0
      %p260 = por %p258, %p259
      %p261 = scmp.ne.s32.totalorder %s253, %s255
      %p262 = scmp.eq.s32.totalorder %s36, 2
      %p263 = por %p261, %p262
      %p264 = scmp.ne.s32.totalorder %s255, %s256
      %p265 = scmp.eq.s32.totalorder %s36, 0
      %p266 = por %p264, %p265
      %p267 = scmp.ne.s32.totalorder %s255, %s256
      %p268 = scmp.eq.s32.totalorder %s37, 2
      %p269 = por %p267, %p268
      %p271 = scmp.ne.s32.totalorder %s256, %s270
      %p272 = scmp.eq.s32.totalorder %s37, 0
      %p273 = por %p271, %p272
      %s275 = sadd.s32 %s274, 1
      %p278 = scmp.eq.s32.totalorder %s31, 2
      %p279 = scmp.ne.s32.totalorder %s274, %s276
      %p280 = scmp.eq.s32.totalorder %s31, 0
      %p281 = por %p279, %p280
      %p282 = scmp.ne.s32.totalorder %s274, %s276
      %p283 = scmp.eq.s32.totalorder %s36, 2
      %p284 = por %p282, %p283
      %p285 = scmp.ne.s32.totalorder %s276, %s277
      %p286 = scmp.eq.s32.totalorder %s36, 0
      %p287 = por %p285, %p286
      %p288 = scmp.ne.s32.totalorder %s276, %s277
      %p289 = scmp.eq.s32.totalorder %s37, 2
      %p290 = por %p288, %p289
      %p292 = scmp.ne.s32.totalorder %s277, %s291
      %p293 = scmp.eq.s32.totalorder %s37, 0
      %p294 = por %p292, %p293
      %s296 = sadd.s32 %s295, 1
      %p299 = scmp.eq.s32.totalorder %s31, 2
      %p300 = scmp.ne.s32.totalorder %s295, %s297
      %p301 = scmp.eq.s32.totalorder %s31, 0
      %p302 = por %p300, %p301
      %p303 = scmp.ne.s32.totalorder %s295, %s297
      %p304 = scmp.eq.s32.totalorder %s36, 2
      %p305 = por %p303, %p304
      %p306 = scmp.ne.s32.totalorder %s297, %s298
      %p307 = scmp.eq.s32.totalorder %s36, 0
      %p308 = por %p306, %p307
      %p309 = scmp.ne.s32.totalorder %s297, %s298
      %p310 = scmp.eq.s32.totalorder %s37, 2
      %p311 = por %p309, %p310
      %p313 = scmp.ne.s32.totalorder %s298, %s312
      %p314 = scmp.eq.s32.totalorder %s37, 0
      %p315 = por %p313, %p314
      %s317 = sadd.s32 %s316, 1
      %p320 = scmp.eq.s32.totalorder %s31, 2
      %p321 = scmp.ne.s32.totalorder %s316, %s318
      %p322 = scmp.eq.s32.totalorder %s31, 0
      %p323 = por %p321, %p322
      %p324 = scmp.ne.s32.totalorder %s316, %s318
      %p325 = scmp.eq.s32.totalorder %s36, 2
      %p326 = por %p324, %p325
      %p327 = scmp.ne.s32.totalorder %s318, %s319
      %p328 = scmp.eq.s32.totalorder %s36, 0
      %p329 = por %p327, %p328
      %p330 = scmp.ne.s32.totalorder %s318, %s319
      %p331 = scmp.eq.s32.totalorder %s37, 2
      %p332 = por %p330, %p331
      %p334 = scmp.ne.s32.totalorder %s319, %s333
      %p335 = scmp.eq.s32.totalorder %s37, 0
      %p336 = por %p334, %p335
      %s338 = sadd.s32 %s337, 1
      %p341 = scmp.eq.s32.totalorder %s31, 2
      %p342 = scmp.ne.s32.totalorder %s337, %s339
      %p343 = scmp.eq.s32.totalorder %s31, 0
      %p344 = por %p342, %p343
      %p345 = scmp.ne.s32.totalorder %s337, %s339
      %p346 = scmp.eq.s32.totalorder %s36, 2
      %p347 = por %p345, %p346
      %p348 = scmp.ne.s32.totalorder %s339, %s340
      %p349 = scmp.eq.s32.totalorder %s36, 0
      %p350 = por %p348, %p349
      %p351 = scmp.ne.s32.totalorder %s339, %s340
      %p352 = scmp.eq.s32.totalorder %s37, 2
      %p353 = por %p351, %p352
      %p355 = scmp.ne.s32.totalorder %s340, %s354
      %p356 = scmp.eq.s32.totalorder %s37, 0
      %p357 = por %p355, %p356
      %s359 = sadd.s32 %s358, 1
      %p362 = scmp.eq.s32.totalorder %s31, 2
      %p363 = scmp.ne.s32.totalorder %s358, %s360
      %p364 = scmp.eq.s32.totalorder %s31, 0
      %p365 = por %p363, %p364
      %p366 = scmp.ne.s32.totalorder %s358, %s360
      %p367 = scmp.eq.s32.totalorder %s36, 2
      %p368 = por %p366, %p367
      %p369 = scmp.ne.s32.totalorder %s360, %s361
      %p370 = scmp.eq.s32.totalorder %s36, 0
      %p371 = por %p369, %p370
      %p372 = scmp.ne.s32.totalorder %s360, %s361
      %p373 = scmp.eq.s32.totalorder %s37, 2
      %p374 = por %p372, %p373
      %p376 = scmp.ne.s32.totalorder %s361, %s375
      %p377 = scmp.eq.s32.totalorder %s37, 0
      %p378 = por %p376, %p377
      %s380 = sadd.s32 %s379, 1
      %p383 = scmp.eq.s32.totalorder %s31, 2
      %p384 = scmp.ne.s32.totalorder %s379, %s381
      %p385 = scmp.eq.s32.totalorder %s31, 0
      %p386 = por %p384, %p385
      %p387 = scmp.ne.s32.totalorder %s379, %s381
      %p388 = scmp.eq.s32.totalorder %s36, 2
      %p389 = por %p387, %p388
      %p390 = scmp.ne.s32.totalorder %s381, %s382
      %p391 = scmp.eq.s32.totalorder %s36, 0
      %p392 = por %p390, %p391
      %p393 = scmp.ne.s32.totalorder %s381, %s382
      %p394 = scmp.eq.s32.totalorder %s37, 2
      %p395 = por %p393, %p394
      %p397 = scmp.ne.s32.totalorder %s382, %s396
      %p398 = scmp.eq.s32.totalorder %s37, 0
      %p399 = por %p397, %p398
      %s401 = sadd.s32 %s400, 1
      %p404 = scmp.eq.s32.totalorder %s31, 2
      %p405 = scmp.ne.s32.totalorder %s400, %s402
      %p406 = scmp.eq.s32.totalorder %s31, 0
      %p407 = por %p405, %p406
      %p408 = scmp.ne.s32.totalorder %s400, %s402
      %p409 = scmp.eq.s32.totalorder %s36, 2
      %p410 = por %p408, %p409
      %p411 = scmp.ne.s32.totalorder %s402, %s403
      %p412 = scmp.eq.s32.totalorder %s36, 0
      %p413 = por %p411, %p412
      %p414 = scmp.ne.s32.totalorder %s402, %s403
      %p415 = scmp.eq.s32.totalorder %s37, 2
      %p416 = por %p414, %p415
      %p418 = scmp.ne.s32.totalorder %s403, %s417
      %p419 = scmp.eq.s32.totalorder %s37, 0
      %p420 = por %p418, %p419
      %s422 = sadd.s32 %s421, 1
      %p425 = scmp.eq.s32.totalorder %s31, 2
      %p426 = scmp.ne.s32.totalorder %s421, %s423
      %p427 = scmp.eq.s32.totalorder %s31, 0
      %p428 = por %p426, %p427
      %p429 = scmp.ne.s32.totalorder %s421, %s423
      %p430 = scmp.eq.s32.totalorder %s36, 2
      %p431 = por %p429, %p430
      %p432 = scmp.ne.s32.totalorder %s423, %s424
      %p433 = scmp.eq.s32.totalorder %s36, 0
      %p434 = por %p432, %p433
      %p435 = scmp.ne.s32.totalorder %s423, %s424
      %p436 = scmp.eq.s32.totalorder %s37, 2
      %p437 = por %p435, %p436
      %p439 = scmp.ne.s32.totalorder %s424, %s438
      %p440 = scmp.eq.s32.totalorder %s37, 0
      %p441 = por %p439, %p440
      %s442 = ssub.s32 %s31, %s38
      %p443 = scmp.eq.s32.totalorder %s442, 0
      %s445 = sadd.s32 %s444, 1
      %s446 = scalar_select %p443, %s444, %s445
      %p449 = pneg %p443
      %p450 = scmp.eq.s32.totalorder %s31, 2
      %p451 = por %p449, %p450
      %p452 = scmp.ne.s32.totalorder %s444, %s447
      %p453 = scmp.eq.s32.totalorder %s31, 0
      %p454 = por %p452, %p453
      %p455 = scmp.ne.s32.totalorder %s444, %s447
      %p456 = scmp.eq.s32.totalorder %s36, 2
      %p457 = por %p455, %p456
      %p458 = scmp.ne.s32.totalorder %s447, %s448
      %p459 = scmp.eq.s32.totalorder %s36, 0
      %p460 = por %p458, %p459
      %p461 = scmp.ne.s32.totalorder %s447, %s448
      %p462 = scmp.eq.s32.totalorder %s37, 2
      %p463 = por %p461, %p462
      %p465 = scmp.ne.s32.totalorder %s448, %s464
      %p466 = scmp.eq.s32.totalorder %s37, 0
      %p467 = por %p465, %p466
      %s468 = ssub.s32 %s31, %s38
      %p469 = scmp.eq.s32.totalorder %s468, 0
      %s471 = sadd.s32 %s470, 1
      %s472 = scalar_select %p469, %s470, %s471
      %p475 = pneg %p469
      %p476 = scmp.eq.s32.totalorder %s31, 2
      %p477 = por %p475, %p476
      %p478 = scmp.ne.s32.totalorder %s470, %s473
      %p479 = scmp.eq.s32.totalorder %s31, 0
      %p480 = por %p478, %p479
      %p481 = scmp.ne.s32.totalorder %s470, %s473
      %p482 = scmp.eq.s32.totalorder %s36, 2
      %p483 = por %p481, %p482
      %p484 = scmp.ne.s32.totalorder %s473, %s474
      %p485 = scmp.eq.s32.totalorder %s36, 0
      %p486 = por %p484, %p485
      %p487 = scmp.ne.s32.totalorder %s473, %s474
      %p488 = scmp.eq.s32.totalorder %s37, 2
      %p489 = por %p487, %p488
      %p491 = scmp.ne.s32.totalorder %s474, %s490
      %p492 = scmp.eq.s32.totalorder %s37, 0
      %p493 = por %p491, %p492
      %s495 = sadd.s32 %s494, 1
      %p498 = scmp.eq.s32.totalorder %s31, 2
      %p499 = scmp.ne.s32.totalorder %s494, %s496
      %p500 = scmp.eq.s32.totalorder %s31, 0
      %p501 = por %p499, %p500
      %p502 = scmp.ne.s32.totalorder %s494, %s496
      %p503 = scmp.eq.s32.totalorder %s36, 2
      %p504 = por %p502, %p503
      %p505 = scmp.ne.s32.totalorder %s496, %s497
      %p506 = scmp.eq.s32.totalorder %s36, 0
      %p507 = por %p505, %p506
      %p508 = scmp.ne.s32.totalorder %s496, %s497
      %p509 = scmp.eq.s32.totalorder %s37, 2
      %p510 = por %p508, %p509
      %p512 = scmp.ne.s32.totalorder %s497, %s511
      %p513 = scmp.eq.s32.totalorder %s37, 0
      %p514 = por %p512, %p513
      %p515 = scmp.le.s32.totalorder 1, %s31
      %p516 = scmp.lt.s32.totalorder %s31, 4
      %p517 = pnand %p515, %p516
      %p518 = pneg %p517
      // Predicated region
      $region9: #{learned_lu_forward.3} parent=5 // pred_check
        _
      $region10: #{learned_lu_forward.3} parent=5 // pred_check_branch
        %520 = sbr.rel (%p517) target = $region12
      $region11: #{learned_lu_forward.3} parent=5 // pred_region
        %s521 = ssub.s32 %s31, 1
        // Predicated region
        $region13: #{learned_lu_forward.3} parent=11 // pred_check
          %p522 = pneg %p52
        $region14: #{learned_lu_forward.3} parent=11 // pred_check_branch
          %524 = sbr.rel (%p522) target = $region16
        $region15: #{learned_lu_forward.3} parent=11 // pred_region
          _
        $region16: #{learned_lu_forward.3} parent=11 // pred_fallthru
          _
        // Predicated region
        $region17: #{learned_lu_forward.3} parent=11 // pred_check
          %p525 = pneg %p73
        $region18: #{learned_lu_forward.3} parent=11 // pred_check_branch
          %527 = sbr.rel (%p525) target = $region20
        $region19: #{learned_lu_forward.3} parent=11 // pred_region
          _
        $region20: #{learned_lu_forward.3} parent=11 // pred_fallthru
          _
        // Predicated region
        $region21: #{learned_lu_forward.3} parent=11 // pred_check
          %p528 = pneg %p224
        $region22: #{learned_lu_forward.3} parent=11 // pred_check_branch
          %530 = sbr.rel (%p528) target = $region24
        $region23: #{learned_lu_forward.3} parent=11 // pred_region
          _
        $region24: #{learned_lu_forward.3} parent=11 // pred_fallthru
          _
        // Predicated region
        $region25: #{learned_lu_forward.3} parent=11 // pred_check
          %p531 = pneg %p245
        $region26: #{learned_lu_forward.3} parent=11 // pred_check_branch
          %533 = sbr.rel (%p531) target = $region28
        $region27: #{learned_lu_forward.3} parent=11 // pred_region
          _
        $region28: #{learned_lu_forward.3} parent=11 // pred_fallthru
          _
        // Predicated region
        $region29: #{learned_lu_forward.3} parent=11 // pred_check
          %p534 = pneg %p266
        $region30: #{learned_lu_forward.3} parent=11 // pred_check_branch
          %536 = sbr.rel (%p534) target = $region32
        $region31: #{learned_lu_forward.3} parent=11 // pred_region
          _
        $region32: #{learned_lu_forward.3} parent=11 // pred_fallthru
          _
        // Predicated region
        $region33: #{learned_lu_forward.3} parent=11 // pred_check
          %p537 = pneg %p287
        $region34: #{learned_lu_forward.3} parent=11 // pred_check_branch
          %539 = sbr.rel (%p537) target = $region36
        $region35: #{learned_lu_forward.3} parent=11 // pred_region
          _
        $region36: #{learned_lu_forward.3} parent=11 // pred_fallthru
          _
        // Predicated region
        $region37: #{learned_lu_forward.3} parent=11 // pred_check
          %p540 = pneg %p308
        $region38: #{learned_lu_forward.3} parent=11 // pred_check_branch
          %542 = sbr.rel (%p540) target = $region40
        $region39: #{learned_lu_forward.3} parent=11 // pred_region
          _
        $region40: #{learned_lu_forward.3} parent=11 // pred_fallthru
          _
        // Predicated region
        $region41: #{learned_lu_forward.3} parent=11 // pred_check
          %p543 = pneg %p329
        $region42: #{learned_lu_forward.3} parent=11 // pred_check_branch
          %545 = sbr.rel (%p543) target = $region44
        $region43: #{learned_lu_forward.3} parent=11 // pred_region
          _
        $region44: #{learned_lu_forward.3} parent=11 // pred_fallthru
          _
        // Predicated region
        $region45: #{learned_lu_forward.3} parent=11 // pred_check
          %p546 = pneg %p350
        $region46: #{learned_lu_forward.3} parent=11 // pred_check_branch
          %548 = sbr.rel (%p546) target = $region48
        $region47: #{learned_lu_forward.3} parent=11 // pred_region
          _
        $region48: #{learned_lu_forward.3} parent=11 // pred_fallthru
          _
        // Predicated region
        $region49: #{learned_lu_forward.3} parent=11 // pred_check
          %p549 = pneg %p371
        $region50: #{learned_lu_forward.3} parent=11 // pred_check_branch
          %551 = sbr.rel (%p549) target = $region52
        $region51: #{learned_lu_forward.3} parent=11 // pred_region
          _
        $region52: #{learned_lu_forward.3} parent=11 // pred_fallthru
          _
        // Predicated region
        $region53: #{learned_lu_forward.3} parent=11 // pred_check
          %p552 = pneg %p392
        $region54: #{learned_lu_forward.3} parent=11 // pred_check_branch
          %554 = sbr.rel (%p552) target = $region56
        $region55: #{learned_lu_forward.3} parent=11 // pred_region
          _
        $region56: #{learned_lu_forward.3} parent=11 // pred_fallthru
          _
        // Predicated region
        $region57: #{learned_lu_forward.3} parent=11 // pred_check
          %p555 = pneg %p413
        $region58: #{learned_lu_forward.3} parent=11 // pred_check_branch
          %557 = sbr.rel (%p555) target = $region60
        $region59: #{learned_lu_forward.3} parent=11 // pred_region
          _
        $region60: #{learned_lu_forward.3} parent=11 // pred_fallthru
          _
        // Predicated region
        $region61: #{learned_lu_forward.3} parent=11 // pred_check
          %p558 = pneg %p434
        $region62: #{learned_lu_forward.3} parent=11 // pred_check_branch
          %560 = sbr.rel (%p558) target = $region64
        $region63: #{learned_lu_forward.3} parent=11 // pred_region
          _
        $region64: #{learned_lu_forward.3} parent=11 // pred_fallthru
          _
      $region12: #{learned_lu_forward.3} parent=5 // pred_fallthru
        _
      %p561 = scmp.lt.s32.totalorder %s31, 3
      // Predicated region
      $region65: #{learned_lu_forward.3} parent=5 // pred_check
        %p562 = pneg %p561
      $region66: #{learned_lu_forward.3} parent=5 // pred_check_branch
        %564 = sbr.rel (%p562) target = $region68
      $region67: #{learned_lu_forward.3} parent=5 // pred_region
        // Predicated region
        $region69: #{learned_lu_forward.3} parent=67 // pred_check
          %p565 = pneg %p93
        $region70: #{learned_lu_forward.3} parent=67 // pred_check_branch
          %567 = sbr.rel (%p565) target = $region72
        $region71: #{learned_lu_forward.3} parent=67 // pred_region
          %s568 = smul.u32 16, %s31
          %p569 = scmp.lt.s32.totalorder %s568, 47
          %s570 = scalar_select %p569, %s568, 47
          %s571 = smul.addr %s570, 8
          %s572 = scalar_lea.vmem %s2, %s571
          %s573 = smul.u32 16, %s31
        $region72: #{learned_lu_forward.3} parent=67 // pred_fallthru
          _
        // Predicated region
        $region73: #{learned_lu_forward.3} parent=67 // pred_check
          %p574 = pneg %p119
        $region74: #{learned_lu_forward.3} parent=67 // pred_check_branch
          %576 = sbr.rel (%p574) target = $region76
        $region75: #{learned_lu_forward.3} parent=67 // pred_region
          %s577 = smul.u32 16, %s31
          %p578 = scmp.lt.s32.totalorder %s577, 47
          %s579 = scalar_select %p578, %s577, 47
          %s580 = smul.addr %s579, 8
          %s581 = scalar_lea.vmem %s3, %s580
          %s582 = smul.u32 16, %s31
        $region76: #{learned_lu_forward.3} parent=67 // pred_fallthru
          _
        // Predicated region
        $region77: #{learned_lu_forward.3} parent=67 // pred_check
          %p583 = pneg %p145
        $region78: #{learned_lu_forward.3} parent=67 // pred_check_branch
          %585 = sbr.rel (%p583) target = $region80
        $region79: #{learned_lu_forward.3} parent=67 // pred_region
          %p586 = scmp.lt.s32.totalorder %s31, 2
          %s587 = scalar_select %p586, %s31, 2
          %s588 = scalar_lea.vmem %s4, %s587
        $region80: #{learned_lu_forward.3} parent=67 // pred_fallthru
          _
        // Predicated region
        $region81: #{learned_lu_forward.3} parent=67 // pred_check
          %p589 = pneg %p171
        $region82: #{learned_lu_forward.3} parent=67 // pred_check_branch
          %591 = sbr.rel (%p589) target = $region84
        $region83: #{learned_lu_forward.3} parent=67 // pred_region
          %p592 = scmp.lt.s32.totalorder %s31, 2
          %s593 = scalar_select %p592, %s31, 2
          %s594 = scalar_lea.vmem %s5, %s593
        $region84: #{learned_lu_forward.3} parent=67 // pred_fallthru
          _
        // Predicated region
        $region85: #{learned_lu_forward.3} parent=67 // pred_check
          %p595 = pneg %p197
        $region86: #{learned_lu_forward.3} parent=67 // pred_check_branch
          %597 = sbr.rel (%p595) target = $region88
        $region87: #{learned_lu_forward.3} parent=67 // pred_region
          %s598 = sand.u32 %s187, 1
          %s599 = sand.u32 %s187, 1
          %s600 = smul.addr %s599, 32
          %s601 = scalar_lea.vmem [#allocation7], %s600
          %s602 = smul.addr %s31, 8
          %s603 = scalar_lea.vmem %s6, %s602
          // Predicated region
          $region89: #{learned_lu_forward.3} parent=87 // pred_check
            _
          $region90: #{learned_lu_forward.3} parent=87 // pred_check_branch
            %605 = sbr.rel (0) target = $region92
          $region91: #{learned_lu_forward.3} parent=87 // pred_region
            // Predicated region
            $region93: #{learned_lu_forward.3} parent=91 // pred_check
              _
            $region94: #{learned_lu_forward.3} parent=91 // pred_check_branch
              %607 = sbr.rel (0) target = $region96
            $region95: #{learned_lu_forward.3} parent=91 // pred_region
              // Predicated region
              $region108: #{learned_lu_forward.3} parent=95 // pred_check
                _
              $region109: #{learned_lu_forward.3} parent=95 // pred_check_branch
                %628 = sbr.rel (0) target = $region111
              $region110: #{learned_lu_forward.3} parent=95 // pred_region
                loop: start=0, step=1, limit=1
                $region112: #{learned_lu_forward.3} parent=110 // loop_pre_header
                  _
                $region113: #{learned_lu_forward.3} parent=110 // loop_header
                  %s630 = sphi 0, %s634
                  %p631 = scmp.ge.s32.totalorder %s630, 1
                  %s635 = sphi %s603, %s603
                  %s636 = sphi %s601, %s601
                $region114: #{learned_lu_forward.3} parent=110 // loop_header_branch
                  %633 = sbr.rel (%p631) target = $region118
                $region115: #{learned_lu_forward.3} parent=110 // loop_body
                  %v637 = vld [vmem:[%s635] sm:$0xff]
                  %638 = vst [vmem:[%s636] sm:$0xff] %v637
                  %v639 = vld [vmem:[%s635 + $0x18] sm:$0xff]
                  %640 = vst [vmem:[%s636 + $0x8] sm:$0xff] %v639
                  %v641 = vld [vmem:[%s635 + $0x30] sm:$0xff]
                  %642 = vst [vmem:[%s636 + $0x10] sm:$0xff] %v641
                  %v643 = vld [vmem:[%s635 + $0x48] sm:$0xff]
                  %644 = vst [vmem:[%s636 + $0x18] sm:$0xff] %v643
                $region116: #{learned_lu_forward.3} parent=110 // loop_footer
                  %s634 = sadd.s32 1, %s630
                $region117: #{learned_lu_forward.3} parent=110 // loop_footer_branch
                  %629 = sbr.rel target = $region113
                $region118: #{learned_lu_forward.3} parent=110 // loop_exit
                  _
              $region111: #{learned_lu_forward.3} parent=95 // pred_fallthru
                _
              // Predicated region
              $region119: #{learned_lu_forward.3} parent=95 // pred_check
                _
              $region120: #{learned_lu_forward.3} parent=95 // pred_check_branch
                %646 = sbr.rel target = $region122
              $region121: #{learned_lu_forward.3} parent=95 // pred_region
                _
              $region122: #{learned_lu_forward.3} parent=95 // pred_fallthru
                _
            $region96: #{learned_lu_forward.3} parent=91 // pred_fallthru
              _
            // Predicated region
            $region97: #{learned_lu_forward.3} parent=91 // pred_check
              _
            $region98: #{learned_lu_forward.3} parent=91 // pred_check_branch
              %609 = sbr.rel target = $region100
            $region99: #{learned_lu_forward.3} parent=91 // pred_region
              loop: start=0, step=1, limit=1
              $region101: #{learned_lu_forward.3} parent=99 // loop_pre_header
                _
              $region102: #{learned_lu_forward.3} parent=99 // loop_header
                %s612 = sphi 0, %s616
                %p613 = scmp.ge.s32.totalorder %s612, 1
                %s617 = sphi %s603, %s603
                %s618 = sphi %s601, %s601
              $region103: #{learned_lu_forward.3} parent=99 // loop_header_branch
                %615 = sbr.rel (%p613) target = $region107
              $region104: #{learned_lu_forward.3} parent=99 // loop_body
                %v619 = vld [vmem:[%s617] sm:$0xff]
                %620 = vst [vmem:[%s618] sm:$0xff] %v619
                %v621 = vld [vmem:[%s617 + $0x18] sm:$0xff]
                %622 = vst [vmem:[%s618 + $0x8] sm:$0xff] %v621
                %v623 = vld [vmem:[%s617 + $0x30] sm:$0xff]
                %624 = vst [vmem:[%s618 + $0x10] sm:$0xff] %v623
                %v625 = vld [vmem:[%s617 + $0x48] sm:$0xff]
                %626 = vst [vmem:[%s618 + $0x18] sm:$0xff] %v625
              $region105: #{learned_lu_forward.3} parent=99 // loop_footer
                %s616 = sadd.s32 1, %s612
              $region106: #{learned_lu_forward.3} parent=99 // loop_footer_branch
                %611 = sbr.rel target = $region102
              $region107: #{learned_lu_forward.3} parent=99 // loop_exit
                _
            $region100: #{learned_lu_forward.3} parent=91 // pred_fallthru
              _
          $region92: #{learned_lu_forward.3} parent=87 // pred_fallthru
            _
          %647 = vnop
        $region88: #{learned_lu_forward.3} parent=67 // pred_fallthru
          _
      $region68: #{learned_lu_forward.3} parent=5 // pred_fallthru
        _
      %p648 = scmp.le.s32.totalorder 1, %s31
      %p649 = scmp.lt.s32.totalorder %s31, 4
      %p650 = pnand %p648, %p649
      %p651 = pneg %p650
      // Predicated region
      $region123: #{learned_lu_forward.3} parent=5 // pred_check
        _
      $region124: #{learned_lu_forward.3} parent=5 // pred_check_branch
        %653 = sbr.rel (%p650) target = $region126
      $region125: #{learned_lu_forward.3} parent=5 // pred_region
        %s654 = ssub.s32 %s31, 1
        %s655 = sand.u32 %s190, 1
        %s656 = sand.u32 %s190, 1
        %s657 = smul.addr %s656, 32
        %s658 = scalar_lea.vmem [#allocation7], %s657
        // Predicated region
        $region127: #{learned_lu_forward.3} parent=125 // pred_check
          %p659 = pneg %p203
        $region128: #{learned_lu_forward.3} parent=125 // pred_check_branch
          %661 = sbr.rel (%p659) target = $region130
        $region129: #{learned_lu_forward.3} parent=125 // pred_region
          _
        $region130: #{learned_lu_forward.3} parent=125 // pred_fallthru
          _
        %p662 = pneg %p52
        %p663 = pneg %p49
        %p664 = pneg %p73
        %p665 = pneg %p70
        %s666 = smul.u32 16, %s36
        %p667 = scmp.lt.s32.totalorder %s666, 47
        %s668 = scalar_select %p667, %s666, 47
        %s669 = smul.addr %s668, 8
        %s670 = scalar_lea.vmem %s2, %s669
        %p671 = pneg %p99
        %p672 = pneg %p96
        %s673 = smul.u32 16, %s36
        %p674 = scmp.lt.s32.totalorder %s673, 47
        %s675 = scalar_select %p674, %s673, 47
        %s676 = smul.addr %s675, 8
        %s677 = scalar_lea.vmem %s3, %s676
        %p678 = pneg %p125
        %p679 = pneg %p122
        %p680 = scmp.lt.s32.totalorder %s36, 2
        %s681 = scalar_select %p680, %s36, 2
        %s682 = scalar_lea.vmem %s4, %s681
        %p683 = pneg %p151
        %p684 = pneg %p148
        %p685 = scmp.lt.s32.totalorder %s36, 2
        %s686 = scalar_select %p685, %s36, 2
        %s687 = scalar_lea.vmem %s5, %s686
        %p688 = pneg %p177
        %p689 = pneg %p174
        %s690 = sand.u32 %s190, 1
        %s691 = sand.u32 %s190, 1
        %s692 = smul.addr %s691, 32
        %s693 = scalar_lea.vmem [#allocation7], %s692
        %p694 = pneg %p203
        %p695 = pneg %p200
        %p696 = pneg %p224
        %p697 = pneg %p221
        %p698 = pneg %p245
        %p699 = pneg %p242
        %p700 = pneg %p266
        %p701 = pneg %p263
        %p702 = pneg %p287
        %p703 = pneg %p284
        %p704 = pneg %p308
        %p705 = pneg %p305
        %p706 = pneg %p329
        %p707 = pneg %p326
        %p708 = pneg %p350
        %p709 = pneg %p347
        %p710 = pneg %p371
        %p711 = pneg %p368
        %p712 = pneg %p392
        %p713 = pneg %p389
        %p714 = pneg %p413
        %p715 = pneg %p410
        %p716 = pneg %p434
        %p717 = pneg %p431
        %p718 = pneg %p460
        %p719 = pneg %p457
        %p720 = scmp.lt.s32.totalorder %s36, 2
        %s721 = scalar_select %p720, %s36, 2
        %s722 = scalar_lea.vmem %s18, %s721
        %p723 = pneg %p486
        %p724 = pneg %p483
        %p725 = scmp.lt.s32.totalorder %s36, 2
        %s726 = scalar_select %p725, %s36, 2
        %s727 = scalar_lea.vmem %s19, %s726
        %p728 = pneg %p507
        %p729 = pneg %p504
        %s730 = smul.u32 16, %s36
        %p731 = scmp.lt.s32.totalorder %s730, 47
        %s732 = scalar_select %p731, %s730, 47
        %s733 = smul.addr %s732, 8
        %s734 = scalar_lea.vmem %s2, %s733
        %s735 = smul.u32 16, %s36
        %s736 = smul.u32 16, %s36
        %p737 = scmp.lt.s32.totalorder %s736, 47
        %s738 = scalar_select %p737, %s736, 47
        %s739 = smul.addr %s738, 8
        %s740 = scalar_lea.vmem %s3, %s739
        %s741 = smul.u32 16, %s36
        %p742 = scmp.lt.s32.totalorder %s36, 2
        %s743 = scalar_select %p742, %s36, 2
        %s744 = scalar_lea.vmem %s4, %s743
        %p745 = scmp.lt.s32.totalorder %s36, 2
        %s746 = scalar_select %p745, %s36, 2
        %s747 = scalar_lea.vmem %s5, %s746
        %p748 = scmp.lt.s32.totalorder %s36, 2
        %s749 = scalar_select %p748, %s36, 2
        %s750 = scalar_lea.vmem %s18, %s749
        %p751 = scmp.lt.s32.totalorder %s36, 2
        %s752 = scalar_select %p751, %s36, 2
        %s753 = scalar_lea.vmem %s19, %s752
        %p754 = scmp.eq.s32.totalorder %s36, 0
        // Predicated region
        $region131: #{learned_lu_forward.3} parent=125 // pred_check
          %p755 = pneg %p754
        $region132: #{learned_lu_forward.3} parent=125 // pred_check_branch
          %757 = sbr.rel (%p755) target = $region134
        $region133: #{learned_lu_forward.3} parent=125 // pred_region
          %v758 = vld [vmem:[%s0] sm:$0xff]
          %v759 = vld [vmem:[%s0 + $0x8] sm:$0xff]
          %v760 = vld [vmem:[%s0 + $0x10] sm:$0xff]
          %v761 = vld [vmem:[%s0 + $0x18] sm:$0xff]
          %v762 = vld [vmem:[%s7] sm:$0x1]
          %vm763 = vcmask 7168
          %v765 = vsel %vm763, %v758, 0
          %v768 = vsel %vm763, %v759, 0
          %v771 = vsel %vm763, %v760, 0
          %v774 = vsel %vm763, %v761, 0
          %vm776 = vcmask 1040384
          %v778 = vsel %vm776, %v762, 0
          %780 = vmatprep.subr.mxu0 0.0
          %781 = vmatpush1.msra.mxu0 %v778
          %782 = vmatprep.subr.mxu0 0.0
          %783 = vmatpush1.msra.mxu0 0.0
          %784 = vmatprep.subr.mxu0 0.0
          %785 = vmatpush1.msra.mxu0 0.0
          %786 = vmatprep.subr.mxu0 0.0
          %787 = vmatpush1.msra.mxu0 0.0
          %788 = vmatprep.subr.mxu0 0.0
          %789 = vmatpush1.msra.mxu0 0.0
          %790 = vmatprep.subr.mxu0 0.0
          %791 = vmatpush1.msra.mxu0 0.0
          %792 = vmatprep.subr.mxu0 0.0
          %793 = vmatpush1.msra.mxu0 0.0
          %794 = vmatprep.subr.mxu0 0.0
          %795 = vmatpush1.msra.mxu0 0.0
          %796 = vmatprep.subr.mxu0 0.0
          %797 = vmatpush1.msra.mxu0 0.0
          %798 = vmatprep.subr.mxu0 0.0
          %799 = vmatpush1.msra.mxu0 0.0
          %800 = vmatprep.subr.mxu0 0.0
          %801 = vmatpush1.msra.mxu0 0.0
          %802 = vmatprep.subr.mxu0 0.0
          %803 = vmatpush1.msra.mxu0 0.0
          %804 = vmatprep.subr.mxu0 0.0
          %805 = vmatpush1.msra.mxu0 0.0
          %806 = vmatprep.subr.mxu0 0.0
          %807 = vmatpush1.msra.mxu0 0.0
          %808 = vmatprep.subr.mxu0 0.0
          %809 = vmatpush1.msra.mxu0 0.0
          %810 = vmatprep.subr.mxu0 0.0
          %811 = vmatpush1.msra.mxu0 0.0
          %812 = vmatprep.subr.mxu0 0.0
          %813 = vmatpush1.msra.mxu0 0.0
          %814 = vmatprep.subr.mxu0 0.0
          %815 = vmatpush1.msra.mxu0 0.0
          %816 = vmatprep.subr.mxu0 0.0
          %817 = vmatpush1.msra.mxu0 0.0
          %818 = vmatprep.subr.mxu0 0.0
          %819 = vmatpush1.msra.mxu0 0.0
          %820 = vmatprep.subr.mxu0 0.0
          %821 = vmatpush1.msra.mxu0 0.0
          %822 = vmatprep.subr.mxu0 0.0
          %823 = vmatpush1.msra.mxu0 0.0
          %824 = vmatprep.subr.mxu0 0.0
          %825 = vmatpush1.msra.mxu0 0.0
          %826 = vmatprep.subr.mxu0 0.0
          %827 = vmatpush1.msra.mxu0 0.0
          %828 = vmatprep.subr.mxu0 0.0
          %829 = vmatpush1.msra.mxu0 0.0
          %830 = vmatprep.subr.mxu0 0.0
          %831 = vmatpush1.msra.mxu0 0.0
          %832 = vmatprep.subr.mxu0 0.0
          %833 = vmatpush1.msra.mxu0 0.0
          %834 = vmatprep.subr.mxu0 0.0
          %835 = vmatpush1.msra.mxu0 0.0
          %836 = vmatprep.subr.mxu0 0.0
          %837 = vmatpush1.msra.mxu0 0.0
          %838 = vmatprep.subr.mxu0 0.0
          %839 = vmatpush1.msra.mxu0 0.0
          %840 = vmatprep.subr.mxu0 0.0
          %841 = vmatpush1.msra.mxu0 0.0
          %842 = vmatprep.subr.mxu0 0.0
          %843 = vmatpush1.msra.mxu0 0.0
          %844 = vmatprep.mubr.f32.mxu0 0.0
          %845 = vmatmul.mubr.f32.gmra.mrb[0].mxu0 %v765
          %v846 = vpop.f32.mrb[0].mxu0
          %v847 = vadd.f32 0.0, %v846
          %v848 = vpop.f32.mrb[0].mxu0
          %849 = vmatprep.mubr.f32.mxu0 0.0
          %850 = vmatmul.mubr.f32.gmra.mrb[0].mxu0 %v768
          %v851 = vpop.f32.mrb[0].mxu0
          %v852 = vadd.f32 0.0, %v851
          %v853 = vpop.f32.mrb[0].mxu0
          %854 = vmatprep.mubr.f32.mxu0 0.0
          %855 = vmatmul.mubr.f32.gmra.mrb[0].mxu0 %v771
          %v856 = vpop.f32.mrb[0].mxu0
          %v857 = vadd.f32 0.0, %v856
          %v858 = vpop.f32.mrb[0].mxu0
          %859 = vmatprep.mubr.f32.mxu0 0.0
          %860 = vmatmul.mubr.f32.gmra.mrb[0].mxu0 %v774
          %v861 = vpop.f32.mrb[0].mxu0
          %v862 = vadd.f32 0.0, %v861
          %v863 = vpop.f32.mrb[0].mxu0
          %864 = vdwg.mxu0
          %vm865 = vcmask 261120
          %866 = vst.msk [vmem:[#allocation2] sm:$0xff] %vm865, %v847
          %867 = vst.msk [vmem:[#allocation2 + $0x8] sm:$0xff] %vm865, %v852
          %868 = vst.msk [vmem:[#allocation2 + $0x10] sm:$0xff] %vm865, %v857
          %869 = vst.msk [vmem:[#allocation2 + $0x18] sm:$0xff] %vm865, %v862
          %v870 = vld [vmem:[%s8] sm:$0x1]
          %v872 = vsel %vm776, %v870, 0
          %874 = vmatprep.subr.mxu0 0.0
          %875 = vmatpush1.msra.mxu0 %v872
          %876 = vmatprep.subr.mxu0 0.0
          %877 = vmatpush1.msra.mxu0 0.0
          %878 = vmatprep.subr.mxu0 0.0
          %879 = vmatpush1.msra.mxu0 0.0
          %880 = vmatprep.subr.mxu0 0.0
          %881 = vmatpush1.msra.mxu0 0.0
          %882 = vmatprep.subr.mxu0 0.0
          %883 = vmatpush1.msra.mxu0 0.0
          %884 = vmatprep.subr.mxu0 0.0
          %885 = vmatpush1.msra.mxu0 0.0
          %886 = vmatprep.subr.mxu0 0.0
          %887 = vmatpush1.msra.mxu0 0.0
          %888 = vmatprep.subr.mxu0 0.0
          %889 = vmatpush1.msra.mxu0 0.0
          %890 = vmatprep.subr.mxu0 0.0
          %891 = vmatpush1.msra.mxu0 0.0
          %892 = vmatprep.subr.mxu0 0.0
          %893 = vmatpush1.msra.mxu0 0.0
          %894 = vmatprep.subr.mxu0 0.0
          %895 = vmatpush1.msra.mxu0 0.0
          %896 = vmatprep.subr.mxu0 0.0
          %897 = vmatpush1.msra.mxu0 0.0
          %898 = vmatprep.subr.mxu0 0.0
          %899 = vmatpush1.msra.mxu0 0.0
          %900 = vmatprep.subr.mxu0 0.0
          %901 = vmatpush1.msra.mxu0 0.0
          %902 = vmatprep.subr.mxu0 0.0
          %903 = vmatpush1.msra.mxu0 0.0
          %904 = vmatprep.subr.mxu0 0.0
          %905 = vmatpush1.msra.mxu0 0.0
          %906 = vmatprep.subr.mxu0 0.0
          %907 = vmatpush1.msra.mxu0 0.0
          %908 = vmatprep.subr.mxu0 0.0
          %909 = vmatpush1.msra.mxu0 0.0
          %910 = vmatprep.subr.mxu0 0.0
          %911 = vmatpush1.msra.mxu0 0.0
          %912 = vmatprep.subr.mxu0 0.0
          %913 = vmatpush1.msra.mxu0 0.0
          %914 = vmatprep.subr.mxu0 0.0
          %915 = vmatpush1.msra.mxu0 0.0
          %916 = vmatprep.subr.mxu0 0.0
          %917 = vmatpush1.msra.mxu0 0.0
          %918 = vmatprep.subr.mxu0 0.0
          %919 = vmatpush1.msra.mxu0 0.0
          %920 = vmatprep.subr.mxu0 0.0
          %921 = vmatpush1.msra.mxu0 0.0
          %922 = vmatprep.subr.mxu0 0.0
          %923 = vmatpush1.msra.mxu0 0.0
          %924 = vmatprep.subr.mxu0 0.0
          %925 = vmatpush1.msra.mxu0 0.0
          %926 = vmatprep.subr.mxu0 0.0
          %927 = vmatpush1.msra.mxu0 0.0
          %928 = vmatprep.subr.mxu0 0.0
          %929 = vmatpush1.msra.mxu0 0.0
          %930 = vmatprep.subr.mxu0 0.0
          %931 = vmatpush1.msra.mxu0 0.0
          %932 = vmatprep.subr.mxu0 0.0
          %933 = vmatpush1.msra.mxu0 0.0
          %934 = vmatprep.subr.mxu0 0.0
          %935 = vmatpush1.msra.mxu0 0.0
          %936 = vmatprep.subr.mxu0 0.0
          %937 = vmatpush1.msra.mxu0 0.0
          %938 = vmatprep.mubr.f32.mxu0 0.0
          %939 = vmatmul.mubr.f32.gmra.mrb[0].mxu0 %v765
          %v940 = vpop.f32.mrb[0].mxu0
          %v941 = vadd.f32 0.0, %v940
          %v942 = vpop.f32.mrb[0].mxu0
          %943 = vmatprep.mubr.f32.mxu0 0.0
          %944 = vmatmul.mubr.f32.gmra.mrb[0].mxu0 %v768
          %v945 = vpop.f32.mrb[0].mxu0
          %v946 = vadd.f32 0.0, %v945
          %v947 = vpop.f32.mrb[0].mxu0
          %948 = vmatprep.mubr.f32.mxu0 0.0
          %949 = vmatmul.mubr.f32.gmra.mrb[0].mxu0 %v771
          %v950 = vpop.f32.mrb[0].mxu0
          %v951 = vadd.f32 0.0, %v950
          %v952 = vpop.f32.mrb[0].mxu0
          %953 = vmatprep.mubr.f32.mxu0 0.0
          %954 = vmatmul.mubr.f32.gmra.mrb[0].mxu0 %v774
          %v955 = vpop.f32.mrb[0].mxu0
          %v956 = vadd.f32 0.0, %v955
          %v957 = vpop.f32.mrb[0].mxu0
          %958 = vdwg.mxu0
          %959 = vst.msk [vmem:[#allocation3] sm:$0xff] %vm865, %v941
          %960 = vst.msk [vmem:[#allocation3 + $0x8] sm:$0xff] %vm865, %v946
          %961 = vst.msk [vmem:[#allocation3 + $0x10] sm:$0xff] %vm865, %v951
          %962 = vst.msk [vmem:[#allocation3 + $0x18] sm:$0xff] %vm865, %v956
          %963 = vst.msk [vmem:[#allocation4] sm:$0xff] %vm763, 0.0
          %964 = vst.msk [vmem:[#allocation4 + $0x8] sm:$0xff] %vm763, 0.0
          %965 = vst.msk [vmem:[#allocation4 + $0x10] sm:$0xff] %vm763, 0.0
          %966 = vst.msk [vmem:[#allocation4 + $0x18] sm:$0xff] %vm763, 0.0
        $region134: #{learned_lu_forward.3} parent=125 // pred_fallthru
          _
        %v967 = vlaneseq
        %v968 = vand.u32 %v967, 127
        %v969 = vlaneseq
        %v970 = vshrl.u32 %v969, 7
        %v971 = vadd.s32 %v970, 8
        %v972 = vadd.s32 %v970, 16
        %v973 = vadd.s32 %v970, 24
        %v974 = vld [vmem:[%s734] sm:$0xff]
        %v975 = vld [vmem:[%s734 + $0x8] sm:$0xff]
        %v976 = vld [vmem:[%s734 + $0x10] sm:$0xff]
        %v977 = vld [vmem:[%s734 + $0x18] sm:$0xff]
        %v978 = vld [vmem:[%s734 + $0x20] sm:$0xff]
        %v979 = vld [vmem:[%s734 + $0x28] sm:$0xff]
        %v980 = vld [vmem:[%s734 + $0x30] sm:$0xff]
        %v981 = vld [vmem:[%s734 + $0x38] sm:$0xff]
        %v982 = vld [vmem:[%s734 + $0x40] sm:$0xff]
        %v983 = vld [vmem:[%s734 + $0x48] sm:$0xff]
        %v984 = vld [vmem:[%s734 + $0x50] sm:$0xff]
        %v985 = vld [vmem:[%s734 + $0x58] sm:$0xff]
        %v986 = vld [vmem:[%s734 + $0x60] sm:$0xff]
        %v987 = vld [vmem:[%s734 + $0x68] sm:$0xff]
        %v988 = vld [vmem:[%s734 + $0x70] sm:$0xff]
        %v989 = vld [vmem:[%s734 + $0x78] sm:$0xff]
        %990 = vset.pattern.permute.xlu0 0
        %991 = vperm.xlu0 %990, %v974
        %v992 = vpop.permute.xlu0 %991
        %993 = vset.pattern.permute.xlu0 0
        %994 = vperm.xlu0 %993, %v975
        %v995 = vpop.permute.xlu0 %994
        %996 = vset.pattern.permute.xlu0 0
        %997 = vperm.xlu0 %996, %v976
        %v998 = vpop.permute.xlu0 %997
        %999 = vset.pattern.permute.xlu0 0
        %1000 = vperm.xlu0 %999, %v977
        %v1001 = vpop.permute.xlu0 %1000
        %1002 = vset.pattern.permute.xlu0 0
        %1003 = vperm.xlu0 %1002, %v978
        %v1004 = vpop.permute.xlu0 %1003
        %1005 = vset.pattern.permute.xlu0 0
        %1006 = vperm.xlu0 %1005, %v979
        %v1007 = vpop.permute.xlu0 %1006
        %1008 = vset.pattern.permute.xlu0 0
        %1009 = vperm.xlu0 %1008, %v980
        %v1010 = vpop.permute.xlu0 %1009
        %1011 = vset.pattern.permute.xlu0 0
        %1012 = vperm.xlu0 %1011, %v981
        %v1013 = vpop.permute.xlu0 %1012
        %1014 = vset.pattern.permute.xlu0 0
        %1015 = vperm.xlu0 %1014, %v982
        %v1016 = vpop.permute.xlu0 %1015
        %1017 = vset.pattern.permute.xlu0 0
        %1018 = vperm.xlu0 %1017, %v983
        %v1019 = vpop.permute.xlu0 %1018
        %1020 = vset.pattern.permute.xlu0 0
        %1021 = vperm.xlu0 %1020, %v984
        %v1022 = vpop.permute.xlu0 %1021
        %1023 = vset.pattern.permute.xlu0 0
        %1024 = vperm.xlu0 %1023, %v985
        %v1025 = vpop.permute.xlu0 %1024
        %1026 = vset.pattern.permute.xlu0 0
        %1027 = vperm.xlu0 %1026, %v986
        %v1028 = vpop.permute.xlu0 %1027
        %1029 = vset.pattern.permute.xlu0 0
        %1030 = vperm.xlu0 %1029, %v987
        %v1031 = vpop.permute.xlu0 %1030
        %1032 = vset.pattern.permute.xlu0 0
        %1033 = vperm.xlu0 %1032, %v988
        %v1034 = vpop.permute.xlu0 %1033
        %1035 = vset.pattern.permute.xlu0 0
        %1036 = vperm.xlu0 %1035, %v989
        %v1037 = vpop.permute.xlu0 %1036
        %vm1038 = vcmp.eq.s32.totalorder %v968, %v992
        %vm1039 = vcmp.eq.s32.totalorder %v968, %v995
        %vm1040 = vcmp.eq.s32.totalorder %v968, %v998
        %vm1041 = vcmp.eq.s32.totalorder %v968, %v1001
        %vm1042 = vcmp.eq.s32.totalorder %v968, %v1004
        %vm1043 = vcmp.eq.s32.totalorder %v968, %v1007
        %vm1044 = vcmp.eq.s32.totalorder %v968, %v1010
        %vm1045 = vcmp.eq.s32.totalorder %v968, %v1013
        %vm1046 = vcmp.eq.s32.totalorder %v968, %v1016
        %vm1047 = vcmp.eq.s32.totalorder %v968, %v1019
        %vm1048 = vcmp.eq.s32.totalorder %v968, %v1022
        %vm1049 = vcmp.eq.s32.totalorder %v968, %v1025
        %vm1050 = vcmp.eq.s32.totalorder %v968, %v1028
        %vm1051 = vcmp.eq.s32.totalorder %v968, %v1031
        %vm1052 = vcmp.eq.s32.totalorder %v968, %v1034
        %vm1053 = vcmp.eq.s32.totalorder %v968, %v1037
        %v1054 = vsel %vm1038, 1, 0
        %v1055 = vsel %vm1039, 1, 0
        %v1056 = vsel %vm1040, 1, 0
        %v1057 = vsel %vm1041, 1, 0
        %v1058 = vsel %vm1042, 1, 0
        %v1059 = vsel %vm1043, 1, 0
        %v1060 = vsel %vm1044, 1, 0
        %v1061 = vsel %vm1045, 1, 0
        %v1062 = vsel %vm1046, 1, 0
        %v1063 = vsel %vm1047, 1, 0
        %v1064 = vsel %vm1048, 1, 0
        %v1065 = vsel %vm1049, 1, 0
        %v1066 = vsel %vm1050, 1, 0
        %v1067 = vsel %vm1051, 1, 0
        %v1068 = vsel %vm1052, 1, 0
        %v1069 = vsel %vm1053, 1, 0
        %v1070 = vcvt.s32.f32 %v1054
        %v1071 = vcvt.s32.f32 %v1055
        %v1072 = vcvt.s32.f32 %v1056
        %v1073 = vcvt.s32.f32 %v1057
        %v1074 = vcvt.s32.f32 %v1058
        %v1075 = vcvt.s32.f32 %v1059
        %v1076 = vcvt.s32.f32 %v1060
        %v1077 = vcvt.s32.f32 %v1061
        %v1078 = vcvt.s32.f32 %v1062
        %v1079 = vcvt.s32.f32 %v1063
        %v1080 = vcvt.s32.f32 %v1064
        %v1081 = vcvt.s32.f32 %v1065
        %v1082 = vcvt.s32.f32 %v1066
        %v1083 = vcvt.s32.f32 %v1067
        %v1084 = vcvt.s32.f32 %v1068
        %v1085 = vcvt.s32.f32 %v1069
        %v1086 = vld [vmem:[%s740] sm:$0xff]
        %v1087 = vld [vmem:[%s740 + $0x8] sm:$0xff]
        %v1088 = vld [vmem:[%s740 + $0x10] sm:$0xff]
        %v1089 = vld [vmem:[%s740 + $0x18] sm:$0xff]
        %v1090 = vld [vmem:[%s740 + $0x20] sm:$0xff]
        %v1091 = vld [vmem:[%s740 + $0x28] sm:$0xff]
        %v1092 = vld [vmem:[%s740 + $0x30] sm:$0xff]
        %v1093 = vld [vmem:[%s740 + $0x38] sm:$0xff]
        %v1094 = vld [vmem:[%s740 + $0x40] sm:$0xff]
        %v1095 = vld [vmem:[%s740 + $0x48] sm:$0xff]
        %v1096 = vld [vmem:[%s740 + $0x50] sm:$0xff]
        %v1097 = vld [vmem:[%s740 + $0x58] sm:$0xff]
        %v1098 = vld [vmem:[%s740 + $0x60] sm:$0xff]
        %v1099 = vld [vmem:[%s740 + $0x68] sm:$0xff]
        %v1100 = vld [vmem:[%s740 + $0x70] sm:$0xff]
        %v1101 = vld [vmem:[%s740 + $0x78] sm:$0xff]
        %1102 = vset.pattern.permute.xlu0 0
        %1103 = vperm.xlu0 %1102, %v1086
        %v1104 = vpop.permute.xlu0 %1103
        %1105 = vset.pattern.permute.xlu0 0
        %1106 = vperm.xlu0 %1105, %v1087
        %v1107 = vpop.permute.xlu0 %1106
        %1108 = vset.pattern.permute.xlu0 0
        %1109 = vperm.xlu0 %1108, %v1088
        %v1110 = vpop.permute.xlu0 %1109
        %1111 = vset.pattern.permute.xlu0 0
        %1112 = vperm.xlu0 %1111, %v1089
        %v1113 = vpop.permute.xlu0 %1112
        %1114 = vset.pattern.permute.xlu0 0
        %1115 = vperm.xlu0 %1114, %v1090
        %v1116 = vpop.permute.xlu0 %1115
        %1117 = vset.pattern.permute.xlu0 0
        %1118 = vperm.xlu0 %1117, %v1091
        %v1119 = vpop.permute.xlu0 %1118
        %1120 = vset.pattern.permute.xlu0 0
        %1121 = vperm.xlu0 %1120, %v1092
        %v1122 = vpop.permute.xlu0 %1121
        %1123 = vset.pattern.permute.xlu0 0
        %1124 = vperm.xlu0 %1123, %v1093
        %v1125 = vpop.permute.xlu0 %1124
        %1126 = vset.pattern.permute.xlu0 0
        %1127 = vperm.xlu0 %1126, %v1094
        %v1128 = vpop.permute.xlu0 %1127
        %1129 = vset.pattern.permute.xlu0 0
        %1130 = vperm.xlu0 %1129, %v1095
        %v1131 = vpop.permute.xlu0 %1130
        %1132 = vset.pattern.permute.xlu0 0
        %1133 = vperm.xlu0 %1132, %v1096
        %v1134 = vpop.permute.xlu0 %1133
        %1135 = vset.pattern.permute.xlu0 0
        %1136 = vperm.xlu0 %1135, %v1097
        %v1137 = vpop.permute.xlu0 %1136
        %1138 = vset.pattern.permute.xlu0 0
        %1139 = vperm.xlu0 %1138, %v1098
        %v1140 = vpop.permute.xlu0 %1139
        %1141 = vset.pattern.permute.xlu0 0
        %1142 = vperm.xlu0 %1141, %v1099
        %v1143 = vpop.permute.xlu0 %1142
        %1144 = vset.pattern.permute.xlu0 0
        %1145 = vperm.xlu0 %1144, %v1100
        %v1146 = vpop.permute.xlu0 %1145
        %1147 = vset.pattern.permute.xlu0 0
        %1148 = vperm.xlu0 %1147, %v1101
        %v1149 = vpop.permute.xlu0 %1148
        %vm1150 = vcmp.eq.s32.totalorder %v968, %v1104
        %vm1151 = vcmp.eq.s32.totalorder %v968, %v1107
        %vm1152 = vcmp.eq.s32.totalorder %v968, %v1110
        %vm1153 = vcmp.eq.s32.totalorder %v968, %v1113
        %vm1154 = vcmp.eq.s32.totalorder %v968, %v1116
        %vm1155 = vcmp.eq.s32.totalorder %v968, %v1119
        %vm1156 = vcmp.eq.s32.totalorder %v968, %v1122
        %vm1157 = vcmp.eq.s32.totalorder %v968, %v1125
        %vm1158 = vcmp.eq.s32.totalorder %v968, %v1128
        %vm1159 = vcmp.eq.s32.totalorder %v968, %v1131
        %vm1160 = vcmp.eq.s32.totalorder %v968, %v1134
        %vm1161 = vcmp.eq.s32.totalorder %v968, %v1137
        %vm1162 = vcmp.eq.s32.totalorder %v968, %v1140
        %vm1163 = vcmp.eq.s32.totalorder %v968, %v1143
        %vm1164 = vcmp.eq.s32.totalorder %v968, %v1146
        %vm1165 = vcmp.eq.s32.totalorder %v968, %v1149
        %v1166 = vsel %vm1150, 1, 0
        %v1167 = vsel %vm1151, 1, 0
        %v1168 = vsel %vm1152, 1, 0
        %v1169 = vsel %vm1153, 1, 0
        %v1170 = vsel %vm1154, 1, 0
        %v1171 = vsel %vm1155, 1, 0
        %v1172 = vsel %vm1156, 1, 0
        %v1173 = vsel %vm1157, 1, 0
        %v1174 = vsel %vm1158, 1, 0
        %v1175 = vsel %vm1159, 1, 0
        %v1176 = vsel %vm1160, 1, 0
        %v1177 = vsel %vm1161, 1, 0
        %v1178 = vsel %vm1162, 1, 0
        %v1179 = vsel %vm1163, 1, 0
        %v1180 = vsel %vm1164, 1, 0
        %v1181 = vsel %vm1165, 1, 0
        %v1182 = vcvt.s32.f32 %v1166
        %v1183 = vcvt.s32.f32 %v1167
        %v1184 = vcvt.s32.f32 %v1168
        %v1185 = vcvt.s32.f32 %v1169
        %v1186 = vcvt.s32.f32 %v1170
        %v1187 = vcvt.s32.f32 %v1171
        %v1188 = vcvt.s32.f32 %v1172
        %v1189 = vcvt.s32.f32 %v1173
        %v1190 = vcvt.s32.f32 %v1174
        %v1191 = vcvt.s32.f32 %v1175
        %v1192 = vcvt.s32.f32 %v1176
        %v1193 = vcvt.s32.f32 %v1177
        %v1194 = vcvt.s32.f32 %v1178
        %v1195 = vcvt.s32.f32 %v1179
        %v1196 = vcvt.s32.f32 %v1180
        %v1197 = vcvt.s32.f32 %v1181
        %v1198 = vld [vmem:[%s744] sm:$0x1]
        %v1199 = vlaneseq
        %v1200 = vshrl.u32 %v1199, 7
        %v1201 = vsub.s32 0, %v1200
        %v1202 = vrot.slane %v1198, %v1201
        %vm1203 = vcmp.eq.s32.totalorder %v970, %v1202
        %vm1204 = vcmp.eq.s32.totalorder %v971, %v1202
        %vm1205 = vcmp.eq.s32.totalorder %v972, %v1202
        %vm1206 = vcmp.eq.s32.totalorder %v973, %v1202
        %v1207 = vsel %vm1203, 1, 0
        %v1208 = vsel %vm1204, 1, 0
        %v1209 = vsel %vm1205, 1, 0
        %v1210 = vsel %vm1206, 1, 0
        %v1211 = vcvt.s32.f32 %v1207
        %v1212 = vcvt.s32.f32 %v1208
        %v1213 = vcvt.s32.f32 %v1209
        %v1214 = vcvt.s32.f32 %v1210
        %v1215 = vld [vmem:[%s658] sm:$0xff]
        %v1216 = vld [vmem:[%s658 + $0x8] sm:$0xff]
        %v1217 = vld [vmem:[%s658 + $0x10] sm:$0xff]
        %v1218 = vld [vmem:[%s658 + $0x18] sm:$0xff]
        %1219 = vxpose.xlu0.b32.start [1/16] %v1215, 128
        %1220 = vxpose.xlu0.b32.cont [2/16] %v1216, 128
        %1221 = vxpose.xlu0.b32.cont [3/16] %v1217, 128
        %1222 = vxpose.xlu0.b32.cont [4/16] %v1218, 128
        %1223 = vxpose.xlu0.b32.cont [5/16] 0.0, 128
        %1224 = vxpose.xlu0.b32.cont [6/16] 0.0, 128
        %1225 = vxpose.xlu0.b32.cont [7/16] 0.0, 128
        %1226 = vxpose.xlu0.b32.cont [8/16] 0.0, 128
        %1227 = vxpose.xlu0.b32.cont [9/16] 0.0, 128
        %1228 = vxpose.xlu0.b32.cont [10/16] 0.0, 128
        %1229 = vxpose.xlu0.b32.cont [11/16] 0.0, 128
        %1230 = vxpose.xlu0.b32.cont [12/16] 0.0, 128
        %1231 = vxpose.xlu0.b32.cont [13/16] 0.0, 128
        %1232 = vxpose.xlu0.b32.cont [14/16] 0.0, 128
        %1233 = vxpose.xlu0.b32.cont [15/16] 0.0, 128
        %1234 = vxpose.xlu0.b32.end [16/16] 0.0, 128
        %v1235 = vpop.trf.xlu0
        %v1236 = vpop.trf.xlu0
        %v1237 = vpop.trf.xlu0
        %v1238 = vpop.trf.xlu0
        %v1239 = vpop.trf.xlu0
        %v1240 = vpop.trf.xlu0
        %v1241 = vpop.trf.xlu0
        %v1242 = vpop.trf.xlu0
        %v1243 = vpop.trf.xlu0
        %v1244 = vpop.trf.xlu0
        %v1245 = vpop.trf.xlu0
        %v1246 = vpop.trf.xlu0
        %v1247 = vpop.trf.xlu0
        %v1248 = vpop.trf.xlu0
        %v1249 = vpop.trf.xlu0
        %v1250 = vpop.trf.xlu0
        %v1251 = vld [vmem:[#allocation2] sm:$0xff]
        %v1252 = vld [vmem:[#allocation2 + $0x8] sm:$0xff]
        %v1253 = vld [vmem:[#allocation2 + $0x10] sm:$0xff]
        %v1254 = vld [vmem:[#allocation2 + $0x18] sm:$0xff]
        %v1255 = vld [vmem:[#allocation3] sm:$0xff]
        %v1256 = vld [vmem:[#allocation3 + $0x8] sm:$0xff]
        %v1257 = vld [vmem:[#allocation3 + $0x10] sm:$0xff]
        %v1258 = vld [vmem:[#allocation3 + $0x18] sm:$0xff]
        %vm1259 = vcmask 261120
        %v1261 = vsel %vm1259, %v1182, 0
        %v1264 = vsel %vm1259, %v1183, 0
        %v1267 = vsel %vm1259, %v1184, 0
        %v1270 = vsel %vm1259, %v1185, 0
        %v1273 = vsel %vm1259, %v1186, 0
        %v1276 = vsel %vm1259, %v1187, 0
        %v1279 = vsel %vm1259, %v1188, 0
        %v1282 = vsel %vm1259, %v1189, 0
        %v1285 = vsel %vm1259, %v1190, 0
        %v1288 = vsel %vm1259, %v1191, 0
        %v1291 = vsel %vm1259, %v1192, 0
        %v1294 = vsel %vm1259, %v1193, 0
        %v1297 = vsel %vm1259, %v1194, 0
        %v1300 = vsel %vm1259, %v1195, 0
        %v1303 = vsel %vm1259, %v1196, 0
        %v1306 = vsel %vm1259, %v1197, 0
        %1308 = vmatprep.subr.mxu0 0.0
        %1309 = vmatpush1.msra.mxu0 %v1255
        %1310 = vmatprep.subr.mxu0 0.0
        %1311 = vmatpush1.msra.mxu0 %v1256
        %1312 = vmatprep.subr.mxu0 0.0
        %1313 = vmatpush1.msra.mxu0 %v1257
        %1314 = vmatprep.subr.mxu0 0.0
        %1315 = vmatpush1.msra.mxu0 %v1258
        %1316 = vmatprep.subr.mxu0 0.0
        %1317 = vmatpush1.msra.mxu0 0.0
        %1318 = vmatprep.subr.mxu0 0.0
        %1319 = vmatpush1.msra.mxu0 0.0
        %1320 = vmatprep.subr.mxu0 0.0
        %1321 = vmatpush1.msra.mxu0 0.0
        %1322 = vmatprep.subr.mxu0 0.0
        %1323 = vmatpush1.msra.mxu0 0.0
        %1324 = vmatprep.subr.mxu0 0.0
        %1325 = vmatpush1.msra.mxu0 0.0
        %1326 = vmatprep.subr.mxu0 0.0
        %1327 = vmatpush1.msra.mxu0 0.0
        %1328 = vmatprep.subr.mxu0 0.0
        %1329 = vmatpush1.msra.mxu0 0.0
        %1330 = vmatprep.subr.mxu0 0.0
        %1331 = vmatpush1.msra.mxu0 0.0
        %1332 = vmatprep.subr.mxu0 0.0
        %1333 = vmatpush1.msra.mxu0 0.0
        %1334 = vmatprep.subr.mxu0 0.0
        %1335 = vmatpush1.msra.mxu0 0.0
        %1336 = vmatprep.subr.mxu0 0.0
        %1337 = vmatpush1.msra.mxu0 0.0
        %1338 = vmatprep.subr.mxu0 0.0
        %1339 = vmatpush1.msra.mxu0 0.0
        %1340 = vmatprep.subr.mxu0 0.0
        %1341 = vmatpush1.msra.mxu0 0.0
        %1342 = vmatprep.subr.mxu0 0.0
        %1343 = vmatpush1.msra.mxu0 0.0
        %1344 = vmatprep.subr.mxu0 0.0
        %1345 = vmatpush1.msra.mxu0 0.0
        %1346 = vmatprep.subr.mxu0 0.0
        %1347 = vmatpush1.msra.mxu0 0.0
        %1348 = vmatprep.subr.mxu0 0.0
        %1349 = vmatpush1.msra.mxu0 0.0
        %1350 = vmatprep.subr.mxu0 0.0
        %1351 = vmatpush1.msra.mxu0 0.0
        %1352 = vmatprep.subr.mxu0 0.0
        %1353 = vmatpush1.msra.mxu0 0.0
        %1354 = vmatprep.subr.mxu0 0.0
        %1355 = vmatpush1.msra.mxu0 0.0
        %1356 = vmatprep.subr.mxu0 0.0
        %1357 = vmatpush1.msra.mxu0 0.0
        %1358 = vmatprep.subr.mxu0 0.0
        %1359 = vmatpush1.msra.mxu0 0.0
        %1360 = vmatprep.subr.mxu0 0.0
        %1361 = vmatpush1.msra.mxu0 0.0
        %1362 = vmatprep.subr.mxu0 0.0
        %1363 = vmatpush1.msra.mxu0 0.0
        %1364 = vmatprep.subr.mxu0 0.0
        %1365 = vmatpush1.msra.mxu0 0.0
        %1366 = vmatprep.subr.mxu0 0.0
        %1367 = vmatpush1.msra.mxu0 0.0
        %1368 = vmatprep.subr.mxu0 0.0
        %1369 = vmatpush1.msra.mxu0 0.0
        %1370 = vmatprep.subr.mxu0 0.0
        %1371 = vmatpush1.msra.mxu0 0.0
        %1372 = vmatprep.mubr.f32.mxu0 0.0
        %1373 = vmatmul.mubr.f32.gmra.mrb[0].mxu0 %v1261
        %v1374 = vpop.f32.mrb[0].mxu0
        %v1375 = vadd.f32 0.0, %v1374
        %v1376 = vpop.f32.mrb[0].mxu0
        %1377 = vmatprep.mubr.f32.mxu0 0.0
        %1378 = vmatmul.mubr.f32.gmra.mrb[0].mxu0 %v1264
        %v1379 = vpop.f32.mrb[0].mxu0
        %v1380 = vadd.f32 0.0, %v1379
        %v1381 = vpop.f32.mrb[0].mxu0
        %1382 = vmatprep.mubr.f32.mxu0 0.0
        %1383 = vmatmul.mubr.f32.gmra.mrb[0].mxu0 %v1267
        %v1384 = vpop.f32.mrb[0].mxu0
        %v1385 = vadd.f32 0.0, %v1384
        %v1386 = vpop.f32.mrb[0].mxu0
        %1387 = vmatprep.mubr.f32.mxu0 0.0
        %1388 = vmatmul.mubr.f32.gmra.mrb[0].mxu0 %v1270
        %v1389 = vpop.f32.mrb[0].mxu0
        %v1390 = vadd.f32 0.0, %v1389
        %v1391 = vpop.f32.mrb[0].mxu0
        %1392 = vmatprep.mubr.f32.mxu0 0.0
        %1393 = vmatmul.mubr.f32.gmra.mrb[0].mxu0 %v1273
        %v1394 = vpop.f32.mrb[0].mxu0
        %v1395 = vadd.f32 0.0, %v1394
        %v1396 = vpop.f32.mrb[0].mxu0
        %1397 = vmatprep.mubr.f32.mxu0 0.0
        %1398 = vmatmul.mubr.f32.gmra.mrb[0].mxu0 %v1276
        %v1399 = vpop.f32.mrb[0].mxu0
        %v1400 = vadd.f32 0.0, %v1399
        %v1401 = vpop.f32.mrb[0].mxu0
        %1402 = vmatprep.mubr.f32.mxu0 0.0
        %1403 = vmatmul.mubr.f32.gmra.mrb[0].mxu0 %v1279
        %v1404 = vpop.f32.mrb[0].mxu0
        %v1405 = vadd.f32 0.0, %v1404
        %v1406 = vpop.f32.mrb[0].mxu0
        %1407 = vmatprep.mubr.f32.mxu0 0.0
        %1408 = vmatmul.mubr.f32.gmra.mrb[0].mxu0 %v1282
        %v1409 = vpop.f32.mrb[0].mxu0
        %v1410 = vadd.f32 0.0, %v1409
        %v1411 = vpop.f32.mrb[0].mxu0
        %1412 = vmatprep.mubr.f32.mxu0 0.0
        %1413 = vmatmul.mubr.f32.gmra.mrb[0].mxu0 %v1285
        %v1414 = vpop.f32.mrb[0].mxu0
        %v1415 = vadd.f32 0.0, %v1414
        %v1416 = vpop.f32.mrb[0].mxu0
        %1417 = vmatprep.mubr.f32.mxu0 0.0
        %1418 = vmatmul.mubr.f32.gmra.mrb[0].mxu0 %v1288
        %v1419 = vpop.f32.mrb[0].mxu0
        %v1420 = vadd.f32 0.0, %v1419
        %v1421 = vpop.f32.mrb[0].mxu0
        %1422 = vmatprep.mubr.f32.mxu0 0.0
        %1423 = vmatmul.mubr.f32.gmra.mrb[0].mxu0 %v1291
        %v1424 = vpop.f32.mrb[0].mxu0
        %v1425 = vadd.f32 0.0, %v1424
        %v1426 = vpop.f32.mrb[0].mxu0
        %1427 = vmatprep.mubr.f32.mxu0 0.0
        %1428 = vmatmul.mubr.f32.gmra.mrb[0].mxu0 %v1294
        %v1429 = vpop.f32.mrb[0].mxu0
        %v1430 = vadd.f32 0.0, %v1429
        %v1431 = vpop.f32.mrb[0].mxu0
        %1432 = vmatprep.mubr.f32.mxu0 0.0
        %1433 = vmatmul.mubr.f32.gmra.mrb[0].mxu0 %v1297
        %v1434 = vpop.f32.mrb[0].mxu0
        %v1435 = vadd.f32 0.0, %v1434
        %v1436 = vpop.f32.mrb[0].mxu0
        %1437 = vmatprep.mubr.f32.mxu0 0.0
        %1438 = vmatmul.mubr.f32.gmra.mrb[0].mxu0 %v1300
        %v1439 = vpop.f32.mrb[0].mxu0
        %v1440 = vadd.f32 0.0, %v1439
        %v1441 = vpop.f32.mrb[0].mxu0
        %1442 = vmatprep.mubr.f32.mxu0 0.0
        %1443 = vmatmul.mubr.f32.gmra.mrb[0].mxu0 %v1303
        %v1444 = vpop.f32.mrb[0].mxu0
        %v1445 = vadd.f32 0.0, %v1444
        %v1446 = vpop.f32.mrb[0].mxu0
        %1447 = vmatprep.mubr.f32.mxu0 0.0
        %1448 = vmatmul.mubr.f32.gmra.mrb[0].mxu0 %v1306
        %v1449 = vpop.f32.mrb[0].mxu0
        %v1450 = vadd.f32 0.0, %v1449
        %v1451 = vpop.f32.mrb[0].mxu0
        %1452 = vdwg.mxu0
        %v1454 = vsel %vm1259, %v1070, 0
        %v1457 = vsel %vm1259, %v1071, 0
        %v1460 = vsel %vm1259, %v1072, 0
        %v1463 = vsel %vm1259, %v1073, 0
        %v1466 = vsel %vm1259, %v1074, 0
        %v1469 = vsel %vm1259, %v1075, 0
        %v1472 = vsel %vm1259, %v1076, 0
        %v1475 = vsel %vm1259, %v1077, 0
        %v1478 = vsel %vm1259, %v1078, 0
        %v1481 = vsel %vm1259, %v1079, 0
        %v1484 = vsel %vm1259, %v1080, 0
        %v1487 = vsel %vm1259, %v1081, 0
        %v1490 = vsel %vm1259, %v1082, 0
        %v1493 = vsel %vm1259, %v1083, 0
        %v1496 = vsel %vm1259, %v1084, 0
        %v1499 = vsel %vm1259, %v1085, 0
        %1501 = vmatprep.subr.mxu0 0.0
        %1502 = vmatpush1.msra.mxu0 %v1251
        %1503 = vmatprep.subr.mxu0 0.0
        %1504 = vmatpush1.msra.mxu0 %v1252
        %1505 = vmatprep.subr.mxu0 0.0
        %1506 = vmatpush1.msra.mxu0 %v1253
        %1507 = vmatprep.subr.mxu0 0.0
        %1508 = vmatpush1.msra.mxu0 %v1254
        %1509 = vmatprep.subr.mxu0 0.0
        %1510 = vmatpush1.msra.mxu0 0.0
        %1511 = vmatprep.subr.mxu0 0.0
        %1512 = vmatpush1.msra.mxu0 0.0
        %1513 = vmatprep.subr.mxu0 0.0
        %1514 = vmatpush1.msra.mxu0 0.0
        %1515 = vmatprep.subr.mxu0 0.0
        %1516 = vmatpush1.msra.mxu0 0.0
        %1517 = vmatprep.subr.mxu0 0.0
        %1518 = vmatpush1.msra.mxu0 0.0
        %1519 = vmatprep.subr.mxu0 0.0
        %1520 = vmatpush1.msra.mxu0 0.0
        %1521 = vmatprep.subr.mxu0 0.0
        %1522 = vmatpush1.msra.mxu0 0.0
        %1523 = vmatprep.subr.mxu0 0.0
        %1524 = vmatpush1.msra.mxu0 0.0
        %1525 = vmatprep.subr.mxu0 0.0
        %1526 = vmatpush1.msra.mxu0 0.0
        %1527 = vmatprep.subr.mxu0 0.0
        %1528 = vmatpush1.msra.mxu0 0.0
        %1529 = vmatprep.subr.mxu0 0.0
        %1530 = vmatpush1.msra.mxu0 0.0
        %1531 = vmatprep.subr.mxu0 0.0
        %1532 = vmatpush1.msra.mxu0 0.0
        %1533 = vmatprep.subr.mxu0 0.0
        %1534 = vmatpush1.msra.mxu0 0.0
        %1535 = vmatprep.subr.mxu0 0.0
        %1536 = vmatpush1.msra.mxu0 0.0
        %1537 = vmatprep.subr.mxu0 0.0
        %1538 = vmatpush1.msra.mxu0 0.0
        %1539 = vmatprep.subr.mxu0 0.0
        %1540 = vmatpush1.msra.mxu0 0.0
        %1541 = vmatprep.subr.mxu0 0.0
        %1542 = vmatpush1.msra.mxu0 0.0
        %1543 = vmatprep.subr.mxu0 0.0
        %1544 = vmatpush1.msra.mxu0 0.0
        %1545 = vmatprep.subr.mxu0 0.0
        %1546 = vmatpush1.msra.mxu0 0.0
        %1547 = vmatprep.subr.mxu0 0.0
        %1548 = vmatpush1.msra.mxu0 0.0
        %1549 = vmatprep.subr.mxu0 0.0
        %1550 = vmatpush1.msra.mxu0 0.0
        %1551 = vmatprep.subr.mxu0 0.0
        %1552 = vmatpush1.msra.mxu0 0.0
        %1553 = vmatprep.subr.mxu0 0.0
        %1554 = vmatpush1.msra.mxu0 0.0
        %1555 = vmatprep.subr.mxu0 0.0
        %1556 = vmatpush1.msra.mxu0 0.0
        %1557 = vmatprep.subr.mxu0 0.0
        %1558 = vmatpush1.msra.mxu0 0.0
        %1559 = vmatprep.subr.mxu0 0.0
        %1560 = vmatpush1.msra.mxu0 0.0
        %1561 = vmatprep.subr.mxu0 0.0
        %1562 = vmatpush1.msra.mxu0 0.0
        %1563 = vmatprep.subr.mxu0 0.0
        %1564 = vmatpush1.msra.mxu0 0.0
        %1565 = vmatprep.mubr.f32.mxu0 0.0
        %1566 = vmatmul.mubr.f32.gmra.mrb[0].mxu0 %v1454
        %v1567 = vpop.f32.mrb[0].mxu0
        %v1568 = vadd.f32 %v1375, %v1567
        %v1569 = vpop.f32.mrb[0].mxu0
        %1570 = vmatprep.mubr.f32.mxu0 0.0
        %1571 = vmatmul.mubr.f32.gmra.mrb[0].mxu0 %v1457
        %v1572 = vpop.f32.mrb[0].mxu0
        %v1573 = vadd.f32 %v1380, %v1572
        %v1574 = vpop.f32.mrb[0].mxu0
        %1575 = vmatprep.mubr.f32.mxu0 0.0
        %1576 = vmatmul.mubr.f32.gmra.mrb[0].mxu0 %v1460
        %v1577 = vpop.f32.mrb[0].mxu0
        %v1578 = vadd.f32 %v1385, %v1577
        %v1579 = vpop.f32.mrb[0].mxu0
        %1580 = vmatprep.mubr.f32.mxu0 0.0
        %1581 = vmatmul.mubr.f32.gmra.mrb[0].mxu0 %v1463
        %v1582 = vpop.f32.mrb[0].mxu0
        %v1583 = vadd.f32 %v1390, %v1582
        %v1584 = vpop.f32.mrb[0].mxu0
        %1585 = vmatprep.mubr.f32.mxu0 0.0
        %1586 = vmatmul.mubr.f32.gmra.mrb[0].mxu0 %v1466
        %v1587 = vpop.f32.mrb[0].mxu0
        %v1588 = vadd.f32 %v1395, %v1587
        %v1589 = vpop.f32.mrb[0].mxu0
        %1590 = vmatprep.mubr.f32.mxu0 0.0
        %1591 = vmatmul.mubr.f32.gmra.mrb[0].mxu0 %v1469
        %v1592 = vpop.f32.mrb[0].mxu0
        %v1593 = vadd.f32 %v1400, %v1592
        %v1594 = vpop.f32.mrb[0].mxu0
        %1595 = vmatprep.mubr.f32.mxu0 0.0
        %1596 = vmatmul.mubr.f32.gmra.mrb[0].mxu0 %v1472
        %v1597 = vpop.f32.mrb[0].mxu0
        %v1598 = vadd.f32 %v1405, %v1597
        %v1599 = vpop.f32.mrb[0].mxu0
        %1600 = vmatprep.mubr.f32.mxu0 0.0
        %1601 = vmatmul.mubr.f32.gmra.mrb[0].mxu0 %v1475
        %v1602 = vpop.f32.mrb[0].mxu0
        %v1603 = vadd.f32 %v1410, %v1602
        %v1604 = vpop.f32.mrb[0].mxu0
        %1605 = vmatprep.mubr.f32.mxu0 0.0
        %1606 = vmatmul.mubr.f32.gmra.mrb[0].mxu0 %v1478
        %v1607 = vpop.f32.mrb[0].mxu0
        %v1608 = vadd.f32 %v1415, %v1607
        %v1609 = vpop.f32.mrb[0].mxu0
        %1610 = vmatprep.mubr.f32.mxu0 0.0
        %1611 = vmatmul.mubr.f32.gmra.mrb[0].mxu0 %v1481
        %v1612 = vpop.f32.mrb[0].mxu0
        %v1613 = vadd.f32 %v1420, %v1612
        %v1614 = vpop.f32.mrb[0].mxu0
        %1615 = vmatprep.mubr.f32.mxu0 0.0
        %1616 = vmatmul.mubr.f32.gmra.mrb[0].mxu0 %v1484
        %v1617 = vpop.f32.mrb[0].mxu0
        %v1618 = vadd.f32 %v1425, %v1617
        %v1619 = vpop.f32.mrb[0].mxu0
        %1620 = vmatprep.mubr.f32.mxu0 0.0
        %1621 = vmatmul.mubr.f32.gmra.mrb[0].mxu0 %v1487
        %v1622 = vpop.f32.mrb[0].mxu0
        %v1623 = vadd.f32 %v1430, %v1622
        %v1624 = vpop.f32.mrb[0].mxu0
        %1625 = vmatprep.mubr.f32.mxu0 0.0
        %1626 = vmatmul.mubr.f32.gmra.mrb[0].mxu0 %v1490
        %v1627 = vpop.f32.mrb[0].mxu0
        %v1628 = vadd.f32 %v1435, %v1627
        %v1629 = vpop.f32.mrb[0].mxu0
        %1630 = vmatprep.mubr.f32.mxu0 0.0
        %1631 = vmatmul.mubr.f32.gmra.mrb[0].mxu0 %v1493
        %v1632 = vpop.f32.mrb[0].mxu0
        %v1633 = vadd.f32 %v1440, %v1632
        %v1634 = vpop.f32.mrb[0].mxu0
        %1635 = vmatprep.mubr.f32.mxu0 0.0
        %1636 = vmatmul.mubr.f32.gmra.mrb[0].mxu0 %v1496
        %v1637 = vpop.f32.mrb[0].mxu0
        %v1638 = vadd.f32 %v1445, %v1637
        %v1639 = vpop.f32.mrb[0].mxu0
        %1640 = vmatprep.mubr.f32.mxu0 0.0
        %1641 = vmatmul.mubr.f32.gmra.mrb[0].mxu0 %v1499
        %v1642 = vpop.f32.mrb[0].mxu0
        %v1643 = vadd.f32 %v1450, %v1642
        %v1644 = vpop.f32.mrb[0].mxu0
        %1645 = vdwg.mxu0
        %v1646 = vld [vmem:[%s9] sm:$0xff]
        %v1647 = vld [vmem:[%s9 + $0x8] sm:$0xff]
        %v1648 = vld [vmem:[%s9 + $0x10] sm:$0xff]
        %v1649 = vld [vmem:[%s9 + $0x18] sm:$0xff]
        %v1651 = vsel %vm1259, %v1235, 0
        %v1654 = vsel %vm1259, %v1236, 0
        %v1657 = vsel %vm1259, %v1237, 0
        %v1660 = vsel %vm1259, %v1238, 0
        %v1663 = vsel %vm1259, %v1239, 0
        %v1666 = vsel %vm1259, %v1240, 0
        %v1669 = vsel %vm1259, %v1241, 0
        %v1672 = vsel %vm1259, %v1242, 0
        %v1675 = vsel %vm1259, %v1243, 0
        %v1678 = vsel %vm1259, %v1244, 0
        %v1681 = vsel %vm1259, %v1245, 0
        %v1684 = vsel %vm1259, %v1246, 0
        %v1687 = vsel %vm1259, %v1247, 0
        %v1690 = vsel %vm1259, %v1248, 0
        %v1693 = vsel %vm1259, %v1249, 0
        %v1696 = vsel %vm1259, %v1250, 0
        %1698 = vmatprep.subr.mxu0 0.0
        %1699 = vmatpush1.msra.mxu0 %v1646
        %1700 = vmatprep.subr.mxu0 0.0
        %1701 = vmatpush1.msra.mxu0 %v1647
        %1702 = vmatprep.subr.mxu0 0.0
        %1703 = vmatpush1.msra.mxu0 %v1648
        %1704 = vmatprep.subr.mxu0 0.0
        %1705 = vmatpush1.msra.mxu0 %v1649
        %1706 = vmatprep.subr.mxu0 0.0
        %1707 = vmatpush1.msra.mxu0 0.0
        %1708 = vmatprep.subr.mxu0 0.0
        %1709 = vmatpush1.msra.mxu0 0.0
        %1710 = vmatprep.subr.mxu0 0.0
        %1711 = vmatpush1.msra.mxu0 0.0
        %1712 = vmatprep.subr.mxu0 0.0
        %1713 = vmatpush1.msra.mxu0 0.0
        %1714 = vmatprep.subr.mxu0 0.0
        %1715 = vmatpush1.msra.mxu0 0.0
        %1716 = vmatprep.subr.mxu0 0.0
        %1717 = vmatpush1.msra.mxu0 0.0
        %1718 = vmatprep.subr.mxu0 0.0
        %1719 = vmatpush1.msra.mxu0 0.0
        %1720 = vmatprep.subr.mxu0 0.0
        %1721 = vmatpush1.msra.mxu0 0.0
        %1722 = vmatprep.subr.mxu0 0.0
        %1723 = vmatpush1.msra.mxu0 0.0
        %1724 = vmatprep.subr.mxu0 0.0
        %1725 = vmatpush1.msra.mxu0 0.0
        %1726 = vmatprep.subr.mxu0 0.0
        %1727 = vmatpush1.msra.mxu0 0.0
        %1728 = vmatprep.subr.mxu0 0.0
        %1729 = vmatpush1.msra.mxu0 0.0
        %1730 = vmatprep.subr.mxu0 0.0
        %1731 = vmatpush1.msra.mxu0 0.0
        %1732 = vmatprep.subr.mxu0 0.0
        %1733 = vmatpush1.msra.mxu0 0.0
        %1734 = vmatprep.subr.mxu0 0.0
        %1735 = vmatpush1.msra.mxu0 0.0
        %1736 = vmatprep.subr.mxu0 0.0
        %1737 = vmatpush1.msra.mxu0 0.0
        %1738 = vmatprep.subr.mxu0 0.0
        %1739 = vmatpush1.msra.mxu0 0.0
        %1740 = vmatprep.subr.mxu0 0.0
        %1741 = vmatpush1.msra.mxu0 0.0
        %1742 = vmatprep.subr.mxu0 0.0
        %1743 = vmatpush1.msra.mxu0 0.0
        %1744 = vmatprep.subr.mxu0 0.0
        %1745 = vmatpush1.msra.mxu0 0.0
        %1746 = vmatprep.subr.mxu0 0.0
        %1747 = vmatpush1.msra.mxu0 0.0
        %1748 = vmatprep.subr.mxu0 0.0
        %1749 = vmatpush1.msra.mxu0 0.0
        %1750 = vmatprep.subr.mxu0 0.0
        %1751 = vmatpush1.msra.mxu0 0.0
        %1752 = vmatprep.subr.mxu0 0.0
        %1753 = vmatpush1.msra.mxu0 0.0
        %1754 = vmatprep.subr.mxu0 0.0
        %1755 = vmatpush1.msra.mxu0 0.0
        %1756 = vmatprep.subr.mxu0 0.0
        %1757 = vmatpush1.msra.mxu0 0.0
        %1758 = vmatprep.subr.mxu0 0.0
        %1759 = vmatpush1.msra.mxu0 0.0
        %1760 = vmatprep.subr.mxu0 0.0
        %1761 = vmatpush1.msra.mxu0 0.0
        %1762 = vmatprep.mubr.f32.mxu0 0.0
        %1763 = vmatmul.mubr.f32.gmra.mrb[0].mxu0 %v1651
        %v1764 = vpop.f32.mrb[0].mxu0
        %v1765 = vadd.f32 0.0, %v1764
        %v1766 = vpop.f32.mrb[0].mxu0
        %1767 = vmatprep.mubr.f32.mxu0 0.0
        %1768 = vmatmul.mubr.f32.gmra.mrb[0].mxu0 %v1654
        %v1769 = vpop.f32.mrb[0].mxu0
        %v1770 = vadd.f32 0.0, %v1769
        %v1771 = vpop.f32.mrb[0].mxu0
        %1772 = vmatprep.mubr.f32.mxu0 0.0
        %1773 = vmatmul.mubr.f32.gmra.mrb[0].mxu0 %v1657
        %v1774 = vpop.f32.mrb[0].mxu0
        %v1775 = vadd.f32 0.0, %v1774
        %v1776 = vpop.f32.mrb[0].mxu0
        %1777 = vmatprep.mubr.f32.mxu0 0.0
        %1778 = vmatmul.mubr.f32.gmra.mrb[0].mxu0 %v1660
        %v1779 = vpop.f32.mrb[0].mxu0
        %v1780 = vadd.f32 0.0, %v1779
        %v1781 = vpop.f32.mrb[0].mxu0
        %1782 = vmatprep.mubr.f32.mxu0 0.0
        %1783 = vmatmul.mubr.f32.gmra.mrb[0].mxu0 %v1663
        %v1784 = vpop.f32.mrb[0].mxu0
        %v1785 = vadd.f32 0.0, %v1784
        %v1786 = vpop.f32.mrb[0].mxu0
        %1787 = vmatprep.mubr.f32.mxu0 0.0
        %1788 = vmatmul.mubr.f32.gmra.mrb[0].mxu0 %v1666
        %v1789 = vpop.f32.mrb[0].mxu0
        %v1790 = vadd.f32 0.0, %v1789
        %v1791 = vpop.f32.mrb[0].mxu0
        %1792 = vmatprep.mubr.f32.mxu0 0.0
        %1793 = vmatmul.mubr.f32.gmra.mrb[0].mxu0 %v1669
        %v1794 = vpop.f32.mrb[0].mxu0
        %v1795 = vadd.f32 0.0, %v1794
        %v1796 = vpop.f32.mrb[0].mxu0
        %1797 = vmatprep.mubr.f32.mxu0 0.0
        %1798 = vmatmul.mubr.f32.gmra.mrb[0].mxu0 %v1672
        %v1799 = vpop.f32.mrb[0].mxu0
        %v1800 = vadd.f32 0.0, %v1799
        %v1801 = vpop.f32.mrb[0].mxu0
        %1802 = vmatprep.mubr.f32.mxu0 0.0
        %1803 = vmatmul.mubr.f32.gmra.mrb[0].mxu0 %v1675
        %v1804 = vpop.f32.mrb[0].mxu0
        %v1805 = vadd.f32 0.0, %v1804
        %v1806 = vpop.f32.mrb[0].mxu0
        %1807 = vmatprep.mubr.f32.mxu0 0.0
        %1808 = vmatmul.mubr.f32.gmra.mrb[0].mxu0 %v1678
        %v1809 = vpop.f32.mrb[0].mxu0
        %v1810 = vadd.f32 0.0, %v1809
        %v1811 = vpop.f32.mrb[0].mxu0
        %1812 = vmatprep.mubr.f32.mxu0 0.0
        %1813 = vmatmul.mubr.f32.gmra.mrb[0].mxu0 %v1681
        %v1814 = vpop.f32.mrb[0].mxu0
        %v1815 = vadd.f32 0.0, %v1814
        %v1816 = vpop.f32.mrb[0].mxu0
        %1817 = vmatprep.mubr.f32.mxu0 0.0
        %1818 = vmatmul.mubr.f32.gmra.mrb[0].mxu0 %v1684
        %v1819 = vpop.f32.mrb[0].mxu0
        %v1820 = vadd.f32 0.0, %v1819
        %v1821 = vpop.f32.mrb[0].mxu0
        %1822 = vmatprep.mubr.f32.mxu0 0.0
        %1823 = vmatmul.mubr.f32.gmra.mrb[0].mxu0 %v1687
        %v1824 = vpop.f32.mrb[0].mxu0
        %v1825 = vadd.f32 0.0, %v1824
        %v1826 = vpop.f32.mrb[0].mxu0
        %1827 = vmatprep.mubr.f32.mxu0 0.0
        %1828 = vmatmul.mubr.f32.gmra.mrb[0].mxu0 %v1690
        %v1829 = vpop.f32.mrb[0].mxu0
        %v1830 = vadd.f32 0.0, %v1829
        %v1831 = vpop.f32.mrb[0].mxu0
        %1832 = vmatprep.mubr.f32.mxu0 0.0
        %1833 = vmatmul.mubr.f32.gmra.mrb[0].mxu0 %v1693
        %v1834 = vpop.f32.mrb[0].mxu0
        %v1835 = vadd.f32 0.0, %v1834
        %v1836 = vpop.f32.mrb[0].mxu0
        %1837 = vmatprep.mubr.f32.mxu0 0.0
        %1838 = vmatmul.mubr.f32.gmra.mrb[0].mxu0 %v1696
        %v1839 = vpop.f32.mrb[0].mxu0
        %v1840 = vadd.f32 0.0, %v1839
        %v1841 = vpop.f32.mrb[0].mxu0
        %1842 = vdwg.mxu0
        %v1843 = vadd.f32 %v1568, %v1765
        %v1844 = vadd.f32 %v1573, %v1770
        %v1845 = vadd.f32 %v1578, %v1775
        %v1846 = vadd.f32 %v1583, %v1780
        %v1847 = vadd.f32 %v1588, %v1785
        %v1848 = vadd.f32 %v1593, %v1790
        %v1849 = vadd.f32 %v1598, %v1795
        %v1850 = vadd.f32 %v1603, %v1800
        %v1851 = vadd.f32 %v1608, %v1805
        %v1852 = vadd.f32 %v1613, %v1810
        %v1853 = vadd.f32 %v1618, %v1815
        %v1854 = vadd.f32 %v1623, %v1820
        %v1855 = vadd.f32 %v1628, %v1825
        %v1856 = vadd.f32 %v1633, %v1830
        %v1857 = vadd.f32 %v1638, %v1835
        %v1858 = vadd.f32 %v1643, %v1840
        %v1859 = vld [vmem:[%s10] sm:$0x1]
        %v1861 = vlaneseq
        %v1862 = vshrl.u32 %v1861, 7
        %v1863 = vsub.s32 0, %v1862
        %v1864 = vrot.slane %v1859, %v1863
        %v1866 = vadd.f32 %v1843, %v1864
        %v1867 = vadd.f32 %v1844, %v1864
        %v1868 = vadd.f32 %v1845, %v1864
        %v1869 = vadd.f32 %v1846, %v1864
        %v1870 = vadd.f32 %v1847, %v1864
        %v1871 = vadd.f32 %v1848, %v1864
        %v1872 = vadd.f32 %v1849, %v1864
        %v1873 = vadd.f32 %v1850, %v1864
        %v1874 = vadd.f32 %v1851, %v1864
        %v1875 = vadd.f32 %v1852, %v1864
        %v1876 = vadd.f32 %v1853, %v1864
        %v1877 = vadd.f32 %v1854, %v1864
        %v1878 = vadd.f32 %v1855, %v1864
        %v1879 = vadd.f32 %v1856, %v1864
        %v1880 = vadd.f32 %v1857, %v1864
        %v1881 = vadd.f32 %v1858, %v1864
        %v1882 = vmax.f32 %v1866, 0.0
        %v1883 = vmax.f32 %v1867, 0.0
        %v1884 = vmax.f32 %v1868, 0.0
        %v1885 = vmax.f32 %v1869, 0.0
        %v1886 = vmax.f32 %v1870, 0.0
        %v1887 = vmax.f32 %v1871, 0.0
        %v1888 = vmax.f32 %v1872, 0.0
        %v1889 = vmax.f32 %v1873, 0.0
        %v1890 = vmax.f32 %v1874, 0.0
        %v1891 = vmax.f32 %v1875, 0.0
        %v1892 = vmax.f32 %v1876, 0.0
        %v1893 = vmax.f32 %v1877, 0.0
        %v1894 = vmax.f32 %v1878, 0.0
        %v1895 = vmax.f32 %v1879, 0.0
        %v1896 = vmax.f32 %v1880, 0.0
        %v1897 = vmax.f32 %v1881, 0.0
        %v1898 = vld [vmem:[%s11] sm:$0xff]
        %v1899 = vld [vmem:[%s11 + $0x8] sm:$0xff]
        %v1900 = vld [vmem:[%s11 + $0x10] sm:$0xff]
        %v1901 = vld [vmem:[%s11 + $0x18] sm:$0xff]
        %v1902 = vld [vmem:[#allocation5] sm:$0x1]
        %v1904 = vlaneseq
        %v1905 = vshrl.u32 %v1904, 7
        %v1906 = vsub.s32 0, %v1905
        %v1907 = vrot.slane %v1902, %v1906
        %v1910 = vsel %vm1259, %v1882, 0
        %v1913 = vsel %vm1259, %v1883, 0
        %v1916 = vsel %vm1259, %v1884, 0
        %v1919 = vsel %vm1259, %v1885, 0
        %v1922 = vsel %vm1259, %v1886, 0
        %v1925 = vsel %vm1259, %v1887, 0
        %v1928 = vsel %vm1259, %v1888, 0
        %v1931 = vsel %vm1259, %v1889, 0
        %v1934 = vsel %vm1259, %v1890, 0
        %v1937 = vsel %vm1259, %v1891, 0
        %v1940 = vsel %vm1259, %v1892, 0
        %v1943 = vsel %vm1259, %v1893, 0
        %v1946 = vsel %vm1259, %v1894, 0
        %v1949 = vsel %vm1259, %v1895, 0
        %v1952 = vsel %vm1259, %v1896, 0
        %v1955 = vsel %vm1259, %v1897, 0
        %1957 = vmatprep.subr.mxu0 0.0
        %1958 = vmatpush1.msra.mxu0 %v1898
        %1959 = vmatprep.subr.mxu0 0.0
        %1960 = vmatpush1.msra.mxu0 %v1899
        %1961 = vmatprep.subr.mxu0 0.0
        %1962 = vmatpush1.msra.mxu0 %v1900
        %1963 = vmatprep.subr.mxu0 0.0
        %1964 = vmatpush1.msra.mxu0 %v1901
        %1965 = vmatprep.subr.mxu0 0.0
        %1966 = vmatpush1.msra.mxu0 0.0
        %1967 = vmatprep.subr.mxu0 0.0
        %1968 = vmatpush1.msra.mxu0 0.0
        %1969 = vmatprep.subr.mxu0 0.0
        %1970 = vmatpush1.msra.mxu0 0.0
        %1971 = vmatprep.subr.mxu0 0.0
        %1972 = vmatpush1.msra.mxu0 0.0
        %1973 = vmatprep.subr.mxu0 0.0
        %1974 = vmatpush1.msra.mxu0 0.0
        %1975 = vmatprep.subr.mxu0 0.0
        %1976 = vmatpush1.msra.mxu0 0.0
        %1977 = vmatprep.subr.mxu0 0.0
        %1978 = vmatpush1.msra.mxu0 0.0
        %1979 = vmatprep.subr.mxu0 0.0
        %1980 = vmatpush1.msra.mxu0 0.0
        %1981 = vmatprep.subr.mxu0 0.0
        %1982 = vmatpush1.msra.mxu0 0.0
        %1983 = vmatprep.subr.mxu0 0.0
        %1984 = vmatpush1.msra.mxu0 0.0
        %1985 = vmatprep.subr.mxu0 0.0
        %1986 = vmatpush1.msra.mxu0 0.0
        %1987 = vmatprep.subr.mxu0 0.0
        %1988 = vmatpush1.msra.mxu0 0.0
        %1989 = vmatprep.subr.mxu0 0.0
        %1990 = vmatpush1.msra.mxu0 0.0
        %1991 = vmatprep.subr.mxu0 0.0
        %1992 = vmatpush1.msra.mxu0 0.0
        %1993 = vmatprep.subr.mxu0 0.0
        %1994 = vmatpush1.msra.mxu0 0.0
        %1995 = vmatprep.subr.mxu0 0.0
        %1996 = vmatpush1.msra.mxu0 0.0
        %1997 = vmatprep.subr.mxu0 0.0
        %1998 = vmatpush1.msra.mxu0 0.0
        %1999 = vmatprep.subr.mxu0 0.0
        %2000 = vmatpush1.msra.mxu0 0.0
        %2001 = vmatprep.subr.mxu0 0.0
        %2002 = vmatpush1.msra.mxu0 0.0
        %2003 = vmatprep.subr.mxu0 0.0
        %2004 = vmatpush1.msra.mxu0 0.0
        %2005 = vmatprep.subr.mxu0 0.0
        %2006 = vmatpush1.msra.mxu0 0.0
        %2007 = vmatprep.subr.mxu0 0.0
        %2008 = vmatpush1.msra.mxu0 0.0
        %2009 = vmatprep.subr.mxu0 0.0
        %2010 = vmatpush1.msra.mxu0 0.0
        %2011 = vmatprep.subr.mxu0 0.0
        %2012 = vmatpush1.msra.mxu0 0.0
        %2013 = vmatprep.subr.mxu0 0.0
        %2014 = vmatpush1.msra.mxu0 0.0
        %2015 = vmatprep.subr.mxu0 0.0
        %2016 = vmatpush1.msra.mxu0 0.0
        %2017 = vmatprep.subr.mxu0 0.0
        %2018 = vmatpush1.msra.mxu0 0.0
        %2019 = vmatprep.subr.mxu0 0.0
        %2020 = vmatpush1.msra.mxu0 0.0
        %2021 = vmatprep.mubr.f32.mxu0 0.0
        %2022 = vmatmul.mubr.f32.gmra.mrb[0].mxu0 %v1910
        %v2023 = vpop.f32.mrb[0].mxu0
        %v2024 = vadd.f32 %v1907, %v2023
        %v2025 = vpop.f32.mrb[0].mxu0
        %2026 = vmatprep.mubr.f32.mxu0 0.0
        %2027 = vmatmul.mubr.f32.gmra.mrb[0].mxu0 %v1913
        %v2028 = vpop.f32.mrb[0].mxu0
        %v2029 = vadd.f32 %v1907, %v2028
        %v2030 = vpop.f32.mrb[0].mxu0
        %2031 = vmatprep.mubr.f32.mxu0 0.0
        %2032 = vmatmul.mubr.f32.gmra.mrb[0].mxu0 %v1916
        %v2033 = vpop.f32.mrb[0].mxu0
        %v2034 = vadd.f32 %v1907, %v2033
        %v2035 = vpop.f32.mrb[0].mxu0
        %2036 = vmatprep.mubr.f32.mxu0 0.0
        %2037 = vmatmul.mubr.f32.gmra.mrb[0].mxu0 %v1919
        %v2038 = vpop.f32.mrb[0].mxu0
        %v2039 = vadd.f32 %v1907, %v2038
        %v2040 = vpop.f32.mrb[0].mxu0
        %2041 = vmatprep.mubr.f32.mxu0 0.0
        %2042 = vmatmul.mubr.f32.gmra.mrb[0].mxu0 %v1922
        %v2043 = vpop.f32.mrb[0].mxu0
        %v2044 = vadd.f32 %v1907, %v2043
        %v2045 = vpop.f32.mrb[0].mxu0
        %2046 = vmatprep.mubr.f32.mxu0 0.0
        %2047 = vmatmul.mubr.f32.gmra.mrb[0].mxu0 %v1925
        %v2048 = vpop.f32.mrb[0].mxu0
        %v2049 = vadd.f32 %v1907, %v2048
        %v2050 = vpop.f32.mrb[0].mxu0
        %2051 = vmatprep.mubr.f32.mxu0 0.0
        %2052 = vmatmul.mubr.f32.gmra.mrb[0].mxu0 %v1928
        %v2053 = vpop.f32.mrb[0].mxu0
        %v2054 = vadd.f32 %v1907, %v2053
        %v2055 = vpop.f32.mrb[0].mxu0
        %2056 = vmatprep.mubr.f32.mxu0 0.0
        %2057 = vmatmul.mubr.f32.gmra.mrb[0].mxu0 %v1931
        %v2058 = vpop.f32.mrb[0].mxu0
        %v2059 = vadd.f32 %v1907, %v2058
        %v2060 = vpop.f32.mrb[0].mxu0
        %2061 = vmatprep.mubr.f32.mxu0 0.0
        %2062 = vmatmul.mubr.f32.gmra.mrb[0].mxu0 %v1934
        %v2063 = vpop.f32.mrb[0].mxu0
        %v2064 = vadd.f32 %v1907, %v2063
        %v2065 = vpop.f32.mrb[0].mxu0
        %2066 = vmatprep.mubr.f32.mxu0 0.0
        %2067 = vmatmul.mubr.f32.gmra.mrb[0].mxu0 %v1937
        %v2068 = vpop.f32.mrb[0].mxu0
        %v2069 = vadd.f32 %v1907, %v2068
        %v2070 = vpop.f32.mrb[0].mxu0
        %2071 = vmatprep.mubr.f32.mxu0 0.0
        %2072 = vmatmul.mubr.f32.gmra.mrb[0].mxu0 %v1940
        %v2073 = vpop.f32.mrb[0].mxu0
        %v2074 = vadd.f32 %v1907, %v2073
        %v2075 = vpop.f32.mrb[0].mxu0
        %2076 = vmatprep.mubr.f32.mxu0 0.0
        %2077 = vmatmul.mubr.f32.gmra.mrb[0].mxu0 %v1943
        %v2078 = vpop.f32.mrb[0].mxu0
        %v2079 = vadd.f32 %v1907, %v2078
        %v2080 = vpop.f32.mrb[0].mxu0
        %2081 = vmatprep.mubr.f32.mxu0 0.0
        %2082 = vmatmul.mubr.f32.gmra.mrb[0].mxu0 %v1946
        %v2083 = vpop.f32.mrb[0].mxu0
        %v2084 = vadd.f32 %v1907, %v2083
        %v2085 = vpop.f32.mrb[0].mxu0
        %2086 = vmatprep.mubr.f32.mxu0 0.0
        %2087 = vmatmul.mubr.f32.gmra.mrb[0].mxu0 %v1949
        %v2088 = vpop.f32.mrb[0].mxu0
        %v2089 = vadd.f32 %v1907, %v2088
        %v2090 = vpop.f32.mrb[0].mxu0
        %2091 = vmatprep.mubr.f32.mxu0 0.0
        %2092 = vmatmul.mubr.f32.gmra.mrb[0].mxu0 %v1952
        %v2093 = vpop.f32.mrb[0].mxu0
        %v2094 = vadd.f32 %v1907, %v2093
        %v2095 = vpop.f32.mrb[0].mxu0
        %2096 = vmatprep.mubr.f32.mxu0 0.0
        %2097 = vmatmul.mubr.f32.gmra.mrb[0].mxu0 %v1955
        %v2098 = vpop.f32.mrb[0].mxu0
        %v2099 = vadd.f32 %v1907, %v2098
        %v2100 = vpop.f32.mrb[0].mxu0
        %2101 = vdwg.mxu0
        %v2102 = vld [vmem:[#allocation4] sm:$0xff]
        %v2103 = vld [vmem:[#allocation4 + $0x8] sm:$0xff]
        %v2104 = vld [vmem:[#allocation4 + $0x10] sm:$0xff]
        %v2105 = vld [vmem:[#allocation4 + $0x18] sm:$0xff]
        %2106 = vmatprep.subr.mxu0 0.0
        %2107 = vmatpush1.msra.mxu0 %v2024
        %2108 = vmatprep.subr.mxu0 0.0
        %2109 = vmatpush1.msra.mxu0 %v2029
        %2110 = vmatprep.subr.mxu0 0.0
        %2111 = vmatpush1.msra.mxu0 %v2034
        %2112 = vmatprep.subr.mxu0 0.0
        %2113 = vmatpush1.msra.mxu0 %v2039
        %2114 = vmatprep.subr.mxu0 0.0
        %2115 = vmatpush1.msra.mxu0 %v2044
        %2116 = vmatprep.subr.mxu0 0.0
        %2117 = vmatpush1.msra.mxu0 %v2049
        %2118 = vmatprep.subr.mxu0 0.0
        %2119 = vmatpush1.msra.mxu0 %v2054
        %2120 = vmatprep.subr.mxu0 0.0
        %2121 = vmatpush1.msra.mxu0 %v2059
        %2122 = vmatprep.subr.mxu0 0.0
        %2123 = vmatpush1.msra.mxu0 %v2064
        %2124 = vmatprep.subr.mxu0 0.0
        %2125 = vmatpush1.msra.mxu0 %v2069
        %2126 = vmatprep.subr.mxu0 0.0
        %2127 = vmatpush1.msra.mxu0 %v2074
        %2128 = vmatprep.subr.mxu0 0.0
        %2129 = vmatpush1.msra.mxu0 %v2079
        %2130 = vmatprep.subr.mxu0 0.0
        %2131 = vmatpush1.msra.mxu0 %v2084
        %2132 = vmatprep.subr.mxu0 0.0
        %2133 = vmatpush1.msra.mxu0 %v2089
        %2134 = vmatprep.subr.mxu0 0.0
        %2135 = vmatpush1.msra.mxu0 %v2094
        %2136 = vmatprep.subr.mxu0 0.0
        %2137 = vmatpush1.msra.mxu0 %v2099
        %2138 = vmatprep.subr.mxu0 0.0
        %2139 = vmatpush1.msra.mxu0 0.0
        %2140 = vmatprep.subr.mxu0 0.0
        %2141 = vmatpush1.msra.mxu0 0.0
        %2142 = vmatprep.subr.mxu0 0.0
        %2143 = vmatpush1.msra.mxu0 0.0
        %2144 = vmatprep.subr.mxu0 0.0
        %2145 = vmatpush1.msra.mxu0 0.0
        %2146 = vmatprep.subr.mxu0 0.0
        %2147 = vmatpush1.msra.mxu0 0.0
        %2148 = vmatprep.subr.mxu0 0.0
        %2149 = vmatpush1.msra.mxu0 0.0
        %2150 = vmatprep.subr.mxu0 0.0
        %2151 = vmatpush1.msra.mxu0 0.0
        %2152 = vmatprep.subr.mxu0 0.0
        %2153 = vmatpush1.msra.mxu0 0.0
        %2154 = vmatprep.subr.mxu0 0.0
        %2155 = vmatpush1.msra.mxu0 0.0
        %2156 = vmatprep.subr.mxu0 0.0
        %2157 = vmatpush1.msra.mxu0 0.0
        %2158 = vmatprep.subr.mxu0 0.0
        %2159 = vmatpush1.msra.mxu0 0.0
        %2160 = vmatprep.subr.mxu0 0.0
        %2161 = vmatpush1.msra.mxu0 0.0
        %2162 = vmatprep.subr.mxu0 0.0
        %2163 = vmatpush1.msra.mxu0 0.0
        %2164 = vmatprep.subr.mxu0 0.0
        %2165 = vmatpush1.msra.mxu0 0.0
        %2166 = vmatprep.subr.mxu0 0.0
        %2167 = vmatpush1.msra.mxu0 0.0
        %2168 = vmatprep.subr.mxu0 0.0
        %2169 = vmatpush1.msra.mxu0 0.0
        %2170 = vmatprep.mubr.f32.mxu0 0.0
        %2171 = vmatmul.mubr.f32.gmra.mrb[0].mxu0 %v1211
        %v2172 = vpop.f32.mrb[0].mxu0
        %v2173 = vadd.f32 0.0, %v2172
        %v2174 = vpop.f32.mrb[0].mxu0
        %2175 = vmatprep.mubr.f32.mxu0 0.0
        %2176 = vmatmul.mubr.f32.gmra.mrb[0].mxu0 %v1212
        %v2177 = vpop.f32.mrb[0].mxu0
        %v2178 = vadd.f32 0.0, %v2177
        %v2179 = vpop.f32.mrb[0].mxu0
        %2180 = vmatprep.mubr.f32.mxu0 0.0
        %2181 = vmatmul.mubr.f32.gmra.mrb[0].mxu0 %v1213
        %v2182 = vpop.f32.mrb[0].mxu0
        %v2183 = vadd.f32 0.0, %v2182
        %v2184 = vpop.f32.mrb[0].mxu0
        %2185 = vmatprep.mubr.f32.mxu0 0.0
        %2186 = vmatmul.mubr.f32.gmra.mrb[0].mxu0 %v1214
        %v2187 = vpop.f32.mrb[0].mxu0
        %v2188 = vadd.f32 0.0, %v2187
        %v2189 = vpop.f32.mrb[0].mxu0
        %2190 = vdwg.mxu0
        %v2191 = vadd.f32 %v2102, %v2173
        %v2192 = vadd.f32 %v2103, %v2178
        %v2193 = vadd.f32 %v2104, %v2183
        %v2194 = vadd.f32 %v2105, %v2188
        %vm2195 = vcmask 7168
        %2196 = vst.msk [vmem:[#allocation4] sm:$0xff] %vm2195, %v2191
        %2197 = vst.msk [vmem:[#allocation4 + $0x8] sm:$0xff] %vm2195, %v2192
        %2198 = vst.msk [vmem:[#allocation4 + $0x10] sm:$0xff] %vm2195, %v2193
        %2199 = vst.msk [vmem:[#allocation4 + $0x18] sm:$0xff] %vm2195, %v2194
        %2200 = vxpose.xlu0.b32.start [1/16] %v2024, 128
        %2201 = vxpose.xlu0.b32.cont [2/16] %v2029, 128
        %2202 = vxpose.xlu0.b32.cont [3/16] %v2034, 128
        %2203 = vxpose.xlu0.b32.cont [4/16] %v2039, 128
        %2204 = vxpose.xlu0.b32.cont [5/16] %v2044, 128
        %2205 = vxpose.xlu0.b32.cont [6/16] %v2049, 128
        %2206 = vxpose.xlu0.b32.cont [7/16] %v2054, 128
        %2207 = vxpose.xlu0.b32.cont [8/16] %v2059, 128
        %2208 = vxpose.xlu0.b32.cont [9/16] %v2064, 128
        %2209 = vxpose.xlu0.b32.cont [10/16] %v2069, 128
        %2210 = vxpose.xlu0.b32.cont [11/16] %v2074, 128
        %2211 = vxpose.xlu0.b32.cont [12/16] %v2079, 128
        %2212 = vxpose.xlu0.b32.cont [13/16] %v2084, 128
        %2213 = vxpose.xlu0.b32.cont [14/16] %v2089, 128
        %2214 = vxpose.xlu0.b32.cont [15/16] %v2094, 128
        %2215 = vxpose.xlu0.b32.end [16/16] %v2099, 128
        %v2216 = vpop.trf.xlu0
        %v2217 = vpop.trf.xlu0
        %v2218 = vpop.trf.xlu0
        %v2219 = vpop.trf.xlu0
        %v2220 = vpop.trf.xlu0
        %v2221 = vpop.trf.xlu0
        %v2222 = vpop.trf.xlu0
        %v2223 = vpop.trf.xlu0
        %v2224 = vpop.trf.xlu0
        %v2225 = vpop.trf.xlu0
        %v2226 = vpop.trf.xlu0
        %v2227 = vpop.trf.xlu0
        %v2228 = vpop.trf.xlu0
        %v2229 = vpop.trf.xlu0
        %v2230 = vpop.trf.xlu0
        %v2231 = vpop.trf.xlu0
        %v2232 = vld [vmem:[%s744] sm:$0x1]
        %v2233 = vld [vmem:[%s747] sm:$0x1]
        %vm2234 = vcmp.eq.s32.totalorder %v2232, %v2233
        %vm2235 = vcmp.ge.s32.totalorder %v2232, %v2233
        %vm2236 = vcmp.le.s32.totalorder %v2232, %v2233
        %v2237 = vmul.f32 %v2216, 4000.0
        %v2238 = vand.u32 2147483647, %v2237
        %v2239 = vsub.f32 0.0, %v2238
        %v2240 = vadd.f32 %v2239, 2.0
        %v2241 = vmul.f32 %v2240, 1.442695
        %v2242 = vpow.pop %v2241
        %v2243 = vadd.f32 %v2242, 1.0
        %v2244 = vmul.f32 %v2216, %v2243
        %v2245 = vsel %vm2234, %v2244, %v2216
        %v2246 = vsel %vm2235, %v2245, 0.0
        %2247 = vst [vmem:[%s750] sm:$0x1] %v2246
        %v2248 = vsel %vm2234, 1.0, %v2216
        %v2249 = vsel %vm2236, %v2248, 0.0
        %2250 = vst [vmem:[%s753] sm:$0x1] %v2249
        %p2251 = scmp.eq.s32.totalorder %s36, 2
        // Predicated region
        $region135: #{learned_lu_forward.3} parent=125 // pred_check
          %p2252 = pneg %p2251
        $region136: #{learned_lu_forward.3} parent=125 // pred_check_branch
          %2254 = sbr.rel (%p2252) target = $region138
        $region137: #{learned_lu_forward.3} parent=125 // pred_region
          %v2255 = vld [vmem:[#allocation4] sm:$0xff]
          %v2256 = vld [vmem:[#allocation4 + $0x8] sm:$0xff]
          %v2257 = vld [vmem:[#allocation4 + $0x10] sm:$0xff]
          %v2258 = vld [vmem:[#allocation4 + $0x18] sm:$0xff]
          %v2259 = vld [vmem:[%s1] sm:$0xff]
          %v2260 = vld [vmem:[%s1 + $0x8] sm:$0xff]
          %v2261 = vld [vmem:[%s1 + $0x10] sm:$0xff]
          %v2262 = vld [vmem:[%s1 + $0x18] sm:$0xff]
          %v2263 = vmul.f32 %v2255, %v2259
          %v2264 = vmul.f32 %v2256, %v2260
          %v2265 = vmul.f32 %v2257, %v2261
          %v2266 = vmul.f32 %v2258, %v2262
          %v2267 = vld [vmem:[%s0] sm:$0xff]
          %v2268 = vld [vmem:[%s0 + $0x8] sm:$0xff]
          %v2269 = vld [vmem:[%s0 + $0x10] sm:$0xff]
          %v2270 = vld [vmem:[%s0 + $0x18] sm:$0xff]
          %v2271 = vld [vmem:[%s13] sm:$0x1]
          %v2272 = vld [vmem:[%s14] sm:$0x1]
          %v2274 = vsel %vm2195, %v2263, 0
          %v2277 = vsel %vm2195, %v2264, 0
          %v2280 = vsel %vm2195, %v2265, 0
          %v2283 = vsel %vm2195, %v2266, 0
          %vm2285 = vcmask 1040384
          %v2287 = vsel %vm2285, %v2272, 0
          %2289 = vmatprep.subr.mxu0 0.0
          %2290 = vmatpush1.msra.mxu0 %v2287
          %2291 = vmatprep.subr.mxu0 0.0
          %2292 = vmatpush1.msra.mxu0 0.0
          %2293 = vmatprep.subr.mxu0 0.0
          %2294 = vmatpush1.msra.mxu0 0.0
          %2295 = vmatprep.subr.mxu0 0.0
          %2296 = vmatpush1.msra.mxu0 0.0
          %2297 = vmatprep.subr.mxu0 0.0
          %2298 = vmatpush1.msra.mxu0 0.0
          %2299 = vmatprep.subr.mxu0 0.0
          %2300 = vmatpush1.msra.mxu0 0.0
          %2301 = vmatprep.subr.mxu0 0.0
          %2302 = vmatpush1.msra.mxu0 0.0
          %2303 = vmatprep.subr.mxu0 0.0
          %2304 = vmatpush1.msra.mxu0 0.0
          %2305 = vmatprep.subr.mxu0 0.0
          %2306 = vmatpush1.msra.mxu0 0.0
          %2307 = vmatprep.subr.mxu0 0.0
          %2308 = vmatpush1.msra.mxu0 0.0
          %2309 = vmatprep.subr.mxu0 0.0
          %2310 = vmatpush1.msra.mxu0 0.0
          %2311 = vmatprep.subr.mxu0 0.0
          %2312 = vmatpush1.msra.mxu0 0.0
          %2313 = vmatprep.subr.mxu0 0.0
          %2314 = vmatpush1.msra.mxu0 0.0
          %2315 = vmatprep.subr.mxu0 0.0
          %2316 = vmatpush1.msra.mxu0 0.0
          %2317 = vmatprep.subr.mxu0 0.0
          %2318 = vmatpush1.msra.mxu0 0.0
          %2319 = vmatprep.subr.mxu0 0.0
          %2320 = vmatpush1.msra.mxu0 0.0
          %2321 = vmatprep.subr.mxu0 0.0
          %2322 = vmatpush1.msra.mxu0 0.0
          %2323 = vmatprep.subr.mxu0 0.0
          %2324 = vmatpush1.msra.mxu0 0.0
          %2325 = vmatprep.subr.mxu0 0.0
          %2326 = vmatpush1.msra.mxu0 0.0
          %2327 = vmatprep.subr.mxu0 0.0
          %2328 = vmatpush1.msra.mxu0 0.0
          %2329 = vmatprep.subr.mxu0 0.0
          %2330 = vmatpush1.msra.mxu0 0.0
          %2331 = vmatprep.subr.mxu0 0.0
          %2332 = vmatpush1.msra.mxu0 0.0
          %2333 = vmatprep.subr.mxu0 0.0
          %2334 = vmatpush1.msra.mxu0 0.0
          %2335 = vmatprep.subr.mxu0 0.0
          %2336 = vmatpush1.msra.mxu0 0.0
          %2337 = vmatprep.subr.mxu0 0.0
          %2338 = vmatpush1.msra.mxu0 0.0
          %2339 = vmatprep.subr.mxu0 0.0
          %2340 = vmatpush1.msra.mxu0 0.0
          %2341 = vmatprep.subr.mxu0 0.0
          %2342 = vmatpush1.msra.mxu0 0.0
          %2343 = vmatprep.subr.mxu0 0.0
          %2344 = vmatpush1.msra.mxu0 0.0
          %2345 = vmatprep.subr.mxu0 0.0
          %2346 = vmatpush1.msra.mxu0 0.0
          %2347 = vmatprep.subr.mxu0 0.0
          %2348 = vmatpush1.msra.mxu0 0.0
          %2349 = vmatprep.subr.mxu0 0.0
          %2350 = vmatpush1.msra.mxu0 0.0
          %2351 = vmatprep.subr.mxu0 0.0
          %2352 = vmatpush1.msra.mxu0 0.0
          %2353 = vmatprep.mubr.f32.mxu0 0.0
          %2354 = vmatmul.mubr.f32.gmra.mrb[0].mxu0 %v2274
          %v2355 = vpop.f32.mrb[0].mxu0
          %v2356 = vadd.f32 0.0, %v2355
          %v2357 = vpop.f32.mrb[0].mxu0
          %2358 = vmatprep.mubr.f32.mxu0 0.0
          %2359 = vmatmul.mubr.f32.gmra.mrb[0].mxu0 %v2277
          %v2360 = vpop.f32.mrb[0].mxu0
          %v2361 = vadd.f32 0.0, %v2360
          %v2362 = vpop.f32.mrb[0].mxu0
          %2363 = vmatprep.mubr.f32.mxu0 0.0
          %2364 = vmatmul.mubr.f32.gmra.mrb[0].mxu0 %v2280
          %v2365 = vpop.f32.mrb[0].mxu0
          %v2366 = vadd.f32 0.0, %v2365
          %v2367 = vpop.f32.mrb[0].mxu0
          %2368 = vmatprep.mubr.f32.mxu0 0.0
          %2369 = vmatmul.mubr.f32.gmra.mrb[0].mxu0 %v2283
          %v2370 = vpop.f32.mrb[0].mxu0
          %v2371 = vadd.f32 0.0, %v2370
          %v2372 = vpop.f32.mrb[0].mxu0
          %2373 = vdwg.mxu0
          %v2375 = vsel %vm2195, %v2267, 0
          %v2378 = vsel %vm2195, %v2268, 0
          %v2381 = vsel %vm2195, %v2269, 0
          %v2384 = vsel %vm2195, %v2270, 0
          %v2387 = vsel %vm2285, %v2271, 0
          %2389 = vmatprep.subr.mxu0 0.0
          %2390 = vmatpush1.msra.mxu0 %v2387
          %2391 = vmatprep.subr.mxu0 0.0
          %2392 = vmatpush1.msra.mxu0 0.0
          %2393 = vmatprep.subr.mxu0 0.0
          %2394 = vmatpush1.msra.mxu0 0.0
          %2395 = vmatprep.subr.mxu0 0.0
          %2396 = vmatpush1.msra.mxu0 0.0
          %2397 = vmatprep.subr.mxu0 0.0
          %2398 = vmatpush1.msra.mxu0 0.0
          %2399 = vmatprep.subr.mxu0 0.0
          %2400 = vmatpush1.msra.mxu0 0.0
          %2401 = vmatprep.subr.mxu0 0.0
          %2402 = vmatpush1.msra.mxu0 0.0
          %2403 = vmatprep.subr.mxu0 0.0
          %2404 = vmatpush1.msra.mxu0 0.0
          %2405 = vmatprep.subr.mxu0 0.0
          %2406 = vmatpush1.msra.mxu0 0.0
          %2407 = vmatprep.subr.mxu0 0.0
          %2408 = vmatpush1.msra.mxu0 0.0
          %2409 = vmatprep.subr.mxu0 0.0
          %2410 = vmatpush1.msra.mxu0 0.0
          %2411 = vmatprep.subr.mxu0 0.0
          %2412 = vmatpush1.msra.mxu0 0.0
          %2413 = vmatprep.subr.mxu0 0.0
          %2414 = vmatpush1.msra.mxu0 0.0
          %2415 = vmatprep.subr.mxu0 0.0
          %2416 = vmatpush1.msra.mxu0 0.0
          %2417 = vmatprep.subr.mxu0 0.0
          %2418 = vmatpush1.msra.mxu0 0.0
          %2419 = vmatprep.subr.mxu0 0.0
          %2420 = vmatpush1.msra.mxu0 0.0
          %2421 = vmatprep.subr.mxu0 0.0
          %2422 = vmatpush1.msra.mxu0 0.0
          %2423 = vmatprep.subr.mxu0 0.0
          %2424 = vmatpush1.msra.mxu0 0.0
          %2425 = vmatprep.subr.mxu0 0.0
          %2426 = vmatpush1.msra.mxu0 0.0
          %2427 = vmatprep.subr.mxu0 0.0
          %2428 = vmatpush1.msra.mxu0 0.0
          %2429 = vmatprep.subr.mxu0 0.0
          %2430 = vmatpush1.msra.mxu0 0.0
          %2431 = vmatprep.subr.mxu0 0.0
          %2432 = vmatpush1.msra.mxu0 0.0
          %2433 = vmatprep.subr.mxu0 0.0
          %2434 = vmatpush1.msra.mxu0 0.0
          %2435 = vmatprep.subr.mxu0 0.0
          %2436 = vmatpush1.msra.mxu0 0.0
          %2437 = vmatprep.subr.mxu0 0.0
          %2438 = vmatpush1.msra.mxu0 0.0
          %2439 = vmatprep.subr.mxu0 0.0
          %2440 = vmatpush1.msra.mxu0 0.0
          %2441 = vmatprep.subr.mxu0 0.0
          %2442 = vmatpush1.msra.mxu0 0.0
          %2443 = vmatprep.subr.mxu0 0.0
          %2444 = vmatpush1.msra.mxu0 0.0
          %2445 = vmatprep.subr.mxu0 0.0
          %2446 = vmatpush1.msra.mxu0 0.0
          %2447 = vmatprep.subr.mxu0 0.0
          %2448 = vmatpush1.msra.mxu0 0.0
          %2449 = vmatprep.subr.mxu0 0.0
          %2450 = vmatpush1.msra.mxu0 0.0
          %2451 = vmatprep.subr.mxu0 0.0
          %2452 = vmatpush1.msra.mxu0 0.0
          %2453 = vmatprep.mubr.f32.mxu0 0.0
          %2454 = vmatmul.mubr.f32.gmra.mrb[0].mxu0 %v2375
          %v2455 = vpop.f32.mrb[0].mxu0
          %v2456 = vadd.f32 %v2356, %v2455
          %v2457 = vpop.f32.mrb[0].mxu0
          %2458 = vmatprep.mubr.f32.mxu0 0.0
          %2459 = vmatmul.mubr.f32.gmra.mrb[0].mxu0 %v2378
          %v2460 = vpop.f32.mrb[0].mxu0
          %v2461 = vadd.f32 %v2361, %v2460
          %v2462 = vpop.f32.mrb[0].mxu0
          %2463 = vmatprep.mubr.f32.mxu0 0.0
          %2464 = vmatmul.mubr.f32.gmra.mrb[0].mxu0 %v2381
          %v2465 = vpop.f32.mrb[0].mxu0
          %v2466 = vadd.f32 %v2366, %v2465
          %v2467 = vpop.f32.mrb[0].mxu0
          %2468 = vmatprep.mubr.f32.mxu0 0.0
          %2469 = vmatmul.mubr.f32.gmra.mrb[0].mxu0 %v2384
          %v2470 = vpop.f32.mrb[0].mxu0
          %v2471 = vadd.f32 %v2371, %v2470
          %v2472 = vpop.f32.mrb[0].mxu0
          %2473 = vdwg.mxu0
          %v2474 = vld [vmem:[%s15] sm:$0x1]
          %v2476 = vlaneseq
          %v2477 = vshrl.u32 %v2476, 7
          %v2478 = vsub.s32 0, %v2477
          %v2479 = vrot.slane %v2474, %v2478
          %v2481 = vadd.f32 %v2456, %v2479
          %v2482 = vadd.f32 %v2461, %v2479
          %v2483 = vadd.f32 %v2466, %v2479
          %v2484 = vadd.f32 %v2471, %v2479
          %v2485 = vmax.f32 %v2481, 0.0
          %v2486 = vmax.f32 %v2482, 0.0
          %v2487 = vmax.f32 %v2483, 0.0
          %v2488 = vmax.f32 %v2484, 0.0
          %v2489 = vld [vmem:[%s16] sm:$0xff]
          %v2490 = vld [vmem:[%s16 + $0x8] sm:$0xff]
          %v2491 = vld [vmem:[%s16 + $0x10] sm:$0xff]
          %v2492 = vld [vmem:[%s16 + $0x18] sm:$0xff]
          %v2493 = vld [vmem:[#allocation6] sm:$0x1]
          %v2495 = vlaneseq
          %v2496 = vshrl.u32 %v2495, 7
          %v2497 = vsub.s32 0, %v2496
          %v2498 = vrot.slane %v2493, %v2497
          %v2501 = vsel %vm1259, %v2485, 0
          %v2504 = vsel %vm1259, %v2486, 0
          %v2507 = vsel %vm1259, %v2487, 0
          %v2510 = vsel %vm1259, %v2488, 0
          %2512 = vmatprep.subr.mxu0 0.0
          %2513 = vmatpush1.msra.mxu0 %v2489
          %2514 = vmatprep.subr.mxu0 0.0
          %2515 = vmatpush1.msra.mxu0 %v2490
          %2516 = vmatprep.subr.mxu0 0.0
          %2517 = vmatpush1.msra.mxu0 %v2491
          %2518 = vmatprep.subr.mxu0 0.0
          %2519 = vmatpush1.msra.mxu0 %v2492
          %2520 = vmatprep.subr.mxu0 0.0
          %2521 = vmatpush1.msra.mxu0 0.0
          %2522 = vmatprep.subr.mxu0 0.0
          %2523 = vmatpush1.msra.mxu0 0.0
          %2524 = vmatprep.subr.mxu0 0.0
          %2525 = vmatpush1.msra.mxu0 0.0
          %2526 = vmatprep.subr.mxu0 0.0
          %2527 = vmatpush1.msra.mxu0 0.0
          %2528 = vmatprep.subr.mxu0 0.0
          %2529 = vmatpush1.msra.mxu0 0.0
          %2530 = vmatprep.subr.mxu0 0.0
          %2531 = vmatpush1.msra.mxu0 0.0
          %2532 = vmatprep.subr.mxu0 0.0
          %2533 = vmatpush1.msra.mxu0 0.0
          %2534 = vmatprep.subr.mxu0 0.0
          %2535 = vmatpush1.msra.mxu0 0.0
          %2536 = vmatprep.subr.mxu0 0.0
          %2537 = vmatpush1.msra.mxu0 0.0
          %2538 = vmatprep.subr.mxu0 0.0
          %2539 = vmatpush1.msra.mxu0 0.0
          %2540 = vmatprep.subr.mxu0 0.0
          %2541 = vmatpush1.msra.mxu0 0.0
          %2542 = vmatprep.subr.mxu0 0.0
          %2543 = vmatpush1.msra.mxu0 0.0
          %2544 = vmatprep.subr.mxu0 0.0
          %2545 = vmatpush1.msra.mxu0 0.0
          %2546 = vmatprep.subr.mxu0 0.0
          %2547 = vmatpush1.msra.mxu0 0.0
          %2548 = vmatprep.subr.mxu0 0.0
          %2549 = vmatpush1.msra.mxu0 0.0
          %2550 = vmatprep.subr.mxu0 0.0
          %2551 = vmatpush1.msra.mxu0 0.0
          %2552 = vmatprep.subr.mxu0 0.0
          %2553 = vmatpush1.msra.mxu0 0.0
          %2554 = vmatprep.subr.mxu0 0.0
          %2555 = vmatpush1.msra.mxu0 0.0
          %2556 = vmatprep.subr.mxu0 0.0
          %2557 = vmatpush1.msra.mxu0 0.0
          %2558 = vmatprep.subr.mxu0 0.0
          %2559 = vmatpush1.msra.mxu0 0.0
          %2560 = vmatprep.subr.mxu0 0.0
          %2561 = vmatpush1.msra.mxu0 0.0
          %2562 = vmatprep.subr.mxu0 0.0
          %2563 = vmatpush1.msra.mxu0 0.0
          %2564 = vmatprep.subr.mxu0 0.0
          %2565 = vmatpush1.msra.mxu0 0.0
          %2566 = vmatprep.subr.mxu0 0.0
          %2567 = vmatpush1.msra.mxu0 0.0
          %2568 = vmatprep.subr.mxu0 0.0
          %2569 = vmatpush1.msra.mxu0 0.0
          %2570 = vmatprep.subr.mxu0 0.0
          %2571 = vmatpush1.msra.mxu0 0.0
          %2572 = vmatprep.subr.mxu0 0.0
          %2573 = vmatpush1.msra.mxu0 0.0
          %2574 = vmatprep.subr.mxu0 0.0
          %2575 = vmatpush1.msra.mxu0 0.0
          %2576 = vmatprep.mubr.f32.mxu0 0.0
          %2577 = vmatmul.mubr.f32.gmra.mrb[0].mxu0 %v2501
          %v2578 = vpop.f32.mrb[0].mxu0
          %v2579 = vadd.f32 %v2498, %v2578
          %v2580 = vpop.f32.mrb[0].mxu0
          %2581 = vmatprep.mubr.f32.mxu0 0.0
          %2582 = vmatmul.mubr.f32.gmra.mrb[0].mxu0 %v2504
          %v2583 = vpop.f32.mrb[0].mxu0
          %v2584 = vadd.f32 %v2498, %v2583
          %v2585 = vpop.f32.mrb[0].mxu0
          %2586 = vmatprep.mubr.f32.mxu0 0.0
          %2587 = vmatmul.mubr.f32.gmra.mrb[0].mxu0 %v2507
          %v2588 = vpop.f32.mrb[0].mxu0
          %v2589 = vadd.f32 %v2498, %v2588
          %v2590 = vpop.f32.mrb[0].mxu0
          %2591 = vmatprep.mubr.f32.mxu0 0.0
          %2592 = vmatmul.mubr.f32.gmra.mrb[0].mxu0 %v2510
          %v2593 = vpop.f32.mrb[0].mxu0
          %v2594 = vadd.f32 %v2498, %v2593
          %v2595 = vpop.f32.mrb[0].mxu0
          %2596 = vdwg.mxu0
          %2597 = vst.msk [vmem:[%s20] sm:$0xff] %vm2195, %v2579
          %2598 = vst.msk [vmem:[%s20 + $0x8] sm:$0xff] %vm2195, %v2584
          %2599 = vst.msk [vmem:[%s20 + $0x10] sm:$0xff] %vm2195, %v2589
          %2600 = vst.msk [vmem:[%s20 + $0x18] sm:$0xff] %vm2195, %v2594
        $region138: #{learned_lu_forward.3} parent=125 // pred_fallthru
          _
        %p2601 = scmp.lt.s32.totalorder %s36, 2
        %s2602 = scalar_select %p2601, %s36, 2
        %s2603 = scalar_lea.vmem %s18, %s2602
        %p2604 = scmp.lt.s32.totalorder %s36, 2
        %s2605 = scalar_select %p2604, %s36, 2
        %s2606 = scalar_lea.vmem %s19, %s2605
        // Predicated region
        $region139: #{learned_lu_forward.3} parent=125 // pred_check
          %p2607 = pneg %p457
        $region140: #{learned_lu_forward.3} parent=125 // pred_check_branch
          %2609 = sbr.rel (%p2607) target = $region142
        $region141: #{learned_lu_forward.3} parent=125 // pred_region
          _
        $region142: #{learned_lu_forward.3} parent=125 // pred_fallthru
          _
        // Predicated region
        $region143: #{learned_lu_forward.3} parent=125 // pred_check
          %p2610 = pneg %p483
        $region144: #{learned_lu_forward.3} parent=125 // pred_check_branch
          %2612 = sbr.rel (%p2610) target = $region146
        $region145: #{learned_lu_forward.3} parent=125 // pred_region
          _
        $region146: #{learned_lu_forward.3} parent=125 // pred_fallthru
          _
        // Predicated region
        $region147: #{learned_lu_forward.3} parent=125 // pred_check
          %p2613 = pneg %p504
        $region148: #{learned_lu_forward.3} parent=125 // pred_check_branch
          %2615 = sbr.rel (%p2613) target = $region150
        $region149: #{learned_lu_forward.3} parent=125 // pred_region
          _
        $region150: #{learned_lu_forward.3} parent=125 // pred_fallthru
          _
        // Predicated region
        $region151: #{learned_lu_forward.3} parent=125 // pred_check
          %p2616 = pneg %p504
        $region152: #{learned_lu_forward.3} parent=125 // pred_check_branch
          %2618 = sbr.rel (%p2616) target = $region154
        $region153: #{learned_lu_forward.3} parent=125 // pred_region
          _
        $region154: #{learned_lu_forward.3} parent=125 // pred_fallthru
          _
      $region126: #{learned_lu_forward.3} parent=5 // pred_fallthru
        _
      %p2619 = scmp.le.s32.totalorder 2, %s31
      // Predicated region
      $region155: #{learned_lu_forward.3} parent=5 // pred_check
        %p2620 = pneg %p2619
      $region156: #{learned_lu_forward.3} parent=5 // pred_check_branch
        %2622 = sbr.rel (%p2620) target = $region158
      $region157: #{learned_lu_forward.3} parent=5 // pred_region
        %s2623 = ssub.s32 %s31, 2
        // Predicated region
        $region159: #{learned_lu_forward.3} parent=157 // pred_check
          %p2624 = pneg %p463
        $region160: #{learned_lu_forward.3} parent=157 // pred_check_branch
          %2626 = sbr.rel (%p2624) target = $region162
        $region161: #{learned_lu_forward.3} parent=157 // pred_region
          %p2627 = scmp.lt.s32.totalorder %s37, 2
          %s2628 = scalar_select %p2627, %s37, 2
          %s2629 = scalar_lea.vmem %s18, %s2628
        $region162: #{learned_lu_forward.3} parent=157 // pred_fallthru
          _
        // Predicated region
        $region163: #{learned_lu_forward.3} parent=157 // pred_check
          %p2630 = pneg %p489
        $region164: #{learned_lu_forward.3} parent=157 // pred_check_branch
          %2632 = sbr.rel (%p2630) target = $region166
        $region165: #{learned_lu_forward.3} parent=157 // pred_region
          %p2633 = scmp.lt.s32.totalorder %s37, 2
          %s2634 = scalar_select %p2633, %s37, 2
          %s2635 = scalar_lea.vmem %s19, %s2634
        $region166: #{learned_lu_forward.3} parent=157 // pred_fallthru
          _
      $region158: #{learned_lu_forward.3} parent=5 // pred_fallthru
        _
    $region6: #{learned_lu_forward.3} parent=1 // loop_footer
      %s35 = sadd.s32 1, %s31
    $region7: #{learned_lu_forward.3} parent=1 // loop_footer_branch
      %30 = sbr.rel target = $region3
    $region8: #{learned_lu_forward.3} parent=1 // loop_exit
      _

// kernel: learned_lu_forward.2
$region0: #{learned_lu_forward.2}
  #allocation0 [shape = 'u32[]', space=smem, size = 0x4, offset = 0x4, fixed_abs, tag = 'smem constant byte address 0x4 - core index']
  #allocation1 [shape = 'u32[144,128]{1,0:T(1,128)}', space=vmem, size = 0x12000, scoped, tag = 'internal scratch']
  #allocation2 [shape = 'f32[32,32]{1,0:T(8,128)}', space=vmem, size = 0x4000, scoped, tag = 'scratch operand']
  #allocation3 [shape = 'f32[32,32]{1,0:T(8,128)}', space=vmem, size = 0x4000, scoped, tag = 'scratch operand']
  #allocation4 [shape = 'f32[32,32]{1,0:T(8,128)}', space=vmem, size = 0x4000, scoped, tag = 'scratch operand']
  #allocation5 [shape = 'f32[1,1]{1,0:T(1,128)S(1)}', space=vmem, size = 0x200, scoped, tag = 'scoped memory for learned_lu_forward.2']
  %s0 = inlined_call_operand.vmem [shape: f32[32,1], index: 0, kind: input, shape index: {}]
  %s1 = inlined_call_operand.vmem [shape: f32[32,1], index: 1, kind: input, shape index: {}]
  %s2 = inlined_call_operand.vmem [shape: s32[384,1], index: 2, kind: input, shape index: {}]
  %s3 = inlined_call_operand.vmem [shape: s32[384,1], index: 3, kind: input, shape index: {}]
  %s4 = inlined_call_operand.vmem [shape: s32[1,384], index: 4, kind: input, shape index: {}]
  %s5 = inlined_call_operand.vmem [shape: f32[384,2], index: 5, kind: input, shape index: {}]
  %s6 = inlined_call_operand.vmem [shape: f32[1,32], index: 6, kind: input, shape index: {}]
  %s7 = inlined_call_operand.vmem [shape: f32[1,32], index: 7, kind: input, shape index: {}]
  %s8 = inlined_call_operand.vmem [shape: f32[2,32], index: 8, kind: input, shape index: {}]
  %s9 = inlined_call_operand.vmem [shape: f32[1,32], index: 9, kind: input, shape index: {}]
  %s10 = inlined_call_operand.vmem [shape: f32[32,32], index: 10, kind: input, shape index: {}]
  %s11 = inlined_call_operand.vmem [shape: f32[1,32], index: 11, kind: input, shape index: {}]
  %s12 = inlined_call_operand.vmem [shape: f32[1,32], index: 12, kind: input, shape index: {}]
  %s13 = inlined_call_operand.vmem [shape: f32[32,32], index: 13, kind: input, shape index: {}]
  %s14 = inlined_call_operand.vmem [shape: f32[1,32], index: 14, kind: input, shape index: {}]
  %s15 = inlined_call_operand.vmem [shape: f32[32,1], index: 15, kind: input, shape index: {}]
  %s16 = inlined_call_operand.<no memory space> [shape: f32[1,1], index: 16, kind: input, shape index: {}]
  %s17 = inlined_call_operand.vmem [shape: f32[32,384], index: 17, kind: output, shape index: {0}]
  %s18 = inlined_call_operand.vmem [shape: f32[32,1], index: 18, kind: output, shape index: {1}]
  %19 = xla_tuple %s17, %s18
  %s20 = sld [smem:[#allocation0]]
  $region151: #{learned_lu_forward.2} parent=0
    _
  %s22 = ssub.s32 1, %s20
  %s23 = scalar_select 0, %s22, %s20
  %v24 = vstv %s16
  %25 = vst [vmem:[#allocation5] sm:$0x1] %v24
  $region1: #{learned_lu_forward.2} parent=0
    #allocation6 [shape = 'u8[32768]{0}', space=vmem, size = 0x8000, scoped, tag = 'output window, operand 0']
    loop: start=0, step=1, limit=5
    $region2: #{learned_lu_forward.2} parent=1 // loop_pre_header
      _
    $region3: #{learned_lu_forward.2} parent=1 // loop_header
      %s27 = sphi 0, %s31
      %p28 = scmp.ge.s32.totalorder %s27, 5
      %s35 = sphi 0, %s35
      %s37 = sphi 0, %s35
      %s38 = sphi 0, %s37
      %s52 = sphi 0, %s38
      %s56 = sphi 0, %s56
      %s58 = sphi 0, %s56
      %s59 = sphi 0, %s58
      %s73 = sphi 0, %s59
      %s79 = sphi 0, %s81
      %s82 = sphi 0, %s79
      %s83 = sphi 0, %s82
      %s99 = sphi 0, %s83
      %s105 = sphi 0, %s107
      %s108 = sphi 0, %s105
      %s109 = sphi 0, %s108
      %s125 = sphi 0, %s109
      %s131 = sphi 0, %s133
      %s134 = sphi 0, %s131
      %s135 = sphi 0, %s134
      %s151 = sphi 0, %s135
      %s157 = sphi 0, %s159
      %s160 = sphi 0, %s157
      %s161 = sphi 0, %s160
      %s177 = sphi 0, %s161
      %s181 = sphi 0, %s181
      %s183 = sphi 0, %s181
      %s184 = sphi 0, %s183
      %s198 = sphi 0, %s184
      %s202 = sphi 0, %s202
      %s204 = sphi 0, %s202
      %s205 = sphi 0, %s204
      %s219 = sphi 0, %s205
      %s223 = sphi 0, %s223
      %s225 = sphi 0, %s223
      %s226 = sphi 0, %s225
      %s240 = sphi 0, %s226
      %s244 = sphi 0, %s244
      %s246 = sphi 0, %s244
      %s247 = sphi 0, %s246
      %s261 = sphi 0, %s247
      %s265 = sphi 0, %s265
      %s267 = sphi 0, %s265
      %s268 = sphi 0, %s267
      %s282 = sphi 0, %s268
      %s286 = sphi 0, %s286
      %s288 = sphi 0, %s286
      %s289 = sphi 0, %s288
      %s303 = sphi 0, %s289
      %s307 = sphi 0, %s307
      %s309 = sphi 0, %s307
      %s310 = sphi 0, %s309
      %s324 = sphi 0, %s310
      %s328 = sphi 0, %s328
      %s330 = sphi 0, %s328
      %s331 = sphi 0, %s330
      %s345 = sphi 0, %s331
      %s349 = sphi 0, %s349
      %s351 = sphi 0, %s349
      %s352 = sphi 0, %s351
      %s366 = sphi 0, %s352
      %s370 = sphi 0, %s370
      %s372 = sphi 0, %s370
      %s373 = sphi 0, %s372
      %s387 = sphi 0, %s373
      %s391 = sphi 0, %s391
      %s393 = sphi 0, %s391
      %s394 = sphi 0, %s393
      %s408 = sphi 0, %s394
      %s414 = sphi 0, %s416
      %s417 = sphi 0, %s414
      %s418 = sphi 0, %s417
      %s434 = sphi 0, %s418
      %s438 = sphi 0, %s438
      %s440 = sphi 0, %s438
      %s441 = sphi 0, %s440
      %s455 = sphi 0, %s441
    $region4: #{learned_lu_forward.2} parent=1 // loop_header_branch
      %30 = sbr.rel (%p28) target = $region8
    $region5: #{learned_lu_forward.2} parent=1 // loop_body
      %s32 = ssub.s32 %s27, 1
      %s33 = ssub.s32 %s27, 2
      %s34 = sadd.s32 %s27, 1
      %s36 = sadd.s32 %s35, 1
      %p39 = scmp.eq.s32.totalorder %s27, 2
      %p40 = scmp.ne.s32.totalorder %s35, %s37
      %p41 = scmp.eq.s32.totalorder %s27, 0
      %p42 = por %p40, %p41
      %p43 = scmp.ne.s32.totalorder %s35, %s37
      %p44 = scmp.eq.s32.totalorder %s32, 2
      %p45 = por %p43, %p44
      %p46 = scmp.ne.s32.totalorder %s37, %s38
      %p47 = scmp.eq.s32.totalorder %s32, 0
      %p48 = por %p46, %p47
      %p49 = scmp.ne.s32.totalorder %s37, %s38
      %p50 = scmp.eq.s32.totalorder %s33, 2
      %p51 = por %p49, %p50
      %p53 = scmp.ne.s32.totalorder %s38, %s52
      %p54 = scmp.eq.s32.totalorder %s33, 0
      %p55 = por %p53, %p54
      %s57 = sadd.s32 %s56, 1
      %p60 = scmp.eq.s32.totalorder %s27, 2
      %p61 = scmp.ne.s32.totalorder %s56, %s58
      %p62 = scmp.eq.s32.totalorder %s27, 0
      %p63 = por %p61, %p62
      %p64 = scmp.ne.s32.totalorder %s56, %s58
      %p65 = scmp.eq.s32.totalorder %s32, 2
      %p66 = por %p64, %p65
      %p67 = scmp.ne.s32.totalorder %s58, %s59
      %p68 = scmp.eq.s32.totalorder %s32, 0
      %p69 = por %p67, %p68
      %p70 = scmp.ne.s32.totalorder %s58, %s59
      %p71 = scmp.eq.s32.totalorder %s33, 2
      %p72 = por %p70, %p71
      %p74 = scmp.ne.s32.totalorder %s59, %s73
      %p75 = scmp.eq.s32.totalorder %s33, 0
      %p76 = por %p74, %p75
      %s77 = ssub.s32 %s27, %s34
      %p78 = scmp.eq.s32.totalorder %s77, 0
      %s80 = sadd.s32 %s79, 1
      %s81 = scalar_select %p78, %s79, %s80
      %p84 = pneg %p78
      %p85 = scmp.eq.s32.totalorder %s27, 2
      %p86 = por %p84, %p85
      %p87 = scmp.ne.s32.totalorder %s79, %s82
      %p88 = scmp.eq.s32.totalorder %s27, 0
      %p89 = por %p87, %p88
      %p90 = scmp.ne.s32.totalorder %s79, %s82
      %p91 = scmp.eq.s32.totalorder %s32, 2
      %p92 = por %p90, %p91
      %p93 = scmp.ne.s32.totalorder %s82, %s83
      %p94 = scmp.eq.s32.totalorder %s32, 0
      %p95 = por %p93, %p94
      %p96 = scmp.ne.s32.totalorder %s82, %s83
      %p97 = scmp.eq.s32.totalorder %s33, 2
      %p98 = por %p96, %p97
      %p100 = scmp.ne.s32.totalorder %s83, %s99
      %p101 = scmp.eq.s32.totalorder %s33, 0
      %p102 = por %p100, %p101
      %s103 = ssub.s32 %s27, %s34
      %p104 = scmp.eq.s32.totalorder %s103, 0
      %s106 = sadd.s32 %s105, 1
      %s107 = scalar_select %p104, %s105, %s106
      %p110 = pneg %p104
      %p111 = scmp.eq.s32.totalorder %s27, 2
      %p112 = por %p110, %p111
      %p113 = scmp.ne.s32.totalorder %s105, %s108
      %p114 = scmp.eq.s32.totalorder %s27, 0
      %p115 = por %p113, %p114
      %p116 = scmp.ne.s32.totalorder %s105, %s108
      %p117 = scmp.eq.s32.totalorder %s32, 2
      %p118 = por %p116, %p117
      %p119 = scmp.ne.s32.totalorder %s108, %s109
      %p120 = scmp.eq.s32.totalorder %s32, 0
      %p121 = por %p119, %p120
      %p122 = scmp.ne.s32.totalorder %s108, %s109
      %p123 = scmp.eq.s32.totalorder %s33, 2
      %p124 = por %p122, %p123
      %p126 = scmp.ne.s32.totalorder %s109, %s125
      %p127 = scmp.eq.s32.totalorder %s33, 0
      %p128 = por %p126, %p127
      %s129 = ssub.s32 %s27, %s34
      %p130 = scmp.eq.s32.totalorder %s129, 0
      %s132 = sadd.s32 %s131, 1
      %s133 = scalar_select %p130, %s131, %s132
      %p136 = pneg %p130
      %p137 = scmp.eq.s32.totalorder %s27, 2
      %p138 = por %p136, %p137
      %p139 = scmp.ne.s32.totalorder %s131, %s134
      %p140 = scmp.eq.s32.totalorder %s27, 0
      %p141 = por %p139, %p140
      %p142 = scmp.ne.s32.totalorder %s131, %s134
      %p143 = scmp.eq.s32.totalorder %s32, 2
      %p144 = por %p142, %p143
      %p145 = scmp.ne.s32.totalorder %s134, %s135
      %p146 = scmp.eq.s32.totalorder %s32, 0
      %p147 = por %p145, %p146
      %p148 = scmp.ne.s32.totalorder %s134, %s135
      %p149 = scmp.eq.s32.totalorder %s33, 2
      %p150 = por %p148, %p149
      %p152 = scmp.ne.s32.totalorder %s135, %s151
      %p153 = scmp.eq.s32.totalorder %s33, 0
      %p154 = por %p152, %p153
      %s155 = ssub.s32 %s27, %s34
      %p156 = scmp.eq.s32.totalorder %s155, 0
      %s158 = sadd.s32 %s157, 1
      %s159 = scalar_select %p156, %s157, %s158
      %p162 = pneg %p156
      %p163 = scmp.eq.s32.totalorder %s27, 2
      %p164 = por %p162, %p163
      %p165 = scmp.ne.s32.totalorder %s157, %s160
      %p166 = scmp.eq.s32.totalorder %s27, 0
      %p167 = por %p165, %p166
      %p168 = scmp.ne.s32.totalorder %s157, %s160
      %p169 = scmp.eq.s32.totalorder %s32, 2
      %p170 = por %p168, %p169
      %p171 = scmp.ne.s32.totalorder %s160, %s161
      %p172 = scmp.eq.s32.totalorder %s32, 0
      %p173 = por %p171, %p172
      %p174 = scmp.ne.s32.totalorder %s160, %s161
      %p175 = scmp.eq.s32.totalorder %s33, 2
      %p176 = por %p174, %p175
      %p178 = scmp.ne.s32.totalorder %s161, %s177
      %p179 = scmp.eq.s32.totalorder %s33, 0
      %p180 = por %p178, %p179
      %s182 = sadd.s32 %s181, 1
      %p185 = scmp.eq.s32.totalorder %s27, 2
      %p186 = scmp.ne.s32.totalorder %s181, %s183
      %p187 = scmp.eq.s32.totalorder %s27, 0
      %p188 = por %p186, %p187
      %p189 = scmp.ne.s32.totalorder %s181, %s183
      %p190 = scmp.eq.s32.totalorder %s32, 2
      %p191 = por %p189, %p190
      %p192 = scmp.ne.s32.totalorder %s183, %s184
      %p193 = scmp.eq.s32.totalorder %s32, 0
      %p194 = por %p192, %p193
      %p195 = scmp.ne.s32.totalorder %s183, %s184
      %p196 = scmp.eq.s32.totalorder %s33, 2
      %p197 = por %p195, %p196
      %p199 = scmp.ne.s32.totalorder %s184, %s198
      %p200 = scmp.eq.s32.totalorder %s33, 0
      %p201 = por %p199, %p200
      %s203 = sadd.s32 %s202, 1
      %p206 = scmp.eq.s32.totalorder %s27, 2
      %p207 = scmp.ne.s32.totalorder %s202, %s204
      %p208 = scmp.eq.s32.totalorder %s27, 0
      %p209 = por %p207, %p208
      %p210 = scmp.ne.s32.totalorder %s202, %s204
      %p211 = scmp.eq.s32.totalorder %s32, 2
      %p212 = por %p210, %p211
      %p213 = scmp.ne.s32.totalorder %s204, %s205
      %p214 = scmp.eq.s32.totalorder %s32, 0
      %p215 = por %p213, %p214
      %p216 = scmp.ne.s32.totalorder %s204, %s205
      %p217 = scmp.eq.s32.totalorder %s33, 2
      %p218 = por %p216, %p217
      %p220 = scmp.ne.s32.totalorder %s205, %s219
      %p221 = scmp.eq.s32.totalorder %s33, 0
      %p222 = por %p220, %p221
      %s224 = sadd.s32 %s223, 1
      %p227 = scmp.eq.s32.totalorder %s27, 2
      %p228 = scmp.ne.s32.totalorder %s223, %s225
      %p229 = scmp.eq.s32.totalorder %s27, 0
      %p230 = por %p228, %p229
      %p231 = scmp.ne.s32.totalorder %s223, %s225
      %p232 = scmp.eq.s32.totalorder %s32, 2
      %p233 = por %p231, %p232
      %p234 = scmp.ne.s32.totalorder %s225, %s226
      %p235 = scmp.eq.s32.totalorder %s32, 0
      %p236 = por %p234, %p235
      %p237 = scmp.ne.s32.totalorder %s225, %s226
      %p238 = scmp.eq.s32.totalorder %s33, 2
      %p239 = por %p237, %p238
      %p241 = scmp.ne.s32.totalorder %s226, %s240
      %p242 = scmp.eq.s32.totalorder %s33, 0
      %p243 = por %p241, %p242
      %s245 = sadd.s32 %s244, 1
      %p248 = scmp.eq.s32.totalorder %s27, 2
      %p249 = scmp.ne.s32.totalorder %s244, %s246
      %p250 = scmp.eq.s32.totalorder %s27, 0
      %p251 = por %p249, %p250
      %p252 = scmp.ne.s32.totalorder %s244, %s246
      %p253 = scmp.eq.s32.totalorder %s32, 2
      %p254 = por %p252, %p253
      %p255 = scmp.ne.s32.totalorder %s246, %s247
      %p256 = scmp.eq.s32.totalorder %s32, 0
      %p257 = por %p255, %p256
      %p258 = scmp.ne.s32.totalorder %s246, %s247
      %p259 = scmp.eq.s32.totalorder %s33, 2
      %p260 = por %p258, %p259
      %p262 = scmp.ne.s32.totalorder %s247, %s261
      %p263 = scmp.eq.s32.totalorder %s33, 0
      %p264 = por %p262, %p263
      %s266 = sadd.s32 %s265, 1
      %p269 = scmp.eq.s32.totalorder %s27, 2
      %p270 = scmp.ne.s32.totalorder %s265, %s267
      %p271 = scmp.eq.s32.totalorder %s27, 0
      %p272 = por %p270, %p271
      %p273 = scmp.ne.s32.totalorder %s265, %s267
      %p274 = scmp.eq.s32.totalorder %s32, 2
      %p275 = por %p273, %p274
      %p276 = scmp.ne.s32.totalorder %s267, %s268
      %p277 = scmp.eq.s32.totalorder %s32, 0
      %p278 = por %p276, %p277
      %p279 = scmp.ne.s32.totalorder %s267, %s268
      %p280 = scmp.eq.s32.totalorder %s33, 2
      %p281 = por %p279, %p280
      %p283 = scmp.ne.s32.totalorder %s268, %s282
      %p284 = scmp.eq.s32.totalorder %s33, 0
      %p285 = por %p283, %p284
      %s287 = sadd.s32 %s286, 1
      %p290 = scmp.eq.s32.totalorder %s27, 2
      %p291 = scmp.ne.s32.totalorder %s286, %s288
      %p292 = scmp.eq.s32.totalorder %s27, 0
      %p293 = por %p291, %p292
      %p294 = scmp.ne.s32.totalorder %s286, %s288
      %p295 = scmp.eq.s32.totalorder %s32, 2
      %p296 = por %p294, %p295
      %p297 = scmp.ne.s32.totalorder %s288, %s289
      %p298 = scmp.eq.s32.totalorder %s32, 0
      %p299 = por %p297, %p298
      %p300 = scmp.ne.s32.totalorder %s288, %s289
      %p301 = scmp.eq.s32.totalorder %s33, 2
      %p302 = por %p300, %p301
      %p304 = scmp.ne.s32.totalorder %s289, %s303
      %p305 = scmp.eq.s32.totalorder %s33, 0
      %p306 = por %p304, %p305
      %s308 = sadd.s32 %s307, 1
      %p311 = scmp.eq.s32.totalorder %s27, 2
      %p312 = scmp.ne.s32.totalorder %s307, %s309
      %p313 = scmp.eq.s32.totalorder %s27, 0
      %p314 = por %p312, %p313
      %p315 = scmp.ne.s32.totalorder %s307, %s309
      %p316 = scmp.eq.s32.totalorder %s32, 2
      %p317 = por %p315, %p316
      %p318 = scmp.ne.s32.totalorder %s309, %s310
      %p319 = scmp.eq.s32.totalorder %s32, 0
      %p320 = por %p318, %p319
      %p321 = scmp.ne.s32.totalorder %s309, %s310
      %p322 = scmp.eq.s32.totalorder %s33, 2
      %p323 = por %p321, %p322
      %p325 = scmp.ne.s32.totalorder %s310, %s324
      %p326 = scmp.eq.s32.totalorder %s33, 0
      %p327 = por %p325, %p326
      %s329 = sadd.s32 %s328, 1
      %p332 = scmp.eq.s32.totalorder %s27, 2
      %p333 = scmp.ne.s32.totalorder %s328, %s330
      %p334 = scmp.eq.s32.totalorder %s27, 0
      %p335 = por %p333, %p334
      %p336 = scmp.ne.s32.totalorder %s328, %s330
      %p337 = scmp.eq.s32.totalorder %s32, 2
      %p338 = por %p336, %p337
      %p339 = scmp.ne.s32.totalorder %s330, %s331
      %p340 = scmp.eq.s32.totalorder %s32, 0
      %p341 = por %p339, %p340
      %p342 = scmp.ne.s32.totalorder %s330, %s331
      %p343 = scmp.eq.s32.totalorder %s33, 2
      %p344 = por %p342, %p343
      %p346 = scmp.ne.s32.totalorder %s331, %s345
      %p347 = scmp.eq.s32.totalorder %s33, 0
      %p348 = por %p346, %p347
      %s350 = sadd.s32 %s349, 1
      %p353 = scmp.eq.s32.totalorder %s27, 2
      %p354 = scmp.ne.s32.totalorder %s349, %s351
      %p355 = scmp.eq.s32.totalorder %s27, 0
      %p356 = por %p354, %p355
      %p357 = scmp.ne.s32.totalorder %s349, %s351
      %p358 = scmp.eq.s32.totalorder %s32, 2
      %p359 = por %p357, %p358
      %p360 = scmp.ne.s32.totalorder %s351, %s352
      %p361 = scmp.eq.s32.totalorder %s32, 0
      %p362 = por %p360, %p361
      %p363 = scmp.ne.s32.totalorder %s351, %s352
      %p364 = scmp.eq.s32.totalorder %s33, 2
      %p365 = por %p363, %p364
      %p367 = scmp.ne.s32.totalorder %s352, %s366
      %p368 = scmp.eq.s32.totalorder %s33, 0
      %p369 = por %p367, %p368
      %s371 = sadd.s32 %s370, 1
      %p374 = scmp.eq.s32.totalorder %s27, 2
      %p375 = scmp.ne.s32.totalorder %s370, %s372
      %p376 = scmp.eq.s32.totalorder %s27, 0
      %p377 = por %p375, %p376
      %p378 = scmp.ne.s32.totalorder %s370, %s372
      %p379 = scmp.eq.s32.totalorder %s32, 2
      %p380 = por %p378, %p379
      %p381 = scmp.ne.s32.totalorder %s372, %s373
      %p382 = scmp.eq.s32.totalorder %s32, 0
      %p383 = por %p381, %p382
      %p384 = scmp.ne.s32.totalorder %s372, %s373
      %p385 = scmp.eq.s32.totalorder %s33, 2
      %p386 = por %p384, %p385
      %p388 = scmp.ne.s32.totalorder %s373, %s387
      %p389 = scmp.eq.s32.totalorder %s33, 0
      %p390 = por %p388, %p389
      %s392 = sadd.s32 %s391, 1
      %p395 = scmp.eq.s32.totalorder %s27, 2
      %p396 = scmp.ne.s32.totalorder %s391, %s393
      %p397 = scmp.eq.s32.totalorder %s27, 0
      %p398 = por %p396, %p397
      %p399 = scmp.ne.s32.totalorder %s391, %s393
      %p400 = scmp.eq.s32.totalorder %s32, 2
      %p401 = por %p399, %p400
      %p402 = scmp.ne.s32.totalorder %s393, %s394
      %p403 = scmp.eq.s32.totalorder %s32, 0
      %p404 = por %p402, %p403
      %p405 = scmp.ne.s32.totalorder %s393, %s394
      %p406 = scmp.eq.s32.totalorder %s33, 2
      %p407 = por %p405, %p406
      %p409 = scmp.ne.s32.totalorder %s394, %s408
      %p410 = scmp.eq.s32.totalorder %s33, 0
      %p411 = por %p409, %p410
      %s412 = ssub.s32 %s27, %s34
      %p413 = scmp.eq.s32.totalorder %s412, 0
      %s415 = sadd.s32 %s414, 1
      %s416 = scalar_select %p413, %s414, %s415
      %p419 = pneg %p413
      %p420 = scmp.eq.s32.totalorder %s27, 2
      %p421 = por %p419, %p420
      %p422 = scmp.ne.s32.totalorder %s414, %s417
      %p423 = scmp.eq.s32.totalorder %s27, 0
      %p424 = por %p422, %p423
      %p425 = scmp.ne.s32.totalorder %s414, %s417
      %p426 = scmp.eq.s32.totalorder %s32, 2
      %p427 = por %p425, %p426
      %p428 = scmp.ne.s32.totalorder %s417, %s418
      %p429 = scmp.eq.s32.totalorder %s32, 0
      %p430 = por %p428, %p429
      %p431 = scmp.ne.s32.totalorder %s417, %s418
      %p432 = scmp.eq.s32.totalorder %s33, 2
      %p433 = por %p431, %p432
      %p435 = scmp.ne.s32.totalorder %s418, %s434
      %p436 = scmp.eq.s32.totalorder %s33, 0
      %p437 = por %p435, %p436
      %s439 = sadd.s32 %s438, 1
      %p442 = scmp.eq.s32.totalorder %s27, 2
      %p443 = scmp.ne.s32.totalorder %s438, %s440
      %p444 = scmp.eq.s32.totalorder %s27, 0
      %p445 = por %p443, %p444
      %p446 = scmp.ne.s32.totalorder %s438, %s440
      %p447 = scmp.eq.s32.totalorder %s32, 2
      %p448 = por %p446, %p447
      %p449 = scmp.ne.s32.totalorder %s440, %s441
      %p450 = scmp.eq.s32.totalorder %s32, 0
      %p451 = por %p449, %p450
      %p452 = scmp.ne.s32.totalorder %s440, %s441
      %p453 = scmp.eq.s32.totalorder %s33, 2
      %p454 = por %p452, %p453
      %p456 = scmp.ne.s32.totalorder %s441, %s455
      %p457 = scmp.eq.s32.totalorder %s33, 0
      %p458 = por %p456, %p457
      %p459 = scmp.le.s32.totalorder 1, %s27
      %p460 = scmp.lt.s32.totalorder %s27, 4
      %p461 = pnand %p459, %p460
      %p462 = pneg %p461
      // Predicated region
      $region9: #{learned_lu_forward.2} parent=5 // pred_check
        _
      $region10: #{learned_lu_forward.2} parent=5 // pred_check_branch
        %464 = sbr.rel (%p461) target = $region12
      $region11: #{learned_lu_forward.2} parent=5 // pred_region
        %s465 = ssub.s32 %s27, 1
        // Predicated region
        $region13: #{learned_lu_forward.2} parent=11 // pred_check
          %p466 = pneg %p48
        $region14: #{learned_lu_forward.2} parent=11 // pred_check_branch
          %468 = sbr.rel (%p466) target = $region16
        $region15: #{learned_lu_forward.2} parent=11 // pred_region
          _
        $region16: #{learned_lu_forward.2} parent=11 // pred_fallthru
          _
        // Predicated region
        $region17: #{learned_lu_forward.2} parent=11 // pred_check
          %p469 = pneg %p69
        $region18: #{learned_lu_forward.2} parent=11 // pred_check_branch
          %471 = sbr.rel (%p469) target = $region20
        $region19: #{learned_lu_forward.2} parent=11 // pred_region
          _
        $region20: #{learned_lu_forward.2} parent=11 // pred_fallthru
          _
        // Predicated region
        $region21: #{learned_lu_forward.2} parent=11 // pred_check
          %p472 = pneg %p194
        $region22: #{learned_lu_forward.2} parent=11 // pred_check_branch
          %474 = sbr.rel (%p472) target = $region24
        $region23: #{learned_lu_forward.2} parent=11 // pred_region
          _
        $region24: #{learned_lu_forward.2} parent=11 // pred_fallthru
          _
        // Predicated region
        $region25: #{learned_lu_forward.2} parent=11 // pred_check
          %p475 = pneg %p215
        $region26: #{learned_lu_forward.2} parent=11 // pred_check_branch
          %477 = sbr.rel (%p475) target = $region28
        $region27: #{learned_lu_forward.2} parent=11 // pred_region
          _
        $region28: #{learned_lu_forward.2} parent=11 // pred_fallthru
          _
        // Predicated region
        $region29: #{learned_lu_forward.2} parent=11 // pred_check
          %p478 = pneg %p236
        $region30: #{learned_lu_forward.2} parent=11 // pred_check_branch
          %480 = sbr.rel (%p478) target = $region32
        $region31: #{learned_lu_forward.2} parent=11 // pred_region
          _
        $region32: #{learned_lu_forward.2} parent=11 // pred_fallthru
          _
        // Predicated region
        $region33: #{learned_lu_forward.2} parent=11 // pred_check
          %p481 = pneg %p257
        $region34: #{learned_lu_forward.2} parent=11 // pred_check_branch
          %483 = sbr.rel (%p481) target = $region36
        $region35: #{learned_lu_forward.2} parent=11 // pred_region
          _
        $region36: #{learned_lu_forward.2} parent=11 // pred_fallthru
          _
        // Predicated region
        $region37: #{learned_lu_forward.2} parent=11 // pred_check
          %p484 = pneg %p278
        $region38: #{learned_lu_forward.2} parent=11 // pred_check_branch
          %486 = sbr.rel (%p484) target = $region40
        $region39: #{learned_lu_forward.2} parent=11 // pred_region
          _
        $region40: #{learned_lu_forward.2} parent=11 // pred_fallthru
          _
        // Predicated region
        $region41: #{learned_lu_forward.2} parent=11 // pred_check
          %p487 = pneg %p299
        $region42: #{learned_lu_forward.2} parent=11 // pred_check_branch
          %489 = sbr.rel (%p487) target = $region44
        $region43: #{learned_lu_forward.2} parent=11 // pred_region
          _
        $region44: #{learned_lu_forward.2} parent=11 // pred_fallthru
          _
        // Predicated region
        $region45: #{learned_lu_forward.2} parent=11 // pred_check
          %p490 = pneg %p320
        $region46: #{learned_lu_forward.2} parent=11 // pred_check_branch
          %492 = sbr.rel (%p490) target = $region48
        $region47: #{learned_lu_forward.2} parent=11 // pred_region
          _
        $region48: #{learned_lu_forward.2} parent=11 // pred_fallthru
          _
        // Predicated region
        $region49: #{learned_lu_forward.2} parent=11 // pred_check
          %p493 = pneg %p341
        $region50: #{learned_lu_forward.2} parent=11 // pred_check_branch
          %495 = sbr.rel (%p493) target = $region52
        $region51: #{learned_lu_forward.2} parent=11 // pred_region
          _
        $region52: #{learned_lu_forward.2} parent=11 // pred_fallthru
          _
        // Predicated region
        $region53: #{learned_lu_forward.2} parent=11 // pred_check
          %p496 = pneg %p362
        $region54: #{learned_lu_forward.2} parent=11 // pred_check_branch
          %498 = sbr.rel (%p496) target = $region56
        $region55: #{learned_lu_forward.2} parent=11 // pred_region
          _
        $region56: #{learned_lu_forward.2} parent=11 // pred_fallthru
          _
        // Predicated region
        $region57: #{learned_lu_forward.2} parent=11 // pred_check
          %p499 = pneg %p383
        $region58: #{learned_lu_forward.2} parent=11 // pred_check_branch
          %501 = sbr.rel (%p499) target = $region60
        $region59: #{learned_lu_forward.2} parent=11 // pred_region
          _
        $region60: #{learned_lu_forward.2} parent=11 // pred_fallthru
          _
        // Predicated region
        $region61: #{learned_lu_forward.2} parent=11 // pred_check
          %p502 = pneg %p404
        $region62: #{learned_lu_forward.2} parent=11 // pred_check_branch
          %504 = sbr.rel (%p502) target = $region64
        $region63: #{learned_lu_forward.2} parent=11 // pred_region
          _
        $region64: #{learned_lu_forward.2} parent=11 // pred_fallthru
          _
      $region12: #{learned_lu_forward.2} parent=5 // pred_fallthru
        _
      %p505 = scmp.lt.s32.totalorder %s27, 3
      // Predicated region
      $region65: #{learned_lu_forward.2} parent=5 // pred_check
        %p506 = pneg %p505
      $region66: #{learned_lu_forward.2} parent=5 // pred_check_branch
        %508 = sbr.rel (%p506) target = $region68
      $region67: #{learned_lu_forward.2} parent=5 // pred_region
        // Predicated region
        $region69: #{learned_lu_forward.2} parent=67 // pred_check
          %p509 = pneg %p89
        $region70: #{learned_lu_forward.2} parent=67 // pred_check_branch
          %511 = sbr.rel (%p509) target = $region72
        $region71: #{learned_lu_forward.2} parent=67 // pred_region
          %s512 = smul.u32 16, %s27
          %p513 = scmp.lt.s32.totalorder %s512, 47
          %s514 = scalar_select %p513, %s512, 47
          %s515 = smul.addr %s514, 8
          %s516 = scalar_lea.vmem %s2, %s515
          %s517 = smul.u32 16, %s27
        $region72: #{learned_lu_forward.2} parent=67 // pred_fallthru
          _
        // Predicated region
        $region73: #{learned_lu_forward.2} parent=67 // pred_check
          %p518 = pneg %p115
        $region74: #{learned_lu_forward.2} parent=67 // pred_check_branch
          %520 = sbr.rel (%p518) target = $region76
        $region75: #{learned_lu_forward.2} parent=67 // pred_region
          %s521 = smul.u32 16, %s27
          %p522 = scmp.lt.s32.totalorder %s521, 47
          %s523 = scalar_select %p522, %s521, 47
          %s524 = smul.addr %s523, 8
          %s525 = scalar_lea.vmem %s3, %s524
          %s526 = smul.u32 16, %s27
        $region76: #{learned_lu_forward.2} parent=67 // pred_fallthru
          _
        // Predicated region
        $region77: #{learned_lu_forward.2} parent=67 // pred_check
          %p527 = pneg %p141
        $region78: #{learned_lu_forward.2} parent=67 // pred_check_branch
          %529 = sbr.rel (%p527) target = $region80
        $region79: #{learned_lu_forward.2} parent=67 // pred_region
          %p530 = scmp.lt.s32.totalorder %s27, 2
          %s531 = scalar_select %p530, %s27, 2
          %s532 = scalar_lea.vmem %s4, %s531
        $region80: #{learned_lu_forward.2} parent=67 // pred_fallthru
          _
        // Predicated region
        $region81: #{learned_lu_forward.2} parent=67 // pred_check
          %p533 = pneg %p167
        $region82: #{learned_lu_forward.2} parent=67 // pred_check_branch
          %535 = sbr.rel (%p533) target = $region84
        $region83: #{learned_lu_forward.2} parent=67 // pred_region
          %s536 = smul.u32 16, %s27
          %p537 = scmp.lt.s32.totalorder %s536, 47
          %s538 = scalar_select %p537, %s536, 47
          %s539 = smul.addr %s538, 8
          %s540 = scalar_lea.vmem %s5, %s539
          %s541 = smul.u32 16, %s27
        $region84: #{learned_lu_forward.2} parent=67 // pred_fallthru
          _
      $region68: #{learned_lu_forward.2} parent=5 // pred_fallthru
        _
      %p542 = scmp.le.s32.totalorder 1, %s27
      %p543 = scmp.lt.s32.totalorder %s27, 4
      %p544 = pnand %p542, %p543
      %p545 = pneg %p544
      // Predicated region
      $region85: #{learned_lu_forward.2} parent=5 // pred_check
        _
      $region86: #{learned_lu_forward.2} parent=5 // pred_check_branch
        %547 = sbr.rel (%p544) target = $region88
      $region87: #{learned_lu_forward.2} parent=5 // pred_region
        %s548 = ssub.s32 %s27, 1
        %p549 = pneg %p48
        %p550 = pneg %p45
        %p551 = pneg %p69
        %p552 = pneg %p66
        %s553 = smul.u32 16, %s32
        %p554 = scmp.lt.s32.totalorder %s553, 47
        %s555 = scalar_select %p554, %s553, 47
        %s556 = smul.addr %s555, 8
        %s557 = scalar_lea.vmem %s2, %s556
        %p558 = pneg %p95
        %p559 = pneg %p92
        %s560 = smul.u32 16, %s32
        %p561 = scmp.lt.s32.totalorder %s560, 47
        %s562 = scalar_select %p561, %s560, 47
        %s563 = smul.addr %s562, 8
        %s564 = scalar_lea.vmem %s3, %s563
        %p565 = pneg %p121
        %p566 = pneg %p118
        %p567 = scmp.lt.s32.totalorder %s32, 2
        %s568 = scalar_select %p567, %s32, 2
        %s569 = scalar_lea.vmem %s4, %s568
        %p570 = pneg %p147
        %p571 = pneg %p144
        %s572 = smul.u32 16, %s32
        %p573 = scmp.lt.s32.totalorder %s572, 47
        %s574 = scalar_select %p573, %s572, 47
        %s575 = smul.addr %s574, 8
        %s576 = scalar_lea.vmem %s5, %s575
        %p577 = pneg %p173
        %p578 = pneg %p170
        %p579 = pneg %p194
        %p580 = pneg %p191
        %p581 = pneg %p215
        %p582 = pneg %p212
        %p583 = pneg %p236
        %p584 = pneg %p233
        %p585 = pneg %p257
        %p586 = pneg %p254
        %p587 = pneg %p278
        %p588 = pneg %p275
        %p589 = pneg %p299
        %p590 = pneg %p296
        %p591 = pneg %p320
        %p592 = pneg %p317
        %p593 = pneg %p341
        %p594 = pneg %p338
        %p595 = pneg %p362
        %p596 = pneg %p359
        %p597 = pneg %p383
        %p598 = pneg %p380
        %p599 = pneg %p404
        %p600 = pneg %p401
        %p601 = pneg %p430
        %p602 = pneg %p427
        %s603 = sand.u32 %s417, 1
        %s604 = sand.u32 %s417, 1
        %s605 = smul.addr %s604, 32
        %s606 = scalar_lea.vmem [#allocation6], %s605
        %p607 = pneg %p451
        %p608 = pneg %p448
        %s609 = smul.u32 16, %s32
        %p610 = scmp.lt.s32.totalorder %s609, 47
        %s611 = scalar_select %p610, %s609, 47
        %s612 = smul.addr %s611, 8
        %s613 = scalar_lea.vmem %s2, %s612
        %s614 = smul.u32 16, %s32
        %s615 = smul.u32 16, %s32
        %p616 = scmp.lt.s32.totalorder %s615, 47
        %s617 = scalar_select %p616, %s615, 47
        %s618 = smul.addr %s617, 8
        %s619 = scalar_lea.vmem %s3, %s618
        %s620 = smul.u32 16, %s32
        %p621 = scmp.lt.s32.totalorder %s32, 2
        %s622 = scalar_select %p621, %s32, 2
        %s623 = scalar_lea.vmem %s4, %s622
        %s624 = smul.u32 16, %s32
        %p625 = scmp.lt.s32.totalorder %s624, 47
        %s626 = scalar_select %p625, %s624, 47
        %s627 = smul.addr %s626, 8
        %s628 = scalar_lea.vmem %s5, %s627
        %s629 = smul.u32 16, %s32
        %p630 = scmp.eq.s32.totalorder %s32, 0
        // Predicated region
        $region89: #{learned_lu_forward.2} parent=87 // pred_check
          %p631 = pneg %p630
        $region90: #{learned_lu_forward.2} parent=87 // pred_check_branch
          %633 = sbr.rel (%p631) target = $region92
        $region91: #{learned_lu_forward.2} parent=87 // pred_region
          %v634 = vld [vmem:[%s0] sm:$0xff]
          %v635 = vld [vmem:[%s0 + $0x8] sm:$0xff]
          %v636 = vld [vmem:[%s0 + $0x10] sm:$0xff]
          %v637 = vld [vmem:[%s0 + $0x18] sm:$0xff]
          %v638 = vld [vmem:[%s6] sm:$0x1]
          %vm639 = vcmask 7168
          %v641 = vsel %vm639, %v634, 0
          %v644 = vsel %vm639, %v635, 0
          %v647 = vsel %vm639, %v636, 0
          %v650 = vsel %vm639, %v637, 0
          %vm652 = vcmask 1040384
          %v654 = vsel %vm652, %v638, 0
          %656 = vmatprep.subr.mxu0 0.0
          %657 = vmatpush1.msra.mxu0 %v654
          %658 = vmatprep.subr.mxu0 0.0
          %659 = vmatpush1.msra.mxu0 0.0
          %660 = vmatprep.subr.mxu0 0.0
          %661 = vmatpush1.msra.mxu0 0.0
          %662 = vmatprep.subr.mxu0 0.0
          %663 = vmatpush1.msra.mxu0 0.0
          %664 = vmatprep.subr.mxu0 0.0
          %665 = vmatpush1.msra.mxu0 0.0
          %666 = vmatprep.subr.mxu0 0.0
          %667 = vmatpush1.msra.mxu0 0.0
          %668 = vmatprep.subr.mxu0 0.0
          %669 = vmatpush1.msra.mxu0 0.0
          %670 = vmatprep.subr.mxu0 0.0
          %671 = vmatpush1.msra.mxu0 0.0
          %672 = vmatprep.subr.mxu0 0.0
          %673 = vmatpush1.msra.mxu0 0.0
          %674 = vmatprep.subr.mxu0 0.0
          %675 = vmatpush1.msra.mxu0 0.0
          %676 = vmatprep.subr.mxu0 0.0
          %677 = vmatpush1.msra.mxu0 0.0
          %678 = vmatprep.subr.mxu0 0.0
          %679 = vmatpush1.msra.mxu0 0.0
          %680 = vmatprep.subr.mxu0 0.0
          %681 = vmatpush1.msra.mxu0 0.0
          %682 = vmatprep.subr.mxu0 0.0
          %683 = vmatpush1.msra.mxu0 0.0
          %684 = vmatprep.subr.mxu0 0.0
          %685 = vmatpush1.msra.mxu0 0.0
          %686 = vmatprep.subr.mxu0 0.0
          %687 = vmatpush1.msra.mxu0 0.0
          %688 = vmatprep.subr.mxu0 0.0
          %689 = vmatpush1.msra.mxu0 0.0
          %690 = vmatprep.subr.mxu0 0.0
          %691 = vmatpush1.msra.mxu0 0.0
          %692 = vmatprep.subr.mxu0 0.0
          %693 = vmatpush1.msra.mxu0 0.0
          %694 = vmatprep.subr.mxu0 0.0
          %695 = vmatpush1.msra.mxu0 0.0
          %696 = vmatprep.subr.mxu0 0.0
          %697 = vmatpush1.msra.mxu0 0.0
          %698 = vmatprep.subr.mxu0 0.0
          %699 = vmatpush1.msra.mxu0 0.0
          %700 = vmatprep.subr.mxu0 0.0
          %701 = vmatpush1.msra.mxu0 0.0
          %702 = vmatprep.subr.mxu0 0.0
          %703 = vmatpush1.msra.mxu0 0.0
          %704 = vmatprep.subr.mxu0 0.0
          %705 = vmatpush1.msra.mxu0 0.0
          %706 = vmatprep.subr.mxu0 0.0
          %707 = vmatpush1.msra.mxu0 0.0
          %708 = vmatprep.subr.mxu0 0.0
          %709 = vmatpush1.msra.mxu0 0.0
          %710 = vmatprep.subr.mxu0 0.0
          %711 = vmatpush1.msra.mxu0 0.0
          %712 = vmatprep.subr.mxu0 0.0
          %713 = vmatpush1.msra.mxu0 0.0
          %714 = vmatprep.subr.mxu0 0.0
          %715 = vmatpush1.msra.mxu0 0.0
          %716 = vmatprep.subr.mxu0 0.0
          %717 = vmatpush1.msra.mxu0 0.0
          %718 = vmatprep.subr.mxu0 0.0
          %719 = vmatpush1.msra.mxu0 0.0
          %720 = vmatprep.mubr.f32.mxu0 0.0
          %721 = vmatmul.mubr.f32.gmra.mrb[0].mxu0 %v641
          %v722 = vpop.f32.mrb[0].mxu0
          %v723 = vadd.f32 0.0, %v722
          %v724 = vpop.f32.mrb[0].mxu0
          %725 = vmatprep.mubr.f32.mxu0 0.0
          %726 = vmatmul.mubr.f32.gmra.mrb[0].mxu0 %v644
          %v727 = vpop.f32.mrb[0].mxu0
          %v728 = vadd.f32 0.0, %v727
          %v729 = vpop.f32.mrb[0].mxu0
          %730 = vmatprep.mubr.f32.mxu0 0.0
          %731 = vmatmul.mubr.f32.gmra.mrb[0].mxu0 %v647
          %v732 = vpop.f32.mrb[0].mxu0
          %v733 = vadd.f32 0.0, %v732
          %v734 = vpop.f32.mrb[0].mxu0
          %735 = vmatprep.mubr.f32.mxu0 0.0
          %736 = vmatmul.mubr.f32.gmra.mrb[0].mxu0 %v650
          %v737 = vpop.f32.mrb[0].mxu0
          %v738 = vadd.f32 0.0, %v737
          %v739 = vpop.f32.mrb[0].mxu0
          %740 = vdwg.mxu0
          %vm741 = vcmask 261120
          %742 = vst.msk [vmem:[#allocation2] sm:$0xff] %vm741, %v723
          %743 = vst.msk [vmem:[#allocation2 + $0x8] sm:$0xff] %vm741, %v728
          %744 = vst.msk [vmem:[#allocation2 + $0x10] sm:$0xff] %vm741, %v733
          %745 = vst.msk [vmem:[#allocation2 + $0x18] sm:$0xff] %vm741, %v738
          %v746 = vld [vmem:[%s7] sm:$0x1]
          %v748 = vsel %vm652, %v746, 0
          %750 = vmatprep.subr.mxu0 0.0
          %751 = vmatpush1.msra.mxu0 %v748
          %752 = vmatprep.subr.mxu0 0.0
          %753 = vmatpush1.msra.mxu0 0.0
          %754 = vmatprep.subr.mxu0 0.0
          %755 = vmatpush1.msra.mxu0 0.0
          %756 = vmatprep.subr.mxu0 0.0
          %757 = vmatpush1.msra.mxu0 0.0
          %758 = vmatprep.subr.mxu0 0.0
          %759 = vmatpush1.msra.mxu0 0.0
          %760 = vmatprep.subr.mxu0 0.0
          %761 = vmatpush1.msra.mxu0 0.0
          %762 = vmatprep.subr.mxu0 0.0
          %763 = vmatpush1.msra.mxu0 0.0
          %764 = vmatprep.subr.mxu0 0.0
          %765 = vmatpush1.msra.mxu0 0.0
          %766 = vmatprep.subr.mxu0 0.0
          %767 = vmatpush1.msra.mxu0 0.0
          %768 = vmatprep.subr.mxu0 0.0
          %769 = vmatpush1.msra.mxu0 0.0
          %770 = vmatprep.subr.mxu0 0.0
          %771 = vmatpush1.msra.mxu0 0.0
          %772 = vmatprep.subr.mxu0 0.0
          %773 = vmatpush1.msra.mxu0 0.0
          %774 = vmatprep.subr.mxu0 0.0
          %775 = vmatpush1.msra.mxu0 0.0
          %776 = vmatprep.subr.mxu0 0.0
          %777 = vmatpush1.msra.mxu0 0.0
          %778 = vmatprep.subr.mxu0 0.0
          %779 = vmatpush1.msra.mxu0 0.0
          %780 = vmatprep.subr.mxu0 0.0
          %781 = vmatpush1.msra.mxu0 0.0
          %782 = vmatprep.subr.mxu0 0.0
          %783 = vmatpush1.msra.mxu0 0.0
          %784 = vmatprep.subr.mxu0 0.0
          %785 = vmatpush1.msra.mxu0 0.0
          %786 = vmatprep.subr.mxu0 0.0
          %787 = vmatpush1.msra.mxu0 0.0
          %788 = vmatprep.subr.mxu0 0.0
          %789 = vmatpush1.msra.mxu0 0.0
          %790 = vmatprep.subr.mxu0 0.0
          %791 = vmatpush1.msra.mxu0 0.0
          %792 = vmatprep.subr.mxu0 0.0
          %793 = vmatpush1.msra.mxu0 0.0
          %794 = vmatprep.subr.mxu0 0.0
          %795 = vmatpush1.msra.mxu0 0.0
          %796 = vmatprep.subr.mxu0 0.0
          %797 = vmatpush1.msra.mxu0 0.0
          %798 = vmatprep.subr.mxu0 0.0
          %799 = vmatpush1.msra.mxu0 0.0
          %800 = vmatprep.subr.mxu0 0.0
          %801 = vmatpush1.msra.mxu0 0.0
          %802 = vmatprep.subr.mxu0 0.0
          %803 = vmatpush1.msra.mxu0 0.0
          %804 = vmatprep.subr.mxu0 0.0
          %805 = vmatpush1.msra.mxu0 0.0
          %806 = vmatprep.subr.mxu0 0.0
          %807 = vmatpush1.msra.mxu0 0.0
          %808 = vmatprep.subr.mxu0 0.0
          %809 = vmatpush1.msra.mxu0 0.0
          %810 = vmatprep.subr.mxu0 0.0
          %811 = vmatpush1.msra.mxu0 0.0
          %812 = vmatprep.subr.mxu0 0.0
          %813 = vmatpush1.msra.mxu0 0.0
          %814 = vmatprep.mubr.f32.mxu0 0.0
          %815 = vmatmul.mubr.f32.gmra.mrb[0].mxu0 %v641
          %v816 = vpop.f32.mrb[0].mxu0
          %v817 = vadd.f32 0.0, %v816
          %v818 = vpop.f32.mrb[0].mxu0
          %819 = vmatprep.mubr.f32.mxu0 0.0
          %820 = vmatmul.mubr.f32.gmra.mrb[0].mxu0 %v644
          %v821 = vpop.f32.mrb[0].mxu0
          %v822 = vadd.f32 0.0, %v821
          %v823 = vpop.f32.mrb[0].mxu0
          %824 = vmatprep.mubr.f32.mxu0 0.0
          %825 = vmatmul.mubr.f32.gmra.mrb[0].mxu0 %v647
          %v826 = vpop.f32.mrb[0].mxu0
          %v827 = vadd.f32 0.0, %v826
          %v828 = vpop.f32.mrb[0].mxu0
          %829 = vmatprep.mubr.f32.mxu0 0.0
          %830 = vmatmul.mubr.f32.gmra.mrb[0].mxu0 %v650
          %v831 = vpop.f32.mrb[0].mxu0
          %v832 = vadd.f32 0.0, %v831
          %v833 = vpop.f32.mrb[0].mxu0
          %834 = vdwg.mxu0
          %835 = vst.msk [vmem:[#allocation3] sm:$0xff] %vm741, %v817
          %836 = vst.msk [vmem:[#allocation3 + $0x8] sm:$0xff] %vm741, %v822
          %837 = vst.msk [vmem:[#allocation3 + $0x10] sm:$0xff] %vm741, %v827
          %838 = vst.msk [vmem:[#allocation3 + $0x18] sm:$0xff] %vm741, %v832
          %839 = vst.msk [vmem:[#allocation4] sm:$0xff] %vm741, 0.0
          %840 = vst.msk [vmem:[#allocation4 + $0x8] sm:$0xff] %vm741, 0.0
          %841 = vst.msk [vmem:[#allocation4 + $0x10] sm:$0xff] %vm741, 0.0
          %842 = vst.msk [vmem:[#allocation4 + $0x18] sm:$0xff] %vm741, 0.0
        $region92: #{learned_lu_forward.2} parent=87 // pred_fallthru
          _
        %v843 = vlaneseq
        %v844 = vand.u32 %v843, 127
        %v845 = vlaneseq
        %v846 = vshrl.u32 %v845, 7
        %v847 = vadd.s32 %v846, 8
        %v848 = vadd.s32 %v846, 16
        %v849 = vadd.s32 %v846, 24
        %v850 = vld [vmem:[%s613] sm:$0xff]
        %v851 = vld [vmem:[%s613 + $0x8] sm:$0xff]
        %v852 = vld [vmem:[%s613 + $0x10] sm:$0xff]
        %v853 = vld [vmem:[%s613 + $0x18] sm:$0xff]
        %v854 = vld [vmem:[%s613 + $0x20] sm:$0xff]
        %v855 = vld [vmem:[%s613 + $0x28] sm:$0xff]
        %v856 = vld [vmem:[%s613 + $0x30] sm:$0xff]
        %v857 = vld [vmem:[%s613 + $0x38] sm:$0xff]
        %v858 = vld [vmem:[%s613 + $0x40] sm:$0xff]
        %v859 = vld [vmem:[%s613 + $0x48] sm:$0xff]
        %v860 = vld [vmem:[%s613 + $0x50] sm:$0xff]
        %v861 = vld [vmem:[%s613 + $0x58] sm:$0xff]
        %v862 = vld [vmem:[%s613 + $0x60] sm:$0xff]
        %v863 = vld [vmem:[%s613 + $0x68] sm:$0xff]
        %v864 = vld [vmem:[%s613 + $0x70] sm:$0xff]
        %v865 = vld [vmem:[%s613 + $0x78] sm:$0xff]
        %866 = vset.pattern.permute.xlu0 0
        %867 = vperm.xlu0 %866, %v850
        %v868 = vpop.permute.xlu0 %867
        %869 = vset.pattern.permute.xlu0 0
        %870 = vperm.xlu0 %869, %v851
        %v871 = vpop.permute.xlu0 %870
        %872 = vset.pattern.permute.xlu0 0
        %873 = vperm.xlu0 %872, %v852
        %v874 = vpop.permute.xlu0 %873
        %875 = vset.pattern.permute.xlu0 0
        %876 = vperm.xlu0 %875, %v853
        %v877 = vpop.permute.xlu0 %876
        %878 = vset.pattern.permute.xlu0 0
        %879 = vperm.xlu0 %878, %v854
        %v880 = vpop.permute.xlu0 %879
        %881 = vset.pattern.permute.xlu0 0
        %882 = vperm.xlu0 %881, %v855
        %v883 = vpop.permute.xlu0 %882
        %884 = vset.pattern.permute.xlu0 0
        %885 = vperm.xlu0 %884, %v856
        %v886 = vpop.permute.xlu0 %885
        %887 = vset.pattern.permute.xlu0 0
        %888 = vperm.xlu0 %887, %v857
        %v889 = vpop.permute.xlu0 %888
        %890 = vset.pattern.permute.xlu0 0
        %891 = vperm.xlu0 %890, %v858
        %v892 = vpop.permute.xlu0 %891
        %893 = vset.pattern.permute.xlu0 0
        %894 = vperm.xlu0 %893, %v859
        %v895 = vpop.permute.xlu0 %894
        %896 = vset.pattern.permute.xlu0 0
        %897 = vperm.xlu0 %896, %v860
        %v898 = vpop.permute.xlu0 %897
        %899 = vset.pattern.permute.xlu0 0
        %900 = vperm.xlu0 %899, %v861
        %v901 = vpop.permute.xlu0 %900
        %902 = vset.pattern.permute.xlu0 0
        %903 = vperm.xlu0 %902, %v862
        %v904 = vpop.permute.xlu0 %903
        %905 = vset.pattern.permute.xlu0 0
        %906 = vperm.xlu0 %905, %v863
        %v907 = vpop.permute.xlu0 %906
        %908 = vset.pattern.permute.xlu0 0
        %909 = vperm.xlu0 %908, %v864
        %v910 = vpop.permute.xlu0 %909
        %911 = vset.pattern.permute.xlu0 0
        %912 = vperm.xlu0 %911, %v865
        %v913 = vpop.permute.xlu0 %912
        %vm914 = vcmp.eq.s32.totalorder %v844, %v868
        %vm915 = vcmp.eq.s32.totalorder %v844, %v871
        %vm916 = vcmp.eq.s32.totalorder %v844, %v874
        %vm917 = vcmp.eq.s32.totalorder %v844, %v877
        %vm918 = vcmp.eq.s32.totalorder %v844, %v880
        %vm919 = vcmp.eq.s32.totalorder %v844, %v883
        %vm920 = vcmp.eq.s32.totalorder %v844, %v886
        %vm921 = vcmp.eq.s32.totalorder %v844, %v889
        %vm922 = vcmp.eq.s32.totalorder %v844, %v892
        %vm923 = vcmp.eq.s32.totalorder %v844, %v895
        %vm924 = vcmp.eq.s32.totalorder %v844, %v898
        %vm925 = vcmp.eq.s32.totalorder %v844, %v901
        %vm926 = vcmp.eq.s32.totalorder %v844, %v904
        %vm927 = vcmp.eq.s32.totalorder %v844, %v907
        %vm928 = vcmp.eq.s32.totalorder %v844, %v910
        %vm929 = vcmp.eq.s32.totalorder %v844, %v913
        %v930 = vsel %vm914, 1, 0
        %v931 = vsel %vm915, 1, 0
        %v932 = vsel %vm916, 1, 0
        %v933 = vsel %vm917, 1, 0
        %v934 = vsel %vm918, 1, 0
        %v935 = vsel %vm919, 1, 0
        %v936 = vsel %vm920, 1, 0
        %v937 = vsel %vm921, 1, 0
        %v938 = vsel %vm922, 1, 0
        %v939 = vsel %vm923, 1, 0
        %v940 = vsel %vm924, 1, 0
        %v941 = vsel %vm925, 1, 0
        %v942 = vsel %vm926, 1, 0
        %v943 = vsel %vm927, 1, 0
        %v944 = vsel %vm928, 1, 0
        %v945 = vsel %vm929, 1, 0
        %v946 = vcvt.s32.f32 %v930
        %v947 = vcvt.s32.f32 %v931
        %v948 = vcvt.s32.f32 %v932
        %v949 = vcvt.s32.f32 %v933
        %v950 = vcvt.s32.f32 %v934
        %v951 = vcvt.s32.f32 %v935
        %v952 = vcvt.s32.f32 %v936
        %v953 = vcvt.s32.f32 %v937
        %v954 = vcvt.s32.f32 %v938
        %v955 = vcvt.s32.f32 %v939
        %v956 = vcvt.s32.f32 %v940
        %v957 = vcvt.s32.f32 %v941
        %v958 = vcvt.s32.f32 %v942
        %v959 = vcvt.s32.f32 %v943
        %v960 = vcvt.s32.f32 %v944
        %v961 = vcvt.s32.f32 %v945
        %v962 = vld [vmem:[%s619] sm:$0xff]
        %v963 = vld [vmem:[%s619 + $0x8] sm:$0xff]
        %v964 = vld [vmem:[%s619 + $0x10] sm:$0xff]
        %v965 = vld [vmem:[%s619 + $0x18] sm:$0xff]
        %v966 = vld [vmem:[%s619 + $0x20] sm:$0xff]
        %v967 = vld [vmem:[%s619 + $0x28] sm:$0xff]
        %v968 = vld [vmem:[%s619 + $0x30] sm:$0xff]
        %v969 = vld [vmem:[%s619 + $0x38] sm:$0xff]
        %v970 = vld [vmem:[%s619 + $0x40] sm:$0xff]
        %v971 = vld [vmem:[%s619 + $0x48] sm:$0xff]
        %v972 = vld [vmem:[%s619 + $0x50] sm:$0xff]
        %v973 = vld [vmem:[%s619 + $0x58] sm:$0xff]
        %v974 = vld [vmem:[%s619 + $0x60] sm:$0xff]
        %v975 = vld [vmem:[%s619 + $0x68] sm:$0xff]
        %v976 = vld [vmem:[%s619 + $0x70] sm:$0xff]
        %v977 = vld [vmem:[%s619 + $0x78] sm:$0xff]
        %978 = vset.pattern.permute.xlu0 0
        %979 = vperm.xlu0 %978, %v962
        %v980 = vpop.permute.xlu0 %979
        %981 = vset.pattern.permute.xlu0 0
        %982 = vperm.xlu0 %981, %v963
        %v983 = vpop.permute.xlu0 %982
        %984 = vset.pattern.permute.xlu0 0
        %985 = vperm.xlu0 %984, %v964
        %v986 = vpop.permute.xlu0 %985
        %987 = vset.pattern.permute.xlu0 0
        %988 = vperm.xlu0 %987, %v965
        %v989 = vpop.permute.xlu0 %988
        %990 = vset.pattern.permute.xlu0 0
        %991 = vperm.xlu0 %990, %v966
        %v992 = vpop.permute.xlu0 %991
        %993 = vset.pattern.permute.xlu0 0
        %994 = vperm.xlu0 %993, %v967
        %v995 = vpop.permute.xlu0 %994
        %996 = vset.pattern.permute.xlu0 0
        %997 = vperm.xlu0 %996, %v968
        %v998 = vpop.permute.xlu0 %997
        %999 = vset.pattern.permute.xlu0 0
        %1000 = vperm.xlu0 %999, %v969
        %v1001 = vpop.permute.xlu0 %1000
        %1002 = vset.pattern.permute.xlu0 0
        %1003 = vperm.xlu0 %1002, %v970
        %v1004 = vpop.permute.xlu0 %1003
        %1005 = vset.pattern.permute.xlu0 0
        %1006 = vperm.xlu0 %1005, %v971
        %v1007 = vpop.permute.xlu0 %1006
        %1008 = vset.pattern.permute.xlu0 0
        %1009 = vperm.xlu0 %1008, %v972
        %v1010 = vpop.permute.xlu0 %1009
        %1011 = vset.pattern.permute.xlu0 0
        %1012 = vperm.xlu0 %1011, %v973
        %v1013 = vpop.permute.xlu0 %1012
        %1014 = vset.pattern.permute.xlu0 0
        %1015 = vperm.xlu0 %1014, %v974
        %v1016 = vpop.permute.xlu0 %1015
        %1017 = vset.pattern.permute.xlu0 0
        %1018 = vperm.xlu0 %1017, %v975
        %v1019 = vpop.permute.xlu0 %1018
        %1020 = vset.pattern.permute.xlu0 0
        %1021 = vperm.xlu0 %1020, %v976
        %v1022 = vpop.permute.xlu0 %1021
        %1023 = vset.pattern.permute.xlu0 0
        %1024 = vperm.xlu0 %1023, %v977
        %v1025 = vpop.permute.xlu0 %1024
        %vm1026 = vcmp.eq.s32.totalorder %v844, %v980
        %vm1027 = vcmp.eq.s32.totalorder %v844, %v983
        %vm1028 = vcmp.eq.s32.totalorder %v844, %v986
        %vm1029 = vcmp.eq.s32.totalorder %v844, %v989
        %vm1030 = vcmp.eq.s32.totalorder %v844, %v992
        %vm1031 = vcmp.eq.s32.totalorder %v844, %v995
        %vm1032 = vcmp.eq.s32.totalorder %v844, %v998
        %vm1033 = vcmp.eq.s32.totalorder %v844, %v1001
        %vm1034 = vcmp.eq.s32.totalorder %v844, %v1004
        %vm1035 = vcmp.eq.s32.totalorder %v844, %v1007
        %vm1036 = vcmp.eq.s32.totalorder %v844, %v1010
        %vm1037 = vcmp.eq.s32.totalorder %v844, %v1013
        %vm1038 = vcmp.eq.s32.totalorder %v844, %v1016
        %vm1039 = vcmp.eq.s32.totalorder %v844, %v1019
        %vm1040 = vcmp.eq.s32.totalorder %v844, %v1022
        %vm1041 = vcmp.eq.s32.totalorder %v844, %v1025
        %v1042 = vsel %vm1026, 1, 0
        %v1043 = vsel %vm1027, 1, 0
        %v1044 = vsel %vm1028, 1, 0
        %v1045 = vsel %vm1029, 1, 0
        %v1046 = vsel %vm1030, 1, 0
        %v1047 = vsel %vm1031, 1, 0
        %v1048 = vsel %vm1032, 1, 0
        %v1049 = vsel %vm1033, 1, 0
        %v1050 = vsel %vm1034, 1, 0
        %v1051 = vsel %vm1035, 1, 0
        %v1052 = vsel %vm1036, 1, 0
        %v1053 = vsel %vm1037, 1, 0
        %v1054 = vsel %vm1038, 1, 0
        %v1055 = vsel %vm1039, 1, 0
        %v1056 = vsel %vm1040, 1, 0
        %v1057 = vsel %vm1041, 1, 0
        %v1058 = vcvt.s32.f32 %v1042
        %v1059 = vcvt.s32.f32 %v1043
        %v1060 = vcvt.s32.f32 %v1044
        %v1061 = vcvt.s32.f32 %v1045
        %v1062 = vcvt.s32.f32 %v1046
        %v1063 = vcvt.s32.f32 %v1047
        %v1064 = vcvt.s32.f32 %v1048
        %v1065 = vcvt.s32.f32 %v1049
        %v1066 = vcvt.s32.f32 %v1050
        %v1067 = vcvt.s32.f32 %v1051
        %v1068 = vcvt.s32.f32 %v1052
        %v1069 = vcvt.s32.f32 %v1053
        %v1070 = vcvt.s32.f32 %v1054
        %v1071 = vcvt.s32.f32 %v1055
        %v1072 = vcvt.s32.f32 %v1056
        %v1073 = vcvt.s32.f32 %v1057
        %v1074 = vld [vmem:[%s623] sm:$0x1]
        %v1075 = vlaneseq
        %v1076 = vshrl.u32 %v1075, 7
        %v1077 = vsub.s32 0, %v1076
        %v1078 = vrot.slane %v1074, %v1077
        %vm1079 = vcmp.eq.s32.totalorder %v846, %v1078
        %vm1080 = vcmp.eq.s32.totalorder %v847, %v1078
        %vm1081 = vcmp.eq.s32.totalorder %v848, %v1078
        %vm1082 = vcmp.eq.s32.totalorder %v849, %v1078
        %v1083 = vsel %vm1079, 1, 0
        %v1084 = vsel %vm1080, 1, 0
        %v1085 = vsel %vm1081, 1, 0
        %v1086 = vsel %vm1082, 1, 0
        %v1087 = vcvt.s32.f32 %v1083
        %v1088 = vcvt.s32.f32 %v1084
        %v1089 = vcvt.s32.f32 %v1085
        %v1090 = vcvt.s32.f32 %v1086
        %v1091 = vld [vmem:[#allocation2] sm:$0xff]
        %v1092 = vld [vmem:[#allocation2 + $0x8] sm:$0xff]
        %v1093 = vld [vmem:[#allocation2 + $0x10] sm:$0xff]
        %v1094 = vld [vmem:[#allocation2 + $0x18] sm:$0xff]
        %v1095 = vld [vmem:[#allocation3] sm:$0xff]
        %v1096 = vld [vmem:[#allocation3 + $0x8] sm:$0xff]
        %v1097 = vld [vmem:[#allocation3 + $0x10] sm:$0xff]
        %v1098 = vld [vmem:[#allocation3 + $0x18] sm:$0xff]
        %vm1099 = vcmask 261120
        %v1101 = vsel %vm1099, %v1058, 0
        %v1104 = vsel %vm1099, %v1059, 0
        %v1107 = vsel %vm1099, %v1060, 0
        %v1110 = vsel %vm1099, %v1061, 0
        %v1113 = vsel %vm1099, %v1062, 0
        %v1116 = vsel %vm1099, %v1063, 0
        %v1119 = vsel %vm1099, %v1064, 0
        %v1122 = vsel %vm1099, %v1065, 0
        %v1125 = vsel %vm1099, %v1066, 0
        %v1128 = vsel %vm1099, %v1067, 0
        %v1131 = vsel %vm1099, %v1068, 0
        %v1134 = vsel %vm1099, %v1069, 0
        %v1137 = vsel %vm1099, %v1070, 0
        %v1140 = vsel %vm1099, %v1071, 0
        %v1143 = vsel %vm1099, %v1072, 0
        %v1146 = vsel %vm1099, %v1073, 0
        %1148 = vmatprep.subr.mxu0 0.0
        %1149 = vmatpush1.msra.mxu0 %v1095
        %1150 = vmatprep.subr.mxu0 0.0
        %1151 = vmatpush1.msra.mxu0 %v1096
        %1152 = vmatprep.subr.mxu0 0.0
        %1153 = vmatpush1.msra.mxu0 %v1097
        %1154 = vmatprep.subr.mxu0 0.0
        %1155 = vmatpush1.msra.mxu0 %v1098
        %1156 = vmatprep.subr.mxu0 0.0
        %1157 = vmatpush1.msra.mxu0 0.0
        %1158 = vmatprep.subr.mxu0 0.0
        %1159 = vmatpush1.msra.mxu0 0.0
        %1160 = vmatprep.subr.mxu0 0.0
        %1161 = vmatpush1.msra.mxu0 0.0
        %1162 = vmatprep.subr.mxu0 0.0
        %1163 = vmatpush1.msra.mxu0 0.0
        %1164 = vmatprep.subr.mxu0 0.0
        %1165 = vmatpush1.msra.mxu0 0.0
        %1166 = vmatprep.subr.mxu0 0.0
        %1167 = vmatpush1.msra.mxu0 0.0
        %1168 = vmatprep.subr.mxu0 0.0
        %1169 = vmatpush1.msra.mxu0 0.0
        %1170 = vmatprep.subr.mxu0 0.0
        %1171 = vmatpush1.msra.mxu0 0.0
        %1172 = vmatprep.subr.mxu0 0.0
        %1173 = vmatpush1.msra.mxu0 0.0
        %1174 = vmatprep.subr.mxu0 0.0
        %1175 = vmatpush1.msra.mxu0 0.0
        %1176 = vmatprep.subr.mxu0 0.0
        %1177 = vmatpush1.msra.mxu0 0.0
        %1178 = vmatprep.subr.mxu0 0.0
        %1179 = vmatpush1.msra.mxu0 0.0
        %1180 = vmatprep.subr.mxu0 0.0
        %1181 = vmatpush1.msra.mxu0 0.0
        %1182 = vmatprep.subr.mxu0 0.0
        %1183 = vmatpush1.msra.mxu0 0.0
        %1184 = vmatprep.subr.mxu0 0.0
        %1185 = vmatpush1.msra.mxu0 0.0
        %1186 = vmatprep.subr.mxu0 0.0
        %1187 = vmatpush1.msra.mxu0 0.0
        %1188 = vmatprep.subr.mxu0 0.0
        %1189 = vmatpush1.msra.mxu0 0.0
        %1190 = vmatprep.subr.mxu0 0.0
        %1191 = vmatpush1.msra.mxu0 0.0
        %1192 = vmatprep.subr.mxu0 0.0
        %1193 = vmatpush1.msra.mxu0 0.0
        %1194 = vmatprep.subr.mxu0 0.0
        %1195 = vmatpush1.msra.mxu0 0.0
        %1196 = vmatprep.subr.mxu0 0.0
        %1197 = vmatpush1.msra.mxu0 0.0
        %1198 = vmatprep.subr.mxu0 0.0
        %1199 = vmatpush1.msra.mxu0 0.0
        %1200 = vmatprep.subr.mxu0 0.0
        %1201 = vmatpush1.msra.mxu0 0.0
        %1202 = vmatprep.subr.mxu0 0.0
        %1203 = vmatpush1.msra.mxu0 0.0
        %1204 = vmatprep.subr.mxu0 0.0
        %1205 = vmatpush1.msra.mxu0 0.0
        %1206 = vmatprep.subr.mxu0 0.0
        %1207 = vmatpush1.msra.mxu0 0.0
        %1208 = vmatprep.subr.mxu0 0.0
        %1209 = vmatpush1.msra.mxu0 0.0
        %1210 = vmatprep.subr.mxu0 0.0
        %1211 = vmatpush1.msra.mxu0 0.0
        %1212 = vmatprep.mubr.f32.mxu0 0.0
        %1213 = vmatmul.mubr.f32.gmra.mrb[0].mxu0 %v1101
        %v1214 = vpop.f32.mrb[0].mxu0
        %v1215 = vadd.f32 0.0, %v1214
        %v1216 = vpop.f32.mrb[0].mxu0
        %1217 = vmatprep.mubr.f32.mxu0 0.0
        %1218 = vmatmul.mubr.f32.gmra.mrb[0].mxu0 %v1104
        %v1219 = vpop.f32.mrb[0].mxu0
        %v1220 = vadd.f32 0.0, %v1219
        %v1221 = vpop.f32.mrb[0].mxu0
        %1222 = vmatprep.mubr.f32.mxu0 0.0
        %1223 = vmatmul.mubr.f32.gmra.mrb[0].mxu0 %v1107
        %v1224 = vpop.f32.mrb[0].mxu0
        %v1225 = vadd.f32 0.0, %v1224
        %v1226 = vpop.f32.mrb[0].mxu0
        %1227 = vmatprep.mubr.f32.mxu0 0.0
        %1228 = vmatmul.mubr.f32.gmra.mrb[0].mxu0 %v1110
        %v1229 = vpop.f32.mrb[0].mxu0
        %v1230 = vadd.f32 0.0, %v1229
        %v1231 = vpop.f32.mrb[0].mxu0
        %1232 = vmatprep.mubr.f32.mxu0 0.0
        %1233 = vmatmul.mubr.f32.gmra.mrb[0].mxu0 %v1113
        %v1234 = vpop.f32.mrb[0].mxu0
        %v1235 = vadd.f32 0.0, %v1234
        %v1236 = vpop.f32.mrb[0].mxu0
        %1237 = vmatprep.mubr.f32.mxu0 0.0
        %1238 = vmatmul.mubr.f32.gmra.mrb[0].mxu0 %v1116
        %v1239 = vpop.f32.mrb[0].mxu0
        %v1240 = vadd.f32 0.0, %v1239
        %v1241 = vpop.f32.mrb[0].mxu0
        %1242 = vmatprep.mubr.f32.mxu0 0.0
        %1243 = vmatmul.mubr.f32.gmra.mrb[0].mxu0 %v1119
        %v1244 = vpop.f32.mrb[0].mxu0
        %v1245 = vadd.f32 0.0, %v1244
        %v1246 = vpop.f32.mrb[0].mxu0
        %1247 = vmatprep.mubr.f32.mxu0 0.0
        %1248 = vmatmul.mubr.f32.gmra.mrb[0].mxu0 %v1122
        %v1249 = vpop.f32.mrb[0].mxu0
        %v1250 = vadd.f32 0.0, %v1249
        %v1251 = vpop.f32.mrb[0].mxu0
        %1252 = vmatprep.mubr.f32.mxu0 0.0
        %1253 = vmatmul.mubr.f32.gmra.mrb[0].mxu0 %v1125
        %v1254 = vpop.f32.mrb[0].mxu0
        %v1255 = vadd.f32 0.0, %v1254
        %v1256 = vpop.f32.mrb[0].mxu0
        %1257 = vmatprep.mubr.f32.mxu0 0.0
        %1258 = vmatmul.mubr.f32.gmra.mrb[0].mxu0 %v1128
        %v1259 = vpop.f32.mrb[0].mxu0
        %v1260 = vadd.f32 0.0, %v1259
        %v1261 = vpop.f32.mrb[0].mxu0
        %1262 = vmatprep.mubr.f32.mxu0 0.0
        %1263 = vmatmul.mubr.f32.gmra.mrb[0].mxu0 %v1131
        %v1264 = vpop.f32.mrb[0].mxu0
        %v1265 = vadd.f32 0.0, %v1264
        %v1266 = vpop.f32.mrb[0].mxu0
        %1267 = vmatprep.mubr.f32.mxu0 0.0
        %1268 = vmatmul.mubr.f32.gmra.mrb[0].mxu0 %v1134
        %v1269 = vpop.f32.mrb[0].mxu0
        %v1270 = vadd.f32 0.0, %v1269
        %v1271 = vpop.f32.mrb[0].mxu0
        %1272 = vmatprep.mubr.f32.mxu0 0.0
        %1273 = vmatmul.mubr.f32.gmra.mrb[0].mxu0 %v1137
        %v1274 = vpop.f32.mrb[0].mxu0
        %v1275 = vadd.f32 0.0, %v1274
        %v1276 = vpop.f32.mrb[0].mxu0
        %1277 = vmatprep.mubr.f32.mxu0 0.0
        %1278 = vmatmul.mubr.f32.gmra.mrb[0].mxu0 %v1140
        %v1279 = vpop.f32.mrb[0].mxu0
        %v1280 = vadd.f32 0.0, %v1279
        %v1281 = vpop.f32.mrb[0].mxu0
        %1282 = vmatprep.mubr.f32.mxu0 0.0
        %1283 = vmatmul.mubr.f32.gmra.mrb[0].mxu0 %v1143
        %v1284 = vpop.f32.mrb[0].mxu0
        %v1285 = vadd.f32 0.0, %v1284
        %v1286 = vpop.f32.mrb[0].mxu0
        %1287 = vmatprep.mubr.f32.mxu0 0.0
        %1288 = vmatmul.mubr.f32.gmra.mrb[0].mxu0 %v1146
        %v1289 = vpop.f32.mrb[0].mxu0
        %v1290 = vadd.f32 0.0, %v1289
        %v1291 = vpop.f32.mrb[0].mxu0
        %1292 = vdwg.mxu0
        %v1294 = vsel %vm1099, %v946, 0
        %v1297 = vsel %vm1099, %v947, 0
        %v1300 = vsel %vm1099, %v948, 0
        %v1303 = vsel %vm1099, %v949, 0
        %v1306 = vsel %vm1099, %v950, 0
        %v1309 = vsel %vm1099, %v951, 0
        %v1312 = vsel %vm1099, %v952, 0
        %v1315 = vsel %vm1099, %v953, 0
        %v1318 = vsel %vm1099, %v954, 0
        %v1321 = vsel %vm1099, %v955, 0
        %v1324 = vsel %vm1099, %v956, 0
        %v1327 = vsel %vm1099, %v957, 0
        %v1330 = vsel %vm1099, %v958, 0
        %v1333 = vsel %vm1099, %v959, 0
        %v1336 = vsel %vm1099, %v960, 0
        %v1339 = vsel %vm1099, %v961, 0
        %1341 = vmatprep.subr.mxu0 0.0
        %1342 = vmatpush1.msra.mxu0 %v1091
        %1343 = vmatprep.subr.mxu0 0.0
        %1344 = vmatpush1.msra.mxu0 %v1092
        %1345 = vmatprep.subr.mxu0 0.0
        %1346 = vmatpush1.msra.mxu0 %v1093
        %1347 = vmatprep.subr.mxu0 0.0
        %1348 = vmatpush1.msra.mxu0 %v1094
        %1349 = vmatprep.subr.mxu0 0.0
        %1350 = vmatpush1.msra.mxu0 0.0
        %1351 = vmatprep.subr.mxu0 0.0
        %1352 = vmatpush1.msra.mxu0 0.0
        %1353 = vmatprep.subr.mxu0 0.0
        %1354 = vmatpush1.msra.mxu0 0.0
        %1355 = vmatprep.subr.mxu0 0.0
        %1356 = vmatpush1.msra.mxu0 0.0
        %1357 = vmatprep.subr.mxu0 0.0
        %1358 = vmatpush1.msra.mxu0 0.0
        %1359 = vmatprep.subr.mxu0 0.0
        %1360 = vmatpush1.msra.mxu0 0.0
        %1361 = vmatprep.subr.mxu0 0.0
        %1362 = vmatpush1.msra.mxu0 0.0
        %1363 = vmatprep.subr.mxu0 0.0
        %1364 = vmatpush1.msra.mxu0 0.0
        %1365 = vmatprep.subr.mxu0 0.0
        %1366 = vmatpush1.msra.mxu0 0.0
        %1367 = vmatprep.subr.mxu0 0.0
        %1368 = vmatpush1.msra.mxu0 0.0
        %1369 = vmatprep.subr.mxu0 0.0
        %1370 = vmatpush1.msra.mxu0 0.0
        %1371 = vmatprep.subr.mxu0 0.0
        %1372 = vmatpush1.msra.mxu0 0.0
        %1373 = vmatprep.subr.mxu0 0.0
        %1374 = vmatpush1.msra.mxu0 0.0
        %1375 = vmatprep.subr.mxu0 0.0
        %1376 = vmatpush1.msra.mxu0 0.0
        %1377 = vmatprep.subr.mxu0 0.0
        %1378 = vmatpush1.msra.mxu0 0.0
        %1379 = vmatprep.subr.mxu0 0.0
        %1380 = vmatpush1.msra.mxu0 0.0
        %1381 = vmatprep.subr.mxu0 0.0
        %1382 = vmatpush1.msra.mxu0 0.0
        %1383 = vmatprep.subr.mxu0 0.0
        %1384 = vmatpush1.msra.mxu0 0.0
        %1385 = vmatprep.subr.mxu0 0.0
        %1386 = vmatpush1.msra.mxu0 0.0
        %1387 = vmatprep.subr.mxu0 0.0
        %1388 = vmatpush1.msra.mxu0 0.0
        %1389 = vmatprep.subr.mxu0 0.0
        %1390 = vmatpush1.msra.mxu0 0.0
        %1391 = vmatprep.subr.mxu0 0.0
        %1392 = vmatpush1.msra.mxu0 0.0
        %1393 = vmatprep.subr.mxu0 0.0
        %1394 = vmatpush1.msra.mxu0 0.0
        %1395 = vmatprep.subr.mxu0 0.0
        %1396 = vmatpush1.msra.mxu0 0.0
        %1397 = vmatprep.subr.mxu0 0.0
        %1398 = vmatpush1.msra.mxu0 0.0
        %1399 = vmatprep.subr.mxu0 0.0
        %1400 = vmatpush1.msra.mxu0 0.0
        %1401 = vmatprep.subr.mxu0 0.0
        %1402 = vmatpush1.msra.mxu0 0.0
        %1403 = vmatprep.subr.mxu0 0.0
        %1404 = vmatpush1.msra.mxu0 0.0
        %1405 = vmatprep.mubr.f32.mxu0 0.0
        %1406 = vmatmul.mubr.f32.gmra.mrb[0].mxu0 %v1294
        %v1407 = vpop.f32.mrb[0].mxu0
        %v1408 = vadd.f32 %v1215, %v1407
        %v1409 = vpop.f32.mrb[0].mxu0
        %1410 = vmatprep.mubr.f32.mxu0 0.0
        %1411 = vmatmul.mubr.f32.gmra.mrb[0].mxu0 %v1297
        %v1412 = vpop.f32.mrb[0].mxu0
        %v1413 = vadd.f32 %v1220, %v1412
        %v1414 = vpop.f32.mrb[0].mxu0
        %1415 = vmatprep.mubr.f32.mxu0 0.0
        %1416 = vmatmul.mubr.f32.gmra.mrb[0].mxu0 %v1300
        %v1417 = vpop.f32.mrb[0].mxu0
        %v1418 = vadd.f32 %v1225, %v1417
        %v1419 = vpop.f32.mrb[0].mxu0
        %1420 = vmatprep.mubr.f32.mxu0 0.0
        %1421 = vmatmul.mubr.f32.gmra.mrb[0].mxu0 %v1303
        %v1422 = vpop.f32.mrb[0].mxu0
        %v1423 = vadd.f32 %v1230, %v1422
        %v1424 = vpop.f32.mrb[0].mxu0
        %1425 = vmatprep.mubr.f32.mxu0 0.0
        %1426 = vmatmul.mubr.f32.gmra.mrb[0].mxu0 %v1306
        %v1427 = vpop.f32.mrb[0].mxu0
        %v1428 = vadd.f32 %v1235, %v1427
        %v1429 = vpop.f32.mrb[0].mxu0
        %1430 = vmatprep.mubr.f32.mxu0 0.0
        %1431 = vmatmul.mubr.f32.gmra.mrb[0].mxu0 %v1309
        %v1432 = vpop.f32.mrb[0].mxu0
        %v1433 = vadd.f32 %v1240, %v1432
        %v1434 = vpop.f32.mrb[0].mxu0
        %1435 = vmatprep.mubr.f32.mxu0 0.0
        %1436 = vmatmul.mubr.f32.gmra.mrb[0].mxu0 %v1312
        %v1437 = vpop.f32.mrb[0].mxu0
        %v1438 = vadd.f32 %v1245, %v1437
        %v1439 = vpop.f32.mrb[0].mxu0
        %1440 = vmatprep.mubr.f32.mxu0 0.0
        %1441 = vmatmul.mubr.f32.gmra.mrb[0].mxu0 %v1315
        %v1442 = vpop.f32.mrb[0].mxu0
        %v1443 = vadd.f32 %v1250, %v1442
        %v1444 = vpop.f32.mrb[0].mxu0
        %1445 = vmatprep.mubr.f32.mxu0 0.0
        %1446 = vmatmul.mubr.f32.gmra.mrb[0].mxu0 %v1318
        %v1447 = vpop.f32.mrb[0].mxu0
        %v1448 = vadd.f32 %v1255, %v1447
        %v1449 = vpop.f32.mrb[0].mxu0
        %1450 = vmatprep.mubr.f32.mxu0 0.0
        %1451 = vmatmul.mubr.f32.gmra.mrb[0].mxu0 %v1321
        %v1452 = vpop.f32.mrb[0].mxu0
        %v1453 = vadd.f32 %v1260, %v1452
        %v1454 = vpop.f32.mrb[0].mxu0
        %1455 = vmatprep.mubr.f32.mxu0 0.0
        %1456 = vmatmul.mubr.f32.gmra.mrb[0].mxu0 %v1324
        %v1457 = vpop.f32.mrb[0].mxu0
        %v1458 = vadd.f32 %v1265, %v1457
        %v1459 = vpop.f32.mrb[0].mxu0
        %1460 = vmatprep.mubr.f32.mxu0 0.0
        %1461 = vmatmul.mubr.f32.gmra.mrb[0].mxu0 %v1327
        %v1462 = vpop.f32.mrb[0].mxu0
        %v1463 = vadd.f32 %v1270, %v1462
        %v1464 = vpop.f32.mrb[0].mxu0
        %1465 = vmatprep.mubr.f32.mxu0 0.0
        %1466 = vmatmul.mubr.f32.gmra.mrb[0].mxu0 %v1330
        %v1467 = vpop.f32.mrb[0].mxu0
        %v1468 = vadd.f32 %v1275, %v1467
        %v1469 = vpop.f32.mrb[0].mxu0
        %1470 = vmatprep.mubr.f32.mxu0 0.0
        %1471 = vmatmul.mubr.f32.gmra.mrb[0].mxu0 %v1333
        %v1472 = vpop.f32.mrb[0].mxu0
        %v1473 = vadd.f32 %v1280, %v1472
        %v1474 = vpop.f32.mrb[0].mxu0
        %1475 = vmatprep.mubr.f32.mxu0 0.0
        %1476 = vmatmul.mubr.f32.gmra.mrb[0].mxu0 %v1336
        %v1477 = vpop.f32.mrb[0].mxu0
        %v1478 = vadd.f32 %v1285, %v1477
        %v1479 = vpop.f32.mrb[0].mxu0
        %1480 = vmatprep.mubr.f32.mxu0 0.0
        %1481 = vmatmul.mubr.f32.gmra.mrb[0].mxu0 %v1339
        %v1482 = vpop.f32.mrb[0].mxu0
        %v1483 = vadd.f32 %v1290, %v1482
        %v1484 = vpop.f32.mrb[0].mxu0
        %1485 = vdwg.mxu0
        %v1486 = vld [vmem:[%s628] sm:$0xff]
        %v1487 = vld [vmem:[%s628 + $0x8] sm:$0xff]
        %v1488 = vld [vmem:[%s628 + $0x10] sm:$0xff]
        %v1489 = vld [vmem:[%s628 + $0x18] sm:$0xff]
        %v1490 = vld [vmem:[%s628 + $0x20] sm:$0xff]
        %v1491 = vld [vmem:[%s628 + $0x28] sm:$0xff]
        %v1492 = vld [vmem:[%s628 + $0x30] sm:$0xff]
        %v1493 = vld [vmem:[%s628 + $0x38] sm:$0xff]
        %v1494 = vld [vmem:[%s628 + $0x40] sm:$0xff]
        %v1495 = vld [vmem:[%s628 + $0x48] sm:$0xff]
        %v1496 = vld [vmem:[%s628 + $0x50] sm:$0xff]
        %v1497 = vld [vmem:[%s628 + $0x58] sm:$0xff]
        %v1498 = vld [vmem:[%s628 + $0x60] sm:$0xff]
        %v1499 = vld [vmem:[%s628 + $0x68] sm:$0xff]
        %v1500 = vld [vmem:[%s628 + $0x70] sm:$0xff]
        %v1501 = vld [vmem:[%s628 + $0x78] sm:$0xff]
        %v1502 = vld [vmem:[%s8] sm:$0x3]
        %vm1503 = vcmask 15360
        %v1505 = vsel %vm1503, %v1486, 0
        %v1508 = vsel %vm1503, %v1487, 0
        %v1511 = vsel %vm1503, %v1488, 0
        %v1514 = vsel %vm1503, %v1489, 0
        %v1517 = vsel %vm1503, %v1490, 0
        %v1520 = vsel %vm1503, %v1491, 0
        %v1523 = vsel %vm1503, %v1492, 0
        %v1526 = vsel %vm1503, %v1493, 0
        %v1529 = vsel %vm1503, %v1494, 0
        %v1532 = vsel %vm1503, %v1495, 0
        %v1535 = vsel %vm1503, %v1496, 0
        %v1538 = vsel %vm1503, %v1497, 0
        %v1541 = vsel %vm1503, %v1498, 0
        %v1544 = vsel %vm1503, %v1499, 0
        %v1547 = vsel %vm1503, %v1500, 0
        %v1550 = vsel %vm1503, %v1501, 0
        %vm1552 = vcmask 1041408
        %v1554 = vsel %vm1552, %v1502, 0
        %1556 = vmatprep.subr.mxu0 0.0
        %1557 = vmatpush1.msra.mxu0 %v1554
        %1558 = vmatprep.subr.mxu0 0.0
        %1559 = vmatpush1.msra.mxu0 0.0
        %1560 = vmatprep.subr.mxu0 0.0
        %1561 = vmatpush1.msra.mxu0 0.0
        %1562 = vmatprep.subr.mxu0 0.0
        %1563 = vmatpush1.msra.mxu0 0.0
        %1564 = vmatprep.subr.mxu0 0.0
        %1565 = vmatpush1.msra.mxu0 0.0
        %1566 = vmatprep.subr.mxu0 0.0
        %1567 = vmatpush1.msra.mxu0 0.0
        %1568 = vmatprep.subr.mxu0 0.0
        %1569 = vmatpush1.msra.mxu0 0.0
        %1570 = vmatprep.subr.mxu0 0.0
        %1571 = vmatpush1.msra.mxu0 0.0
        %1572 = vmatprep.subr.mxu0 0.0
        %1573 = vmatpush1.msra.mxu0 0.0
        %1574 = vmatprep.subr.mxu0 0.0
        %1575 = vmatpush1.msra.mxu0 0.0
        %1576 = vmatprep.subr.mxu0 0.0
        %1577 = vmatpush1.msra.mxu0 0.0
        %1578 = vmatprep.subr.mxu0 0.0
        %1579 = vmatpush1.msra.mxu0 0.0
        %1580 = vmatprep.subr.mxu0 0.0
        %1581 = vmatpush1.msra.mxu0 0.0
        %1582 = vmatprep.subr.mxu0 0.0
        %1583 = vmatpush1.msra.mxu0 0.0
        %1584 = vmatprep.subr.mxu0 0.0
        %1585 = vmatpush1.msra.mxu0 0.0
        %1586 = vmatprep.subr.mxu0 0.0
        %1587 = vmatpush1.msra.mxu0 0.0
        %1588 = vmatprep.subr.mxu0 0.0
        %1589 = vmatpush1.msra.mxu0 0.0
        %1590 = vmatprep.subr.mxu0 0.0
        %1591 = vmatpush1.msra.mxu0 0.0
        %1592 = vmatprep.subr.mxu0 0.0
        %1593 = vmatpush1.msra.mxu0 0.0
        %1594 = vmatprep.subr.mxu0 0.0
        %1595 = vmatpush1.msra.mxu0 0.0
        %1596 = vmatprep.subr.mxu0 0.0
        %1597 = vmatpush1.msra.mxu0 0.0
        %1598 = vmatprep.subr.mxu0 0.0
        %1599 = vmatpush1.msra.mxu0 0.0
        %1600 = vmatprep.subr.mxu0 0.0
        %1601 = vmatpush1.msra.mxu0 0.0
        %1602 = vmatprep.subr.mxu0 0.0
        %1603 = vmatpush1.msra.mxu0 0.0
        %1604 = vmatprep.subr.mxu0 0.0
        %1605 = vmatpush1.msra.mxu0 0.0
        %1606 = vmatprep.subr.mxu0 0.0
        %1607 = vmatpush1.msra.mxu0 0.0
        %1608 = vmatprep.subr.mxu0 0.0
        %1609 = vmatpush1.msra.mxu0 0.0
        %1610 = vmatprep.subr.mxu0 0.0
        %1611 = vmatpush1.msra.mxu0 0.0
        %1612 = vmatprep.subr.mxu0 0.0
        %1613 = vmatpush1.msra.mxu0 0.0
        %1614 = vmatprep.subr.mxu0 0.0
        %1615 = vmatpush1.msra.mxu0 0.0
        %1616 = vmatprep.subr.mxu0 0.0
        %1617 = vmatpush1.msra.mxu0 0.0
        %1618 = vmatprep.subr.mxu0 0.0
        %1619 = vmatpush1.msra.mxu0 0.0
        %1620 = vmatprep.mubr.f32.mxu0 0.0
        %1621 = vmatmul.mubr.f32.gmra.mrb[0].mxu0 %v1505
        %v1622 = vpop.f32.mrb[0].mxu0
        %v1623 = vadd.f32 0.0, %v1622
        %v1624 = vpop.f32.mrb[0].mxu0
        %1625 = vmatprep.mubr.f32.mxu0 0.0
        %1626 = vmatmul.mubr.f32.gmra.mrb[0].mxu0 %v1508
        %v1627 = vpop.f32.mrb[0].mxu0
        %v1628 = vadd.f32 0.0, %v1627
        %v1629 = vpop.f32.mrb[0].mxu0
        %1630 = vmatprep.mubr.f32.mxu0 0.0
        %1631 = vmatmul.mubr.f32.gmra.mrb[0].mxu0 %v1511
        %v1632 = vpop.f32.mrb[0].mxu0
        %v1633 = vadd.f32 0.0, %v1632
        %v1634 = vpop.f32.mrb[0].mxu0
        %1635 = vmatprep.mubr.f32.mxu0 0.0
        %1636 = vmatmul.mubr.f32.gmra.mrb[0].mxu0 %v1514
        %v1637 = vpop.f32.mrb[0].mxu0
        %v1638 = vadd.f32 0.0, %v1637
        %v1639 = vpop.f32.mrb[0].mxu0
        %1640 = vmatprep.mubr.f32.mxu0 0.0
        %1641 = vmatmul.mubr.f32.gmra.mrb[0].mxu0 %v1517
        %v1642 = vpop.f32.mrb[0].mxu0
        %v1643 = vadd.f32 0.0, %v1642
        %v1644 = vpop.f32.mrb[0].mxu0
        %1645 = vmatprep.mubr.f32.mxu0 0.0
        %1646 = vmatmul.mubr.f32.gmra.mrb[0].mxu0 %v1520
        %v1647 = vpop.f32.mrb[0].mxu0
        %v1648 = vadd.f32 0.0, %v1647
        %v1649 = vpop.f32.mrb[0].mxu0
        %1650 = vmatprep.mubr.f32.mxu0 0.0
        %1651 = vmatmul.mubr.f32.gmra.mrb[0].mxu0 %v1523
        %v1652 = vpop.f32.mrb[0].mxu0
        %v1653 = vadd.f32 0.0, %v1652
        %v1654 = vpop.f32.mrb[0].mxu0
        %1655 = vmatprep.mubr.f32.mxu0 0.0
        %1656 = vmatmul.mubr.f32.gmra.mrb[0].mxu0 %v1526
        %v1657 = vpop.f32.mrb[0].mxu0
        %v1658 = vadd.f32 0.0, %v1657
        %v1659 = vpop.f32.mrb[0].mxu0
        %1660 = vmatprep.mubr.f32.mxu0 0.0
        %1661 = vmatmul.mubr.f32.gmra.mrb[0].mxu0 %v1529
        %v1662 = vpop.f32.mrb[0].mxu0
        %v1663 = vadd.f32 0.0, %v1662
        %v1664 = vpop.f32.mrb[0].mxu0
        %1665 = vmatprep.mubr.f32.mxu0 0.0
        %1666 = vmatmul.mubr.f32.gmra.mrb[0].mxu0 %v1532
        %v1667 = vpop.f32.mrb[0].mxu0
        %v1668 = vadd.f32 0.0, %v1667
        %v1669 = vpop.f32.mrb[0].mxu0
        %1670 = vmatprep.mubr.f32.mxu0 0.0
        %1671 = vmatmul.mubr.f32.gmra.mrb[0].mxu0 %v1535
        %v1672 = vpop.f32.mrb[0].mxu0
        %v1673 = vadd.f32 0.0, %v1672
        %v1674 = vpop.f32.mrb[0].mxu0
        %1675 = vmatprep.mubr.f32.mxu0 0.0
        %1676 = vmatmul.mubr.f32.gmra.mrb[0].mxu0 %v1538
        %v1677 = vpop.f32.mrb[0].mxu0
        %v1678 = vadd.f32 0.0, %v1677
        %v1679 = vpop.f32.mrb[0].mxu0
        %1680 = vmatprep.mubr.f32.mxu0 0.0
        %1681 = vmatmul.mubr.f32.gmra.mrb[0].mxu0 %v1541
        %v1682 = vpop.f32.mrb[0].mxu0
        %v1683 = vadd.f32 0.0, %v1682
        %v1684 = vpop.f32.mrb[0].mxu0
        %1685 = vmatprep.mubr.f32.mxu0 0.0
        %1686 = vmatmul.mubr.f32.gmra.mrb[0].mxu0 %v1544
        %v1687 = vpop.f32.mrb[0].mxu0
        %v1688 = vadd.f32 0.0, %v1687
        %v1689 = vpop.f32.mrb[0].mxu0
        %1690 = vmatprep.mubr.f32.mxu0 0.0
        %1691 = vmatmul.mubr.f32.gmra.mrb[0].mxu0 %v1547
        %v1692 = vpop.f32.mrb[0].mxu0
        %v1693 = vadd.f32 0.0, %v1692
        %v1694 = vpop.f32.mrb[0].mxu0
        %1695 = vmatprep.mubr.f32.mxu0 0.0
        %1696 = vmatmul.mubr.f32.gmra.mrb[0].mxu0 %v1550
        %v1697 = vpop.f32.mrb[0].mxu0
        %v1698 = vadd.f32 0.0, %v1697
        %v1699 = vpop.f32.mrb[0].mxu0
        %1700 = vdwg.mxu0
        %v1701 = vadd.f32 %v1408, %v1623
        %v1702 = vadd.f32 %v1413, %v1628
        %v1703 = vadd.f32 %v1418, %v1633
        %v1704 = vadd.f32 %v1423, %v1638
        %v1705 = vadd.f32 %v1428, %v1643
        %v1706 = vadd.f32 %v1433, %v1648
        %v1707 = vadd.f32 %v1438, %v1653
        %v1708 = vadd.f32 %v1443, %v1658
        %v1709 = vadd.f32 %v1448, %v1663
        %v1710 = vadd.f32 %v1453, %v1668
        %v1711 = vadd.f32 %v1458, %v1673
        %v1712 = vadd.f32 %v1463, %v1678
        %v1713 = vadd.f32 %v1468, %v1683
        %v1714 = vadd.f32 %v1473, %v1688
        %v1715 = vadd.f32 %v1478, %v1693
        %v1716 = vadd.f32 %v1483, %v1698
        %v1717 = vld [vmem:[%s9] sm:$0x1]
        %v1719 = vlaneseq
        %v1720 = vshrl.u32 %v1719, 7
        %v1721 = vsub.s32 0, %v1720
        %v1722 = vrot.slane %v1717, %v1721
        %v1724 = vadd.f32 %v1701, %v1722
        %v1725 = vadd.f32 %v1702, %v1722
        %v1726 = vadd.f32 %v1703, %v1722
        %v1727 = vadd.f32 %v1704, %v1722
        %v1728 = vadd.f32 %v1705, %v1722
        %v1729 = vadd.f32 %v1706, %v1722
        %v1730 = vadd.f32 %v1707, %v1722
        %v1731 = vadd.f32 %v1708, %v1722
        %v1732 = vadd.f32 %v1709, %v1722
        %v1733 = vadd.f32 %v1710, %v1722
        %v1734 = vadd.f32 %v1711, %v1722
        %v1735 = vadd.f32 %v1712, %v1722
        %v1736 = vadd.f32 %v1713, %v1722
        %v1737 = vadd.f32 %v1714, %v1722
        %v1738 = vadd.f32 %v1715, %v1722
        %v1739 = vadd.f32 %v1716, %v1722
        %v1740 = vmax.f32 %v1724, 0.0
        %v1741 = vmax.f32 %v1725, 0.0
        %v1742 = vmax.f32 %v1726, 0.0
        %v1743 = vmax.f32 %v1727, 0.0
        %v1744 = vmax.f32 %v1728, 0.0
        %v1745 = vmax.f32 %v1729, 0.0
        %v1746 = vmax.f32 %v1730, 0.0
        %v1747 = vmax.f32 %v1731, 0.0
        %v1748 = vmax.f32 %v1732, 0.0
        %v1749 = vmax.f32 %v1733, 0.0
        %v1750 = vmax.f32 %v1734, 0.0
        %v1751 = vmax.f32 %v1735, 0.0
        %v1752 = vmax.f32 %v1736, 0.0
        %v1753 = vmax.f32 %v1737, 0.0
        %v1754 = vmax.f32 %v1738, 0.0
        %v1755 = vmax.f32 %v1739, 0.0
        %v1756 = vld [vmem:[%s10] sm:$0xff]
        %v1757 = vld [vmem:[%s10 + $0x8] sm:$0xff]
        %v1758 = vld [vmem:[%s10 + $0x10] sm:$0xff]
        %v1759 = vld [vmem:[%s10 + $0x18] sm:$0xff]
        %v1760 = vld [vmem:[%s11] sm:$0x1]
        %v1762 = vlaneseq
        %v1763 = vshrl.u32 %v1762, 7
        %v1764 = vsub.s32 0, %v1763
        %v1765 = vrot.slane %v1760, %v1764
        %v1768 = vsel %vm1099, %v1740, 0
        %v1771 = vsel %vm1099, %v1741, 0
        %v1774 = vsel %vm1099, %v1742, 0
        %v1777 = vsel %vm1099, %v1743, 0
        %v1780 = vsel %vm1099, %v1744, 0
        %v1783 = vsel %vm1099, %v1745, 0
        %v1786 = vsel %vm1099, %v1746, 0
        %v1789 = vsel %vm1099, %v1747, 0
        %v1792 = vsel %vm1099, %v1748, 0
        %v1795 = vsel %vm1099, %v1749, 0
        %v1798 = vsel %vm1099, %v1750, 0
        %v1801 = vsel %vm1099, %v1751, 0
        %v1804 = vsel %vm1099, %v1752, 0
        %v1807 = vsel %vm1099, %v1753, 0
        %v1810 = vsel %vm1099, %v1754, 0
        %v1813 = vsel %vm1099, %v1755, 0
        %1815 = vmatprep.subr.mxu0 0.0
        %1816 = vmatpush1.msra.mxu0 %v1756
        %1817 = vmatprep.subr.mxu0 0.0
        %1818 = vmatpush1.msra.mxu0 %v1757
        %1819 = vmatprep.subr.mxu0 0.0
        %1820 = vmatpush1.msra.mxu0 %v1758
        %1821 = vmatprep.subr.mxu0 0.0
        %1822 = vmatpush1.msra.mxu0 %v1759
        %1823 = vmatprep.subr.mxu0 0.0
        %1824 = vmatpush1.msra.mxu0 0.0
        %1825 = vmatprep.subr.mxu0 0.0
        %1826 = vmatpush1.msra.mxu0 0.0
        %1827 = vmatprep.subr.mxu0 0.0
        %1828 = vmatpush1.msra.mxu0 0.0
        %1829 = vmatprep.subr.mxu0 0.0
        %1830 = vmatpush1.msra.mxu0 0.0
        %1831 = vmatprep.subr.mxu0 0.0
        %1832 = vmatpush1.msra.mxu0 0.0
        %1833 = vmatprep.subr.mxu0 0.0
        %1834 = vmatpush1.msra.mxu0 0.0
        %1835 = vmatprep.subr.mxu0 0.0
        %1836 = vmatpush1.msra.mxu0 0.0
        %1837 = vmatprep.subr.mxu0 0.0
        %1838 = vmatpush1.msra.mxu0 0.0
        %1839 = vmatprep.subr.mxu0 0.0
        %1840 = vmatpush1.msra.mxu0 0.0
        %1841 = vmatprep.subr.mxu0 0.0
        %1842 = vmatpush1.msra.mxu0 0.0
        %1843 = vmatprep.subr.mxu0 0.0
        %1844 = vmatpush1.msra.mxu0 0.0
        %1845 = vmatprep.subr.mxu0 0.0
        %1846 = vmatpush1.msra.mxu0 0.0
        %1847 = vmatprep.subr.mxu0 0.0
        %1848 = vmatpush1.msra.mxu0 0.0
        %1849 = vmatprep.subr.mxu0 0.0
        %1850 = vmatpush1.msra.mxu0 0.0
        %1851 = vmatprep.subr.mxu0 0.0
        %1852 = vmatpush1.msra.mxu0 0.0
        %1853 = vmatprep.subr.mxu0 0.0
        %1854 = vmatpush1.msra.mxu0 0.0
        %1855 = vmatprep.subr.mxu0 0.0
        %1856 = vmatpush1.msra.mxu0 0.0
        %1857 = vmatprep.subr.mxu0 0.0
        %1858 = vmatpush1.msra.mxu0 0.0
        %1859 = vmatprep.subr.mxu0 0.0
        %1860 = vmatpush1.msra.mxu0 0.0
        %1861 = vmatprep.subr.mxu0 0.0
        %1862 = vmatpush1.msra.mxu0 0.0
        %1863 = vmatprep.subr.mxu0 0.0
        %1864 = vmatpush1.msra.mxu0 0.0
        %1865 = vmatprep.subr.mxu0 0.0
        %1866 = vmatpush1.msra.mxu0 0.0
        %1867 = vmatprep.subr.mxu0 0.0
        %1868 = vmatpush1.msra.mxu0 0.0
        %1869 = vmatprep.subr.mxu0 0.0
        %1870 = vmatpush1.msra.mxu0 0.0
        %1871 = vmatprep.subr.mxu0 0.0
        %1872 = vmatpush1.msra.mxu0 0.0
        %1873 = vmatprep.subr.mxu0 0.0
        %1874 = vmatpush1.msra.mxu0 0.0
        %1875 = vmatprep.subr.mxu0 0.0
        %1876 = vmatpush1.msra.mxu0 0.0
        %1877 = vmatprep.subr.mxu0 0.0
        %1878 = vmatpush1.msra.mxu0 0.0
        %1879 = vmatprep.mubr.f32.mxu0 0.0
        %1880 = vmatmul.mubr.f32.gmra.mrb[0].mxu0 %v1768
        %v1881 = vpop.f32.mrb[0].mxu0
        %v1882 = vadd.f32 %v1765, %v1881
        %v1883 = vpop.f32.mrb[0].mxu0
        %1884 = vmatprep.mubr.f32.mxu0 0.0
        %1885 = vmatmul.mubr.f32.gmra.mrb[0].mxu0 %v1771
        %v1886 = vpop.f32.mrb[0].mxu0
        %v1887 = vadd.f32 %v1765, %v1886
        %v1888 = vpop.f32.mrb[0].mxu0
        %1889 = vmatprep.mubr.f32.mxu0 0.0
        %1890 = vmatmul.mubr.f32.gmra.mrb[0].mxu0 %v1774
        %v1891 = vpop.f32.mrb[0].mxu0
        %v1892 = vadd.f32 %v1765, %v1891
        %v1893 = vpop.f32.mrb[0].mxu0
        %1894 = vmatprep.mubr.f32.mxu0 0.0
        %1895 = vmatmul.mubr.f32.gmra.mrb[0].mxu0 %v1777
        %v1896 = vpop.f32.mrb[0].mxu0
        %v1897 = vadd.f32 %v1765, %v1896
        %v1898 = vpop.f32.mrb[0].mxu0
        %1899 = vmatprep.mubr.f32.mxu0 0.0
        %1900 = vmatmul.mubr.f32.gmra.mrb[0].mxu0 %v1780
        %v1901 = vpop.f32.mrb[0].mxu0
        %v1902 = vadd.f32 %v1765, %v1901
        %v1903 = vpop.f32.mrb[0].mxu0
        %1904 = vmatprep.mubr.f32.mxu0 0.0
        %1905 = vmatmul.mubr.f32.gmra.mrb[0].mxu0 %v1783
        %v1906 = vpop.f32.mrb[0].mxu0
        %v1907 = vadd.f32 %v1765, %v1906
        %v1908 = vpop.f32.mrb[0].mxu0
        %1909 = vmatprep.mubr.f32.mxu0 0.0
        %1910 = vmatmul.mubr.f32.gmra.mrb[0].mxu0 %v1786
        %v1911 = vpop.f32.mrb[0].mxu0
        %v1912 = vadd.f32 %v1765, %v1911
        %v1913 = vpop.f32.mrb[0].mxu0
        %1914 = vmatprep.mubr.f32.mxu0 0.0
        %1915 = vmatmul.mubr.f32.gmra.mrb[0].mxu0 %v1789
        %v1916 = vpop.f32.mrb[0].mxu0
        %v1917 = vadd.f32 %v1765, %v1916
        %v1918 = vpop.f32.mrb[0].mxu0
        %1919 = vmatprep.mubr.f32.mxu0 0.0
        %1920 = vmatmul.mubr.f32.gmra.mrb[0].mxu0 %v1792
        %v1921 = vpop.f32.mrb[0].mxu0
        %v1922 = vadd.f32 %v1765, %v1921
        %v1923 = vpop.f32.mrb[0].mxu0
        %1924 = vmatprep.mubr.f32.mxu0 0.0
        %1925 = vmatmul.mubr.f32.gmra.mrb[0].mxu0 %v1795
        %v1926 = vpop.f32.mrb[0].mxu0
        %v1927 = vadd.f32 %v1765, %v1926
        %v1928 = vpop.f32.mrb[0].mxu0
        %1929 = vmatprep.mubr.f32.mxu0 0.0
        %1930 = vmatmul.mubr.f32.gmra.mrb[0].mxu0 %v1798
        %v1931 = vpop.f32.mrb[0].mxu0
        %v1932 = vadd.f32 %v1765, %v1931
        %v1933 = vpop.f32.mrb[0].mxu0
        %1934 = vmatprep.mubr.f32.mxu0 0.0
        %1935 = vmatmul.mubr.f32.gmra.mrb[0].mxu0 %v1801
        %v1936 = vpop.f32.mrb[0].mxu0
        %v1937 = vadd.f32 %v1765, %v1936
        %v1938 = vpop.f32.mrb[0].mxu0
        %1939 = vmatprep.mubr.f32.mxu0 0.0
        %1940 = vmatmul.mubr.f32.gmra.mrb[0].mxu0 %v1804
        %v1941 = vpop.f32.mrb[0].mxu0
        %v1942 = vadd.f32 %v1765, %v1941
        %v1943 = vpop.f32.mrb[0].mxu0
        %1944 = vmatprep.mubr.f32.mxu0 0.0
        %1945 = vmatmul.mubr.f32.gmra.mrb[0].mxu0 %v1807
        %v1946 = vpop.f32.mrb[0].mxu0
        %v1947 = vadd.f32 %v1765, %v1946
        %v1948 = vpop.f32.mrb[0].mxu0
        %1949 = vmatprep.mubr.f32.mxu0 0.0
        %1950 = vmatmul.mubr.f32.gmra.mrb[0].mxu0 %v1810
        %v1951 = vpop.f32.mrb[0].mxu0
        %v1952 = vadd.f32 %v1765, %v1951
        %v1953 = vpop.f32.mrb[0].mxu0
        %1954 = vmatprep.mubr.f32.mxu0 0.0
        %1955 = vmatmul.mubr.f32.gmra.mrb[0].mxu0 %v1813
        %v1956 = vpop.f32.mrb[0].mxu0
        %v1957 = vadd.f32 %v1765, %v1956
        %v1958 = vpop.f32.mrb[0].mxu0
        %1959 = vdwg.mxu0
        %v1960 = vld [vmem:[#allocation4] sm:$0xff]
        %v1961 = vld [vmem:[#allocation4 + $0x8] sm:$0xff]
        %v1962 = vld [vmem:[#allocation4 + $0x10] sm:$0xff]
        %v1963 = vld [vmem:[#allocation4 + $0x18] sm:$0xff]
        %1964 = vmatprep.subr.mxu0 0.0
        %1965 = vmatpush1.msra.mxu0 %v1882
        %1966 = vmatprep.subr.mxu0 0.0
        %1967 = vmatpush1.msra.mxu0 %v1887
        %1968 = vmatprep.subr.mxu0 0.0
        %1969 = vmatpush1.msra.mxu0 %v1892
        %1970 = vmatprep.subr.mxu0 0.0
        %1971 = vmatpush1.msra.mxu0 %v1897
        %1972 = vmatprep.subr.mxu0 0.0
        %1973 = vmatpush1.msra.mxu0 %v1902
        %1974 = vmatprep.subr.mxu0 0.0
        %1975 = vmatpush1.msra.mxu0 %v1907
        %1976 = vmatprep.subr.mxu0 0.0
        %1977 = vmatpush1.msra.mxu0 %v1912
        %1978 = vmatprep.subr.mxu0 0.0
        %1979 = vmatpush1.msra.mxu0 %v1917
        %1980 = vmatprep.subr.mxu0 0.0
        %1981 = vmatpush1.msra.mxu0 %v1922
        %1982 = vmatprep.subr.mxu0 0.0
        %1983 = vmatpush1.msra.mxu0 %v1927
        %1984 = vmatprep.subr.mxu0 0.0
        %1985 = vmatpush1.msra.mxu0 %v1932
        %1986 = vmatprep.subr.mxu0 0.0
        %1987 = vmatpush1.msra.mxu0 %v1937
        %1988 = vmatprep.subr.mxu0 0.0
        %1989 = vmatpush1.msra.mxu0 %v1942
        %1990 = vmatprep.subr.mxu0 0.0
        %1991 = vmatpush1.msra.mxu0 %v1947
        %1992 = vmatprep.subr.mxu0 0.0
        %1993 = vmatpush1.msra.mxu0 %v1952
        %1994 = vmatprep.subr.mxu0 0.0
        %1995 = vmatpush1.msra.mxu0 %v1957
        %1996 = vmatprep.subr.mxu0 0.0
        %1997 = vmatpush1.msra.mxu0 0.0
        %1998 = vmatprep.subr.mxu0 0.0
        %1999 = vmatpush1.msra.mxu0 0.0
        %2000 = vmatprep.subr.mxu0 0.0
        %2001 = vmatpush1.msra.mxu0 0.0
        %2002 = vmatprep.subr.mxu0 0.0
        %2003 = vmatpush1.msra.mxu0 0.0
        %2004 = vmatprep.subr.mxu0 0.0
        %2005 = vmatpush1.msra.mxu0 0.0
        %2006 = vmatprep.subr.mxu0 0.0
        %2007 = vmatpush1.msra.mxu0 0.0
        %2008 = vmatprep.subr.mxu0 0.0
        %2009 = vmatpush1.msra.mxu0 0.0
        %2010 = vmatprep.subr.mxu0 0.0
        %2011 = vmatpush1.msra.mxu0 0.0
        %2012 = vmatprep.subr.mxu0 0.0
        %2013 = vmatpush1.msra.mxu0 0.0
        %2014 = vmatprep.subr.mxu0 0.0
        %2015 = vmatpush1.msra.mxu0 0.0
        %2016 = vmatprep.subr.mxu0 0.0
        %2017 = vmatpush1.msra.mxu0 0.0
        %2018 = vmatprep.subr.mxu0 0.0
        %2019 = vmatpush1.msra.mxu0 0.0
        %2020 = vmatprep.subr.mxu0 0.0
        %2021 = vmatpush1.msra.mxu0 0.0
        %2022 = vmatprep.subr.mxu0 0.0
        %2023 = vmatpush1.msra.mxu0 0.0
        %2024 = vmatprep.subr.mxu0 0.0
        %2025 = vmatpush1.msra.mxu0 0.0
        %2026 = vmatprep.subr.mxu0 0.0
        %2027 = vmatpush1.msra.mxu0 0.0
        %2028 = vmatprep.mubr.f32.mxu0 0.0
        %2029 = vmatmul.mubr.f32.gmra.mrb[0].mxu0 %v1087
        %v2030 = vpop.f32.mrb[0].mxu0
        %v2031 = vadd.f32 0.0, %v2030
        %v2032 = vpop.f32.mrb[0].mxu0
        %2033 = vmatprep.mubr.f32.mxu0 0.0
        %2034 = vmatmul.mubr.f32.gmra.mrb[0].mxu0 %v1088
        %v2035 = vpop.f32.mrb[0].mxu0
        %v2036 = vadd.f32 0.0, %v2035
        %v2037 = vpop.f32.mrb[0].mxu0
        %2038 = vmatprep.mubr.f32.mxu0 0.0
        %2039 = vmatmul.mubr.f32.gmra.mrb[0].mxu0 %v1089
        %v2040 = vpop.f32.mrb[0].mxu0
        %v2041 = vadd.f32 0.0, %v2040
        %v2042 = vpop.f32.mrb[0].mxu0
        %2043 = vmatprep.mubr.f32.mxu0 0.0
        %2044 = vmatmul.mubr.f32.gmra.mrb[0].mxu0 %v1090
        %v2045 = vpop.f32.mrb[0].mxu0
        %v2046 = vadd.f32 0.0, %v2045
        %v2047 = vpop.f32.mrb[0].mxu0
        %2048 = vdwg.mxu0
        %v2049 = vadd.f32 %v1960, %v2031
        %v2050 = vadd.f32 %v1961, %v2036
        %v2051 = vadd.f32 %v1962, %v2041
        %v2052 = vadd.f32 %v1963, %v2046
        %2053 = vst.msk [vmem:[#allocation4] sm:$0xff] %vm1099, %v2049
        %2054 = vst.msk [vmem:[#allocation4 + $0x8] sm:$0xff] %vm1099, %v2050
        %2055 = vst.msk [vmem:[#allocation4 + $0x10] sm:$0xff] %vm1099, %v2051
        %2056 = vst.msk [vmem:[#allocation4 + $0x18] sm:$0xff] %vm1099, %v2052
        %2057 = vxpose.xlu0.b32.start [1/16] %v1882, 128
        %2058 = vxpose.xlu0.b32.cont [2/16] %v1887, 128
        %2059 = vxpose.xlu0.b32.cont [3/16] %v1892, 128
        %2060 = vxpose.xlu0.b32.cont [4/16] %v1897, 128
        %2061 = vxpose.xlu0.b32.cont [5/16] %v1902, 128
        %2062 = vxpose.xlu0.b32.cont [6/16] %v1907, 128
        %2063 = vxpose.xlu0.b32.cont [7/16] %v1912, 128
        %2064 = vxpose.xlu0.b32.cont [8/16] %v1917, 128
        %2065 = vxpose.xlu0.b32.cont [9/16] %v1922, 128
        %2066 = vxpose.xlu0.b32.cont [10/16] %v1927, 128
        %2067 = vxpose.xlu0.b32.cont [11/16] %v1932, 128
        %2068 = vxpose.xlu0.b32.cont [12/16] %v1937, 128
        %2069 = vxpose.xlu0.b32.cont [13/16] %v1942, 128
        %2070 = vxpose.xlu0.b32.cont [14/16] %v1947, 128
        %2071 = vxpose.xlu0.b32.cont [15/16] %v1952, 128
        %2072 = vxpose.xlu0.b32.end [16/16] %v1957, 128
        %v2073 = vpop.trf.xlu0
        %v2074 = vpop.trf.xlu0
        %v2075 = vpop.trf.xlu0
        %v2076 = vpop.trf.xlu0
        %v2077 = vpop.trf.xlu0
        %v2078 = vpop.trf.xlu0
        %v2079 = vpop.trf.xlu0
        %v2080 = vpop.trf.xlu0
        %v2081 = vpop.trf.xlu0
        %v2082 = vpop.trf.xlu0
        %v2083 = vpop.trf.xlu0
        %v2084 = vpop.trf.xlu0
        %v2085 = vpop.trf.xlu0
        %v2086 = vpop.trf.xlu0
        %v2087 = vpop.trf.xlu0
        %v2088 = vpop.trf.xlu0
        %2089 = vst [vmem:[%s606] sm:$0xff] %v2073
        %2090 = vst [vmem:[%s606 + $0x8] sm:$0xff] %v2074
        %2091 = vst [vmem:[%s606 + $0x10] sm:$0xff] %v2075
        %2092 = vst [vmem:[%s606 + $0x18] sm:$0xff] %v2076
        %p2093 = scmp.eq.s32.totalorder %s32, 2
        // Predicated region
        $region93: #{learned_lu_forward.2} parent=87 // pred_check
          %p2094 = pneg %p2093
        $region94: #{learned_lu_forward.2} parent=87 // pred_check_branch
          %2096 = sbr.rel (%p2094) target = $region96
        $region95: #{learned_lu_forward.2} parent=87 // pred_region
          %v2097 = vld [vmem:[#allocation4] sm:$0xff]
          %v2098 = vld [vmem:[#allocation4 + $0x8] sm:$0xff]
          %v2099 = vld [vmem:[#allocation4 + $0x10] sm:$0xff]
          %v2100 = vld [vmem:[#allocation4 + $0x18] sm:$0xff]
          %v2101 = vld [vmem:[%s1] sm:$0xff]
          %v2102 = vld [vmem:[%s1 + $0x8] sm:$0xff]
          %v2103 = vld [vmem:[%s1 + $0x10] sm:$0xff]
          %v2104 = vld [vmem:[%s1 + $0x18] sm:$0xff]
          %2106 = vset.pattern.permute.xlu0 0
          %2107 = vperm.xlu0 %2106, %v2101
          %v2108 = vpop.permute.xlu0 %2107
          %2111 = vset.pattern.permute.xlu0 0
          %2112 = vperm.xlu0 %2111, %v2102
          %v2113 = vpop.permute.xlu0 %2112
          %2116 = vset.pattern.permute.xlu0 0
          %2117 = vperm.xlu0 %2116, %v2103
          %v2118 = vpop.permute.xlu0 %2117
          %2121 = vset.pattern.permute.xlu0 0
          %2122 = vperm.xlu0 %2121, %v2104
          %v2123 = vpop.permute.xlu0 %2122
          %v2125 = vmul.f32 %v2097, %v2108
          %v2126 = vmul.f32 %v2098, %v2113
          %v2127 = vmul.f32 %v2099, %v2118
          %v2128 = vmul.f32 %v2100, %v2123
          %v2129 = vld [vmem:[%s0] sm:$0xff]
          %v2130 = vld [vmem:[%s0 + $0x8] sm:$0xff]
          %v2131 = vld [vmem:[%s0 + $0x10] sm:$0xff]
          %v2132 = vld [vmem:[%s0 + $0x18] sm:$0xff]
          %v2133 = vld [vmem:[%s12] sm:$0x1]
          %v2134 = vld [vmem:[%s13] sm:$0xff]
          %v2135 = vld [vmem:[%s13 + $0x8] sm:$0xff]
          %v2136 = vld [vmem:[%s13 + $0x10] sm:$0xff]
          %v2137 = vld [vmem:[%s13 + $0x18] sm:$0xff]
          %v2139 = vsel %vm1099, %v2125, 0
          %v2142 = vsel %vm1099, %v2126, 0
          %v2145 = vsel %vm1099, %v2127, 0
          %v2148 = vsel %vm1099, %v2128, 0
          %2150 = vmatprep.subr.mxu0 0.0
          %2151 = vmatpush1.msra.mxu0 %v2134
          %2152 = vmatprep.subr.mxu0 0.0
          %2153 = vmatpush1.msra.mxu0 %v2135
          %2154 = vmatprep.subr.mxu0 0.0
          %2155 = vmatpush1.msra.mxu0 %v2136
          %2156 = vmatprep.subr.mxu0 0.0
          %2157 = vmatpush1.msra.mxu0 %v2137
          %2158 = vmatprep.subr.mxu0 0.0
          %2159 = vmatpush1.msra.mxu0 0.0
          %2160 = vmatprep.subr.mxu0 0.0
          %2161 = vmatpush1.msra.mxu0 0.0
          %2162 = vmatprep.subr.mxu0 0.0
          %2163 = vmatpush1.msra.mxu0 0.0
          %2164 = vmatprep.subr.mxu0 0.0
          %2165 = vmatpush1.msra.mxu0 0.0
          %2166 = vmatprep.subr.mxu0 0.0
          %2167 = vmatpush1.msra.mxu0 0.0
          %2168 = vmatprep.subr.mxu0 0.0
          %2169 = vmatpush1.msra.mxu0 0.0
          %2170 = vmatprep.subr.mxu0 0.0
          %2171 = vmatpush1.msra.mxu0 0.0
          %2172 = vmatprep.subr.mxu0 0.0
          %2173 = vmatpush1.msra.mxu0 0.0
          %2174 = vmatprep.subr.mxu0 0.0
          %2175 = vmatpush1.msra.mxu0 0.0
          %2176 = vmatprep.subr.mxu0 0.0
          %2177 = vmatpush1.msra.mxu0 0.0
          %2178 = vmatprep.subr.mxu0 0.0
          %2179 = vmatpush1.msra.mxu0 0.0
          %2180 = vmatprep.subr.mxu0 0.0
          %2181 = vmatpush1.msra.mxu0 0.0
          %2182 = vmatprep.subr.mxu0 0.0
          %2183 = vmatpush1.msra.mxu0 0.0
          %2184 = vmatprep.subr.mxu0 0.0
          %2185 = vmatpush1.msra.mxu0 0.0
          %2186 = vmatprep.subr.mxu0 0.0
          %2187 = vmatpush1.msra.mxu0 0.0
          %2188 = vmatprep.subr.mxu0 0.0
          %2189 = vmatpush1.msra.mxu0 0.0
          %2190 = vmatprep.subr.mxu0 0.0
          %2191 = vmatpush1.msra.mxu0 0.0
          %2192 = vmatprep.subr.mxu0 0.0
          %2193 = vmatpush1.msra.mxu0 0.0
          %2194 = vmatprep.subr.mxu0 0.0
          %2195 = vmatpush1.msra.mxu0 0.0
          %2196 = vmatprep.subr.mxu0 0.0
          %2197 = vmatpush1.msra.mxu0 0.0
          %2198 = vmatprep.subr.mxu0 0.0
          %2199 = vmatpush1.msra.mxu0 0.0
          %2200 = vmatprep.subr.mxu0 0.0
          %2201 = vmatpush1.msra.mxu0 0.0
          %2202 = vmatprep.subr.mxu0 0.0
          %2203 = vmatpush1.msra.mxu0 0.0
          %2204 = vmatprep.subr.mxu0 0.0
          %2205 = vmatpush1.msra.mxu0 0.0
          %2206 = vmatprep.subr.mxu0 0.0
          %2207 = vmatpush1.msra.mxu0 0.0
          %2208 = vmatprep.subr.mxu0 0.0
          %2209 = vmatpush1.msra.mxu0 0.0
          %2210 = vmatprep.subr.mxu0 0.0
          %2211 = vmatpush1.msra.mxu0 0.0
          %2212 = vmatprep.subr.mxu0 0.0
          %2213 = vmatpush1.msra.mxu0 0.0
          %2214 = vmatprep.mubr.f32.mxu0 0.0
          %2215 = vmatmul.mubr.f32.gmra.mrb[0].mxu0 %v2139
          %v2216 = vpop.f32.mrb[0].mxu0
          %v2217 = vadd.f32 0.0, %v2216
          %v2218 = vpop.f32.mrb[0].mxu0
          %2219 = vmatprep.mubr.f32.mxu0 0.0
          %2220 = vmatmul.mubr.f32.gmra.mrb[0].mxu0 %v2142
          %v2221 = vpop.f32.mrb[0].mxu0
          %v2222 = vadd.f32 0.0, %v2221
          %v2223 = vpop.f32.mrb[0].mxu0
          %2224 = vmatprep.mubr.f32.mxu0 0.0
          %2225 = vmatmul.mubr.f32.gmra.mrb[0].mxu0 %v2145
          %v2226 = vpop.f32.mrb[0].mxu0
          %v2227 = vadd.f32 0.0, %v2226
          %v2228 = vpop.f32.mrb[0].mxu0
          %2229 = vmatprep.mubr.f32.mxu0 0.0
          %2230 = vmatmul.mubr.f32.gmra.mrb[0].mxu0 %v2148
          %v2231 = vpop.f32.mrb[0].mxu0
          %v2232 = vadd.f32 0.0, %v2231
          %v2233 = vpop.f32.mrb[0].mxu0
          %2234 = vdwg.mxu0
          %vm2235 = vcmask 7168
          %v2237 = vsel %vm2235, %v2129, 0
          %v2240 = vsel %vm2235, %v2130, 0
          %v2243 = vsel %vm2235, %v2131, 0
          %v2246 = vsel %vm2235, %v2132, 0
          %vm2248 = vcmask 1040384
          %v2250 = vsel %vm2248, %v2133, 0
          %2252 = vmatprep.subr.mxu0 0.0
          %2253 = vmatpush1.msra.mxu0 %v2250
          %2254 = vmatprep.subr.mxu0 0.0
          %2255 = vmatpush1.msra.mxu0 0.0
          %2256 = vmatprep.subr.mxu0 0.0
          %2257 = vmatpush1.msra.mxu0 0.0
          %2258 = vmatprep.subr.mxu0 0.0
          %2259 = vmatpush1.msra.mxu0 0.0
          %2260 = vmatprep.subr.mxu0 0.0
          %2261 = vmatpush1.msra.mxu0 0.0
          %2262 = vmatprep.subr.mxu0 0.0
          %2263 = vmatpush1.msra.mxu0 0.0
          %2264 = vmatprep.subr.mxu0 0.0
          %2265 = vmatpush1.msra.mxu0 0.0
          %2266 = vmatprep.subr.mxu0 0.0
          %2267 = vmatpush1.msra.mxu0 0.0
          %2268 = vmatprep.subr.mxu0 0.0
          %2269 = vmatpush1.msra.mxu0 0.0
          %2270 = vmatprep.subr.mxu0 0.0
          %2271 = vmatpush1.msra.mxu0 0.0
          %2272 = vmatprep.subr.mxu0 0.0
          %2273 = vmatpush1.msra.mxu0 0.0
          %2274 = vmatprep.subr.mxu0 0.0
          %2275 = vmatpush1.msra.mxu0 0.0
          %2276 = vmatprep.subr.mxu0 0.0
          %2277 = vmatpush1.msra.mxu0 0.0
          %2278 = vmatprep.subr.mxu0 0.0
          %2279 = vmatpush1.msra.mxu0 0.0
          %2280 = vmatprep.subr.mxu0 0.0
          %2281 = vmatpush1.msra.mxu0 0.0
          %2282 = vmatprep.subr.mxu0 0.0
          %2283 = vmatpush1.msra.mxu0 0.0
          %2284 = vmatprep.subr.mxu0 0.0
          %2285 = vmatpush1.msra.mxu0 0.0
          %2286 = vmatprep.subr.mxu0 0.0
          %2287 = vmatpush1.msra.mxu0 0.0
          %2288 = vmatprep.subr.mxu0 0.0
          %2289 = vmatpush1.msra.mxu0 0.0
          %2290 = vmatprep.subr.mxu0 0.0
          %2291 = vmatpush1.msra.mxu0 0.0
          %2292 = vmatprep.subr.mxu0 0.0
          %2293 = vmatpush1.msra.mxu0 0.0
          %2294 = vmatprep.subr.mxu0 0.0
          %2295 = vmatpush1.msra.mxu0 0.0
          %2296 = vmatprep.subr.mxu0 0.0
          %2297 = vmatpush1.msra.mxu0 0.0
          %2298 = vmatprep.subr.mxu0 0.0
          %2299 = vmatpush1.msra.mxu0 0.0
          %2300 = vmatprep.subr.mxu0 0.0
          %2301 = vmatpush1.msra.mxu0 0.0
          %2302 = vmatprep.subr.mxu0 0.0
          %2303 = vmatpush1.msra.mxu0 0.0
          %2304 = vmatprep.subr.mxu0 0.0
          %2305 = vmatpush1.msra.mxu0 0.0
          %2306 = vmatprep.subr.mxu0 0.0
          %2307 = vmatpush1.msra.mxu0 0.0
          %2308 = vmatprep.subr.mxu0 0.0
          %2309 = vmatpush1.msra.mxu0 0.0
          %2310 = vmatprep.subr.mxu0 0.0
          %2311 = vmatpush1.msra.mxu0 0.0
          %2312 = vmatprep.subr.mxu0 0.0
          %2313 = vmatpush1.msra.mxu0 0.0
          %2314 = vmatprep.subr.mxu0 0.0
          %2315 = vmatpush1.msra.mxu0 0.0
          %2316 = vmatprep.mubr.f32.mxu0 0.0
          %2317 = vmatmul.mubr.f32.gmra.mrb[0].mxu0 %v2237
          %v2318 = vpop.f32.mrb[0].mxu0
          %v2319 = vadd.f32 %v2217, %v2318
          %v2320 = vpop.f32.mrb[0].mxu0
          %2321 = vmatprep.mubr.f32.mxu0 0.0
          %2322 = vmatmul.mubr.f32.gmra.mrb[0].mxu0 %v2240
          %v2323 = vpop.f32.mrb[0].mxu0
          %v2324 = vadd.f32 %v2222, %v2323
          %v2325 = vpop.f32.mrb[0].mxu0
          %2326 = vmatprep.mubr.f32.mxu0 0.0
          %2327 = vmatmul.mubr.f32.gmra.mrb[0].mxu0 %v2243
          %v2328 = vpop.f32.mrb[0].mxu0
          %v2329 = vadd.f32 %v2227, %v2328
          %v2330 = vpop.f32.mrb[0].mxu0
          %2331 = vmatprep.mubr.f32.mxu0 0.0
          %2332 = vmatmul.mubr.f32.gmra.mrb[0].mxu0 %v2246
          %v2333 = vpop.f32.mrb[0].mxu0
          %v2334 = vadd.f32 %v2232, %v2333
          %v2335 = vpop.f32.mrb[0].mxu0
          %2336 = vdwg.mxu0
          %v2337 = vld [vmem:[%s14] sm:$0x1]
          %v2339 = vlaneseq
          %v2340 = vshrl.u32 %v2339, 7
          %v2341 = vsub.s32 0, %v2340
          %v2342 = vrot.slane %v2337, %v2341
          %v2344 = vadd.f32 %v2319, %v2342
          %v2345 = vadd.f32 %v2324, %v2342
          %v2346 = vadd.f32 %v2329, %v2342
          %v2347 = vadd.f32 %v2334, %v2342
          %v2348 = vmax.f32 %v2344, 0.0
          %v2349 = vmax.f32 %v2345, 0.0
          %v2350 = vmax.f32 %v2346, 0.0
          %v2351 = vmax.f32 %v2347, 0.0
          %v2352 = vld [vmem:[%s15] sm:$0xff]
          %v2353 = vld [vmem:[%s15 + $0x8] sm:$0xff]
          %v2354 = vld [vmem:[%s15 + $0x10] sm:$0xff]
          %v2355 = vld [vmem:[%s15 + $0x18] sm:$0xff]
          %v2356 = vld [vmem:[#allocation5] sm:$0x1]
          %v2358 = vlaneseq
          %v2359 = vshrl.u32 %v2358, 7
          %v2360 = vsub.s32 0, %v2359
          %v2361 = vrot.slane %v2356, %v2360
          %v2364 = vsel %vm1099, %v2348, 0
          %v2367 = vsel %vm1099, %v2349, 0
          %v2370 = vsel %vm1099, %v2350, 0
          %v2373 = vsel %vm1099, %v2351, 0
          %2375 = vmatprep.subr.mxu0 0.0
          %2376 = vmatpush1.msra.mxu0 %v2352
          %2377 = vmatprep.subr.mxu0 0.0
          %2378 = vmatpush1.msra.mxu0 %v2353
          %2379 = vmatprep.subr.mxu0 0.0
          %2380 = vmatpush1.msra.mxu0 %v2354
          %2381 = vmatprep.subr.mxu0 0.0
          %2382 = vmatpush1.msra.mxu0 %v2355
          %2383 = vmatprep.subr.mxu0 0.0
          %2384 = vmatpush1.msra.mxu0 0.0
          %2385 = vmatprep.subr.mxu0 0.0
          %2386 = vmatpush1.msra.mxu0 0.0
          %2387 = vmatprep.subr.mxu0 0.0
          %2388 = vmatpush1.msra.mxu0 0.0
          %2389 = vmatprep.subr.mxu0 0.0
          %2390 = vmatpush1.msra.mxu0 0.0
          %2391 = vmatprep.subr.mxu0 0.0
          %2392 = vmatpush1.msra.mxu0 0.0
          %2393 = vmatprep.subr.mxu0 0.0
          %2394 = vmatpush1.msra.mxu0 0.0
          %2395 = vmatprep.subr.mxu0 0.0
          %2396 = vmatpush1.msra.mxu0 0.0
          %2397 = vmatprep.subr.mxu0 0.0
          %2398 = vmatpush1.msra.mxu0 0.0
          %2399 = vmatprep.subr.mxu0 0.0
          %2400 = vmatpush1.msra.mxu0 0.0
          %2401 = vmatprep.subr.mxu0 0.0
          %2402 = vmatpush1.msra.mxu0 0.0
          %2403 = vmatprep.subr.mxu0 0.0
          %2404 = vmatpush1.msra.mxu0 0.0
          %2405 = vmatprep.subr.mxu0 0.0
          %2406 = vmatpush1.msra.mxu0 0.0
          %2407 = vmatprep.subr.mxu0 0.0
          %2408 = vmatpush1.msra.mxu0 0.0
          %2409 = vmatprep.subr.mxu0 0.0
          %2410 = vmatpush1.msra.mxu0 0.0
          %2411 = vmatprep.subr.mxu0 0.0
          %2412 = vmatpush1.msra.mxu0 0.0
          %2413 = vmatprep.subr.mxu0 0.0
          %2414 = vmatpush1.msra.mxu0 0.0
          %2415 = vmatprep.subr.mxu0 0.0
          %2416 = vmatpush1.msra.mxu0 0.0
          %2417 = vmatprep.subr.mxu0 0.0
          %2418 = vmatpush1.msra.mxu0 0.0
          %2419 = vmatprep.subr.mxu0 0.0
          %2420 = vmatpush1.msra.mxu0 0.0
          %2421 = vmatprep.subr.mxu0 0.0
          %2422 = vmatpush1.msra.mxu0 0.0
          %2423 = vmatprep.subr.mxu0 0.0
          %2424 = vmatpush1.msra.mxu0 0.0
          %2425 = vmatprep.subr.mxu0 0.0
          %2426 = vmatpush1.msra.mxu0 0.0
          %2427 = vmatprep.subr.mxu0 0.0
          %2428 = vmatpush1.msra.mxu0 0.0
          %2429 = vmatprep.subr.mxu0 0.0
          %2430 = vmatpush1.msra.mxu0 0.0
          %2431 = vmatprep.subr.mxu0 0.0
          %2432 = vmatpush1.msra.mxu0 0.0
          %2433 = vmatprep.subr.mxu0 0.0
          %2434 = vmatpush1.msra.mxu0 0.0
          %2435 = vmatprep.subr.mxu0 0.0
          %2436 = vmatpush1.msra.mxu0 0.0
          %2437 = vmatprep.subr.mxu0 0.0
          %2438 = vmatpush1.msra.mxu0 0.0
          %2439 = vmatprep.mubr.f32.mxu0 0.0
          %2440 = vmatmul.mubr.f32.gmra.mrb[0].mxu0 %v2364
          %v2441 = vpop.f32.mrb[0].mxu0
          %v2442 = vadd.f32 %v2361, %v2441
          %v2443 = vpop.f32.mrb[0].mxu0
          %2444 = vmatprep.mubr.f32.mxu0 0.0
          %2445 = vmatmul.mubr.f32.gmra.mrb[0].mxu0 %v2367
          %v2446 = vpop.f32.mrb[0].mxu0
          %v2447 = vadd.f32 %v2361, %v2446
          %v2448 = vpop.f32.mrb[0].mxu0
          %2449 = vmatprep.mubr.f32.mxu0 0.0
          %2450 = vmatmul.mubr.f32.gmra.mrb[0].mxu0 %v2370
          %v2451 = vpop.f32.mrb[0].mxu0
          %v2452 = vadd.f32 %v2361, %v2451
          %v2453 = vpop.f32.mrb[0].mxu0
          %2454 = vmatprep.mubr.f32.mxu0 0.0
          %2455 = vmatmul.mubr.f32.gmra.mrb[0].mxu0 %v2373
          %v2456 = vpop.f32.mrb[0].mxu0
          %v2457 = vadd.f32 %v2361, %v2456
          %v2458 = vpop.f32.mrb[0].mxu0
          %2459 = vdwg.mxu0
          %2460 = vst.msk [vmem:[%s18] sm:$0xff] %vm2235, %v2442
          %2461 = vst.msk [vmem:[%s18 + $0x8] sm:$0xff] %vm2235, %v2447
          %2462 = vst.msk [vmem:[%s18 + $0x10] sm:$0xff] %vm2235, %v2452
          %2463 = vst.msk [vmem:[%s18 + $0x18] sm:$0xff] %vm2235, %v2457
        $region96: #{learned_lu_forward.2} parent=87 // pred_fallthru
          _
        %s2464 = sand.u32 %s417, 1
        %s2465 = sand.u32 %s417, 1
        %s2466 = smul.addr %s2465, 32
        %s2467 = scalar_lea.vmem [#allocation6], %s2466
        // Predicated region
        $region97: #{learned_lu_forward.2} parent=87 // pred_check
          %p2468 = pneg %p427
        $region98: #{learned_lu_forward.2} parent=87 // pred_check_branch
          %2470 = sbr.rel (%p2468) target = $region100
        $region99: #{learned_lu_forward.2} parent=87 // pred_region
          %s2471 = smul.addr %s32, 8
          %s2472 = scalar_lea.vmem %s17, %s2471
          // Predicated region
          $region101: #{learned_lu_forward.2} parent=99 // pred_check
            _
          $region102: #{learned_lu_forward.2} parent=99 // pred_check_branch
            %2474 = sbr.rel (0) target = $region104
          $region103: #{learned_lu_forward.2} parent=99 // pred_region
            // Predicated region
            $region105: #{learned_lu_forward.2} parent=103 // pred_check
              _
            $region106: #{learned_lu_forward.2} parent=103 // pred_check_branch
              %2476 = sbr.rel (0) target = $region108
            $region107: #{learned_lu_forward.2} parent=103 // pred_region
              // Predicated region
              $region120: #{learned_lu_forward.2} parent=107 // pred_check
                _
              $region121: #{learned_lu_forward.2} parent=107 // pred_check_branch
                %2497 = sbr.rel (0) target = $region123
              $region122: #{learned_lu_forward.2} parent=107 // pred_region
                loop: start=0, step=1, limit=1
                $region124: #{learned_lu_forward.2} parent=122 // loop_pre_header
                  _
                $region125: #{learned_lu_forward.2} parent=122 // loop_header
                  %s2499 = sphi 0, %s2503
                  %p2500 = scmp.ge.s32.totalorder %s2499, 1
                  %s2504 = sphi %s2467, %s2467
                  %s2505 = sphi %s2472, %s2472
                $region126: #{learned_lu_forward.2} parent=122 // loop_header_branch
                  %2502 = sbr.rel (%p2500) target = $region130
                $region127: #{learned_lu_forward.2} parent=122 // loop_body
                  %v2506 = vld [vmem:[%s2504] sm:$0xff]
                  %2507 = vst [vmem:[%s2505] sm:$0xff] %v2506
                  %v2508 = vld [vmem:[%s2504 + $0x8] sm:$0xff]
                  %2509 = vst [vmem:[%s2505 + $0x18] sm:$0xff] %v2508
                  %v2510 = vld [vmem:[%s2504 + $0x10] sm:$0xff]
                  %2511 = vst [vmem:[%s2505 + $0x30] sm:$0xff] %v2510
                  %v2512 = vld [vmem:[%s2504 + $0x18] sm:$0xff]
                  %2513 = vst [vmem:[%s2505 + $0x48] sm:$0xff] %v2512
                $region128: #{learned_lu_forward.2} parent=122 // loop_footer
                  %s2503 = sadd.s32 1, %s2499
                $region129: #{learned_lu_forward.2} parent=122 // loop_footer_branch
                  %2498 = sbr.rel target = $region125
                $region130: #{learned_lu_forward.2} parent=122 // loop_exit
                  _
              $region123: #{learned_lu_forward.2} parent=107 // pred_fallthru
                _
              // Predicated region
              $region131: #{learned_lu_forward.2} parent=107 // pred_check
                _
              $region132: #{learned_lu_forward.2} parent=107 // pred_check_branch
                %2515 = sbr.rel target = $region134
              $region133: #{learned_lu_forward.2} parent=107 // pred_region
                _
              $region134: #{learned_lu_forward.2} parent=107 // pred_fallthru
                _
            $region108: #{learned_lu_forward.2} parent=103 // pred_fallthru
              _
            // Predicated region
            $region109: #{learned_lu_forward.2} parent=103 // pred_check
              _
            $region110: #{learned_lu_forward.2} parent=103 // pred_check_branch
              %2478 = sbr.rel target = $region112
            $region111: #{learned_lu_forward.2} parent=103 // pred_region
              loop: start=0, step=1, limit=1
              $region113: #{learned_lu_forward.2} parent=111 // loop_pre_header
                _
              $region114: #{learned_lu_forward.2} parent=111 // loop_header
                %s2481 = sphi 0, %s2485
                %p2482 = scmp.ge.s32.totalorder %s2481, 1
                %s2486 = sphi %s2467, %s2467
                %s2487 = sphi %s2472, %s2472
              $region115: #{learned_lu_forward.2} parent=111 // loop_header_branch
                %2484 = sbr.rel (%p2482) target = $region119
              $region116: #{learned_lu_forward.2} parent=111 // loop_body
                %v2488 = vld [vmem:[%s2486] sm:$0xff]
                %2489 = vst [vmem:[%s2487] sm:$0xff] %v2488
                %v2490 = vld [vmem:[%s2486 + $0x8] sm:$0xff]
                %2491 = vst [vmem:[%s2487 + $0x18] sm:$0xff] %v2490
                %v2492 = vld [vmem:[%s2486 + $0x10] sm:$0xff]
                %2493 = vst [vmem:[%s2487 + $0x30] sm:$0xff] %v2492
                %v2494 = vld [vmem:[%s2486 + $0x18] sm:$0xff]
                %2495 = vst [vmem:[%s2487 + $0x48] sm:$0xff] %v2494
              $region117: #{learned_lu_forward.2} parent=111 // loop_footer
                %s2485 = sadd.s32 1, %s2481
              $region118: #{learned_lu_forward.2} parent=111 // loop_footer_branch
                %2480 = sbr.rel target = $region114
              $region119: #{learned_lu_forward.2} parent=111 // loop_exit
                _
            $region112: #{learned_lu_forward.2} parent=103 // pred_fallthru
              _
          $region104: #{learned_lu_forward.2} parent=99 // pred_fallthru
            _
          %2516 = vnop
        $region100: #{learned_lu_forward.2} parent=87 // pred_fallthru
          _
        // Predicated region
        $region135: #{learned_lu_forward.2} parent=87 // pred_check
          %p2517 = pneg %p448
        $region136: #{learned_lu_forward.2} parent=87 // pred_check_branch
          %2519 = sbr.rel (%p2517) target = $region138
        $region137: #{learned_lu_forward.2} parent=87 // pred_region
          _
        $region138: #{learned_lu_forward.2} parent=87 // pred_fallthru
          _
        // Predicated region
        $region139: #{learned_lu_forward.2} parent=87 // pred_check
          %p2520 = pneg %p448
        $region140: #{learned_lu_forward.2} parent=87 // pred_check_branch
          %2522 = sbr.rel (%p2520) target = $region142
        $region141: #{learned_lu_forward.2} parent=87 // pred_region
          _
        $region142: #{learned_lu_forward.2} parent=87 // pred_fallthru
          _
      $region88: #{learned_lu_forward.2} parent=5 // pred_fallthru
        _
      %p2523 = scmp.le.s32.totalorder 2, %s27
      // Predicated region
      $region143: #{learned_lu_forward.2} parent=5 // pred_check
        %p2524 = pneg %p2523
      $region144: #{learned_lu_forward.2} parent=5 // pred_check_branch
        %2526 = sbr.rel (%p2524) target = $region146
      $region145: #{learned_lu_forward.2} parent=5 // pred_region
        %s2527 = ssub.s32 %s27, 2
        // Predicated region
        $region147: #{learned_lu_forward.2} parent=145 // pred_check
          %p2528 = pneg %p433
        $region148: #{learned_lu_forward.2} parent=145 // pred_check_branch
          %2530 = sbr.rel (%p2528) target = $region150
        $region149: #{learned_lu_forward.2} parent=145 // pred_region
          %s2531 = sand.u32 %s418, 1
          %s2532 = sand.u32 %s418, 1
          %s2533 = smul.addr %s2532, 32
          %s2534 = scalar_lea.vmem [#allocation6], %s2533
        $region150: #{learned_lu_forward.2} parent=145 // pred_fallthru
          _
      $region146: #{learned_lu_forward.2} parent=5 // pred_fallthru
        _
    $region6: #{learned_lu_forward.2} parent=1 // loop_footer
      %s31 = sadd.s32 1, %s27
    $region7: #{learned_lu_forward.2} parent=1 // loop_footer_branch
      %26 = sbr.rel target = $region3
    $region8: #{learned_lu_forward.2} parent=1 // loop_exit
      _

</llo_original>
